<compile_context>
chip_gen: v7x
topology: tpu7x:2x2x1
jax: 0.10.0
libtpu: 0.0.40
codegen_flags: <defaults>
</compile_context>

<pallas_src>
import functools

import jax
import jax.numpy as jnp
from jax.experimental import pallas as pl
from jax.experimental.pallas import tpu as pltpu

EPS = 1e-5


def _round_up(n, m):
    return ((n + m - 1) // m) * m


def _as_dtype(a, dt):
    return a if a.dtype == dt else a.astype(dt)


# -----------------------------------------------------------------------------
# Tiny-batch fast path: whole batch resident in VMEM, single pass, exact stats.
# -----------------------------------------------------------------------------
def _single_pass_kernel(
    x_ref,
    ew1_ref, eg1_ref, ebt1_ref,
    ew2_ref, eg2_ref, ebt2_ref,
    ew3_ref, eb3_ref,
    dw1_ref, dg1_ref, dbt1_ref,
    dw2_ref, dg2_ref, dbt2_ref,
    dw3_ref, db3_ref,
    o_ref,
    *, inv_b,
):
    cdt = x_ref.dtype  # MXU input dtype (bf16); accumulation / BN math in f32

    def dot(a, w_ref):
        return jnp.dot(a.astype(cdt), w_ref[...],
                       preferred_element_type=jnp.float32)

    def bn_relu(h, g_ref, b_ref):
        mean = jnp.sum(h, axis=0, keepdims=True) * inv_b
        ex2 = jnp.sum(h * h, axis=0, keepdims=True) * inv_b
        var = jnp.maximum(ex2 - mean * mean, 0.0)
        scale = g_ref[...] * jax.lax.rsqrt(var + EPS)
        shift = b_ref[...] - mean * scale
        return jnp.maximum(h * scale + shift, 0.0)

    h = bn_relu(dot(x_ref[...], ew1_ref), eg1_ref, ebt1_ref)
    h = bn_relu(dot(h, ew2_ref), eg2_ref, ebt2_ref)
    z = dot(h, ew3_ref) + eb3_ref[...]
    h = bn_relu(dot(z, dw1_ref), dg1_ref, dbt1_ref)
    h = bn_relu(dot(h, dw2_ref), dg2_ref, dbt2_ref)
    o_ref[...] = (dot(h, dw3_ref) + db3_ref[...]).astype(o_ref.dtype)


# -----------------------------------------------------------------------------
# Per-stage kernels for the batch-tiled path (tile axis is megacore-parallel).
# Each stats stage writes the pre-BN activation tile (activation cache) and a
# per-tile (sum, sumsq) partial.  No padding masks: padded rows are corrected
# exactly in XLA via the "phantom row" (see wrapper).
# -----------------------------------------------------------------------------
def _write_stats(part_ref, h):
    # TODO(synk): fuse the two reductions over h into one chunked pass if the
    # vld slot ever becomes binding at very large tile_b.
    part_ref[:, 0:1, :] = jnp.sum(h, axis=0, keepdims=True)[None]
    part_ref[:, 1:2, :] = jnp.sum(h * h, axis=0, keepdims=True)[None]


def _stage0_kernel(x_ref, w_ref, pre_ref, part_ref):
    # pre1 = x @ W1   (padded rows of x are zero -> their pre1 is exactly zero)
    h = jnp.dot(x_ref[...], w_ref[...], preferred_element_type=jnp.float32)
    pre_ref[...] = h
    _write_stats(part_ref, h)


def _stage_bn_kernel(h_ref, sc_ref, sh_ref, w_ref, pre_ref, part_ref, *, cdt):
    # pre_{k+1} = relu(bn_k(pre_k)) @ W
    a = jnp.maximum(h_ref[...] * sc_ref[...] + sh_ref[...], 0.0)
    h = jnp.dot(a.astype(cdt), w_ref[...], preferred_element_type=jnp.float32)
    pre_ref[...] = h
    _write_stats(part_ref, h)


def _stage_latent_kernel(h_ref, sc_ref, sh_ref, w3_ref, b3_ref, w4_ref,
                         pre_ref, part_ref, *, cdt):
    # z = relu(bn2(pre2)) @ W3 + b3 ; pre3 = z @ W4
    a = jnp.maximum(h_ref[...] * sc_ref[...] + sh_ref[...], 0.0)
    z = jnp.dot(a.astype(cdt), w3_ref[...],
                preferred_element_type=jnp.float32) + b3_ref[...]
    h = jnp.dot(z.astype(cdt), w4_ref[...], preferred_element_type=jnp.float32)
    pre_ref[...] = h
    _write_stats(part_ref, h)


def _stage_final_kernel(h_ref, sc_ref, sh_ref, w_ref, b_ref, o_ref, *, cdt):
    # out = relu(bn4(pre4)) @ W6 + b6
    a = jnp.maximum(h_ref[...] * sc_ref[...] + sh_ref[...], 0.0)
    o_ref[...] = (jnp.dot(a.astype(cdt), w_ref[...],
                          preferred_element_type=jnp.float32)
                  + b_ref[...]).astype(o_ref.dtype)


# -----------------------------------------------------------------------------
# Parameter preparation: hoist the bf16 weight casts out of the forward.
# -----------------------------------------------------------------------------
def prepare_params(params, compute_dtype=jnp.bfloat16):
    (ew1, eg1, ebt1, ew2, eg2, ebt2, ew3, eb3,
     dw1, dg1, dbt1, dw2, dg2, dbt2, dw3, db3) = params
    c = lambda w: w.astype(compute_dtype)
    return (c(ew1), eg1, ebt1, c(ew2), eg2, ebt2, c(ew3), eb3,
            c(dw1), dg1, dbt1, c(dw2), dg2, dbt2, c(dw3), db3)


# -----------------------------------------------------------------------------
# Wrapper
# -----------------------------------------------------------------------------
def autoencoder_forward(x, params, *, tile_b=8192, compute_dtype=jnp.bfloat16):
    (ew1, eg1, ebt1, ew2, eg2, ebt2, ew3, eb3,
     dw1, dg1, dbt1, dw2, dg2, dbt2, dw3, db3) = params
    B, n_in = x.shape
    d1, d2 = ew1.shape[1], ew2.shape[1]
    dl = ew3.shape[1]
    d3, d4 = dw1.shape[1], dw2.shape[1]
    n_out = dw3.shape[1]

    cdt = compute_dtype
    x_c = x.astype(cdt)
    # Weights should already be compute-dtype via prepare_params(); the cast
    # below is a static no-op in that case.
    ew1c, ew2c, ew3c, dw1c, dw2c, dw3c = (
        _as_dtype(w, cdt) for w in (ew1, ew2, ew3, dw1, dw2, dw3))
    inv_b = 1.0 / B

    # -------------------- tiny-batch single-pass path -------------------------
    if B <= tile_b:
        vmem = pl.BlockSpec(memory_space=pltpu.MemorySpace.VMEM)
        param_args = (ew1c, eg1, ebt1, ew2c, eg2, ebt2, ew3c, eb3,
                      dw1c, dg1, dbt1, dw2c, dg2, dbt2, dw3c, db3)
        macs = sum(int(w.size) for w in (ew1, ew2, ew3, dw1, dw2, dw3))
        pbytes = sum(int(p.size) * p.dtype.itemsize for p in param_args)
        return pl.pallas_call(
            functools.partial(_single_pass_kernel, inv_b=inv_b),
            out_shape=jax.ShapeDtypeStruct((B, n_out), jnp.float32),
            in_specs=[vmem] * (1 + len(param_args)),
            out_specs=vmem,
            compiler_params=pltpu.CompilerParams(
                vmem_limit_bytes=32 * 1024 * 1024),
            cost_estimate=pl.CostEstimate(
                flops=2 * macs * B, transcendentals=192,
                bytes_accessed=int(B * n_in * 2 + B * n_out * 4 + pbytes)),
        )(x_c, *param_args)

    # -------------------- batch-tiled per-stage path ---------------------------
    # MXU-row aligned (256) which also satisfies v5e bf16 sublane packing (16).
    tile_b = max(256, tile_b - tile_b % 256)
    b_pad = _round_up(B, tile_b)
    num_tiles = b_pad // tile_b
    n_pad = b_pad - B
    if n_pad:
        x_c = jnp.pad(x_c, ((0, n_pad), (0, 0)))  # zero rows -> exact phantom

    # 48 MiB leaves headroom under v7x's 64 MiB physical VMEM; plenty on
    # v5e/v6e (128 MiB).  Re-derive if tile_b is pushed past ~16K.
    cparams = pltpu.CompilerParams(
        dimension_semantics=("parallel",),          # megacore-shard batch tiles
        vmem_limit_bytes=48 * 1024 * 1024)

    def act_spec(f):
        return pl.BlockSpec((tile_b, f), lambda t: (t, 0))

    def res_spec(p):                                 # VMEM-resident, no re-DMA
        return pl.BlockSpec(p.shape, lambda t: (0, 0))

    def part_spec(f):
        return pl.BlockSpec((1, 2, f), lambda t: (t, 0, 0))

    def stats_out(f):
        return (jax.ShapeDtypeStruct((b_pad, f), jnp.float32),
                jax.ShapeDtypeStruct((num_tiles, 2, f), jnp.float32))

    def dot_c(a, w):
        return jnp.dot(a.astype(cdt), w, preferred_element_type=jnp.float32)

    def fold(part, gamma, beta, pad_pre=None):
        # Combine per-tile partials in XLA; subtract the exact contribution of
        # the n_pad phantom rows; fold BatchNorm into a single affine.
        s = jnp.sum(part[:, 0, :], axis=0, keepdims=True)
        ss = jnp.sum(part[:, 1, :], axis=0, keepdims=True)
        if n_pad and pad_pre is not None:
            s = s - n_pad * pad_pre
            ss = ss - n_pad * pad_pre * pad_pre
        mean = s * inv_b
        var = jnp.maximum(ss * inv_b - mean * mean, 0.0)
        scale = gamma * jax.lax.rsqrt(var + EPS)
        shift = beta - mean * scale
        return scale, shift

    def ce(macs_per_row, in_f, out_f, wbytes):
        return pl.CostEstimate(
            flops=2 * macs_per_row * b_pad, transcendentals=0,
            bytes_accessed=int(b_pad * (in_f + out_f) + wbytes))

    # Stage 0: pre1 = x @ W1
    pre1, part1 = pl.pallas_call(
        _stage0_kernel, grid=(num_tiles,),
        in_specs=[act_spec(n_in), res_spec(ew1c)],
        out_specs=(act_spec(d1), part_spec(d1)),
        out_shape=stats_out(d1),
        compiler_params=cparams,
        cost_estimate=ce(n_in * d1, n_in * 2, d1 * 4, ew1c.size * 2),
    )(x_c, ew1c)
    scale1, shift1 = fold(part1, eg1, ebt1)          # phantom pre1 is exactly 0

    pad_pre2 = dot_c(jnp.maximum(shift1, 0.0), ew2c) if n_pad else None

    # Stage 1: pre2 = relu(bn1(pre1)) @ W2
    pre2, part2 = pl.pallas_call(
        functools.partial(_stage_bn_kernel, cdt=cdt), grid=(num_tiles,),
        in_specs=[act_spec(d1), res_spec(scale1), res_spec(shift1),
                  res_spec(ew2c)],
        out_specs=(act_spec(d2), part_spec(d2)),
        out_shape=stats_out(d2),
        compiler_params=cparams,
        cost_estimate=ce(d1 * d2, d1 * 4, d2 * 4, ew2c.size * 2),
    )(pre1, scale1, shift1, ew2c)
    scale2, shift2 = fold(part2, eg2, ebt2, pad_pre2)

    if n_pad:
        pad_z = dot_c(jnp.maximum(pad_pre2 * scale2 + shift2, 0.0), ew3c) + eb3
        pad_pre3 = dot_c(pad_z, dw1c)
    else:
        pad_pre3 = None

    # Stage 2: z = relu(bn2(pre2)) @ W3 + b3 ; pre3 = z @ W4
    pre3, part3 = pl.pallas_call(
        functools.partial(_stage_latent_kernel, cdt=cdt), grid=(num_tiles,),
        in_specs=[act_spec(d2), res_spec(scale2), res_spec(shift2),
                  res_spec(ew3c), res_spec(eb3), res_spec(dw1c)],
        out_specs=(act_spec(d3), part_spec(d3)),
        out_shape=stats_out(d3),
        compiler_params=cparams,
        cost_estimate=ce(d2 * dl + dl * d3, d2 * 4, d3 * 4,
                         (ew3c.size + dw1c.size) * 2),
    )(pre2, scale2, shift2, ew3c, eb3, dw1c)
    scale3, shift3 = fold(part3, dg1, dbt1, pad_pre3)

    pad_pre4 = (dot_c(jnp.maximum(pad_pre3 * scale3 + shift3, 0.0), dw2c)
                if n_pad else None)

    # Stage 3: pre4 = relu(bn3(pre3)) @ W5
    pre4, part4 = pl.pallas_call(
        functools.partial(_stage_bn_kernel, cdt=cdt), grid=(num_tiles,),
        in_specs=[act_spec(d3), res_spec(scale3), res_spec(shift3),
                  res_spec(dw2c)],
        out_specs=(act_spec(d4), part_spec(d4)),
        out_shape=stats_out(d4),
        compiler_params=cparams,
        cost_estimate=ce(d3 * d4, d3 * 4, d4 * 4, dw2c.size * 2),
    )(pre3, scale3, shift3, dw2c)
    scale4, shift4 = fold(part4, dg2, dbt2, pad_pre4)

    # Stage 4: out = relu(bn4(pre4)) @ W6 + b6
    out = pl.pallas_call(
        functools.partial(_stage_final_kernel, cdt=cdt), grid=(num_tiles,),
        in_specs=[act_spec(d4), res_spec(scale4), res_spec(shift4),
                  res_spec(dw3c), res_spec(db3)],
        out_specs=act_spec(n_out),
        out_shape=jax.ShapeDtypeStruct((b_pad, n_out), jnp.float32),
        compiler_params=cparams,
        cost_estimate=ce(d4 * n_out, d4 * 4, n_out * 4, dw3c.size * 2),
    )(pre4, scale4, shift4, dw3c, db3)

    return out[:B] if n_pad else out


# -----------------------------------------------------------------------------
# Parameters & pure-JAX reference (mirrors kernel math: bf16 matmul inputs,
# f32 accumulation, folded training-mode BatchNorm with biased variance).
# -----------------------------------------------------------------------------
def make_params(key, encoder_dims=(32, 64), decoder_dims=(32, 64),
                n_input=20, latent_dim=10):
    ks = iter(jax.random.split(key, 16))

    def lin(k, fan_in, fan_out):
        bound = 1.0 / jnp.sqrt(fan_in)
        return jax.random.uniform(k, (fan_in, fan_out), jnp.float32, -bound, bound)

    ew1 = lin(next(ks), n_input, encoder_dims[0])
    eg1 = jnp.ones((1, encoder_dims[0]), jnp.float32)
    ebt1 = jnp.zeros((1, encoder_dims[0]), jnp.float32)
    ew2 = lin(next(ks), encoder_dims[0], encoder_dims[1])
    eg2 = jnp.ones((1, encoder_dims[1]), jnp.float32)
    ebt2 = jnp.zeros((1, encoder_dims[1]), jnp.float32)
    ew3 = lin(next(ks), encoder_dims[1], latent_dim)
    eb3 = jax.random.uniform(next(ks), (1, latent_dim), jnp.float32,
                             -1.0 / jnp.sqrt(encoder_dims[1]),
                             1.0 / jnp.sqrt(encoder_dims[1]))

    dw1 = lin(next(ks), latent_dim, decoder_dims[0])
    dg1 = jnp.ones((1, decoder_dims[0]), jnp.float32)
    dbt1 = jnp.zeros((1, decoder_dims[0]), jnp.float32)
    dw2 = lin(next(ks), decoder_dims[0], decoder_dims[1])
    dg2 = jnp.ones((1, decoder_dims[1]), jnp.float32)
    dbt2 = jnp.zeros((1, decoder_dims[1]), jnp.float32)
    dw3 = lin(next(ks), decoder_dims[1], n_input)
    db3 = jax.random.uniform(next(ks), (1, n_input), jnp.float32,
                             -1.0 / jnp.sqrt(decoder_dims[1]),
                             1.0 / jnp.sqrt(decoder_dims[1]))

    return (ew1, eg1, ebt1, ew2, eg2, ebt2, ew3, eb3,
            dw1, dg1, dbt1, dw2, dg2, dbt2, dw3, db3)


def reference_forward(x, params, compute_dtype=jnp.bfloat16):
    (ew1, eg1, ebt1, ew2, eg2, ebt2, ew3, eb3,
     dw1, dg1, dbt1, dw2, dg2, dbt2, dw3, db3) = params

    def dot(a, w):
        return jnp.dot(a.astype(compute_dtype), w.astype(compute_dtype),
                       preferred_element_type=jnp.float32)

    def bn_relu(h, g, b):
        m = jnp.mean(h, axis=0, keepdims=True)
        var = jnp.maximum(jnp.mean(h * h, axis=0, keepdims=True) - m * m, 0.0)
        scale = g * jax.lax.rsqrt(var + EPS)
        shift = b - m * scale
        return jnp.maximum(h * scale + shift, 0.0)

    h = bn_relu(dot(x, ew1), eg1, ebt1)
    h = bn_relu(dot(h, ew2), eg2, ebt2)
    z = dot(h, ew3) + eb3
    h = bn_relu(dot(z, dw1), dg1, dbt1)
    h = bn_relu(dot(h, dw2), dg2, dbt2)
    return dot(h, dw3) + db3


if __name__ == "__main__":
    key = jax.random.PRNGKey(0)
    kx, kp = jax.random.split(key)

    n_input, latent_dim = 20, 10
    params = make_params(kp, encoder_dims=(32, 64), decoder_dims=(32, 64),
                         n_input=n_input, latent_dim=latent_dim)
    prepared = prepare_params(params)          # weights -> bf16, once

    # 1) Batch-tiled path with activation caching + XLA pad-correction.
    #    (Small demo tile; production default is tile_b=8192.)
    B = 600
    x = jax.random.normal(kx, (B, n_input), jnp.float32)
    fwd = jax.jit(functools.partial(autoencoder_forward, tile_b=256))
    out = jax.block_until_ready(fwd(x, prepared))
    ref = reference_forward(x, params)
    assert out.shape == (B, n_input), out.shape
    assert jnp.allclose(out, ref, atol=2e-3, rtol=2e-3), \
        float(jnp.max(jnp.abs(out - ref)))

    # 2) Tiny-batch path: whole batch resident, single-pass kernel.
    Bs = 12
    xs = x[:Bs]
    outs = jax.block_until_ready(autoencoder_forward(xs, prepared))
    refs = reference_forward(xs, params)
    assert outs.shape == (Bs, n_input), outs.shape
    assert jnp.allclose(outs, refs, atol=2e-3, rtol=2e-3), \
        float(jnp.max(jnp.abs(outs - refs)))

    print("KERNEL_OK")
</pallas_src>

<mosaic_0001>
module attributes {stable_mosaic.version = 11 : i64} {
  func.func @_stage0_kernel(%arg0: i32, %arg1: memref<256x20xbf16, #tpu.memory_space<vmem>>, %arg2: memref<20x32xbf16, #tpu.memory_space<vmem>>, %arg3: memref<256x32xf32, #tpu.memory_space<vmem>>, %arg4: memref<1x2x32xf32, #tpu.memory_space<vmem>>) attributes {dimension_semantics = [#tpu.dimension_semantics<parallel>], iteration_bounds = array<i64: 3>, scalar_prefetch = 0 : i64, scratch_operands = 0 : i64, tpu.core_type = #tpu.core_type<tc>, window_params = [{transform_indices = @transform_0, window_bounds = array<i64: 256, 20>}, {pipeline_mode = #tpu.pipeline_mode<synchronous>, transform_indices = @transform_1, window_bounds = array<i64: 20, 32>}, {transform_indices = @transform_2, window_bounds = array<i64: 256, 32>}, {transform_indices = @transform_3, window_bounds = array<i64: 1, 2, 32>}]} {
    %c0 = arith.constant 0 : index
    %c0_0 = arith.constant 0 : index
    %0 = vector.load %arg1[%c0, %c0_0] : memref<256x20xbf16, #tpu.memory_space<vmem>>, vector<256x20xbf16>
    %c0_1 = arith.constant 0 : index
    %c0_2 = arith.constant 0 : index
    %1 = vector.load %arg2[%c0_1, %c0_2] : memref<20x32xbf16, #tpu.memory_space<vmem>>, vector<20x32xbf16>
    %cst = arith.constant dense<0.000000e+00> : vector<256x32xf32>
    %2 = tpu.matmul %0, %1, %cst {dimension_numbers = #tpu.dot_dimension_numbers<[1], [0], [0], [1], [0, 0, 1, 1], [], []>} : vector<256x20xbf16>, vector<20x32xbf16>, vector<256x32xf32> -> vector<256x32xf32>
    %c0_3 = arith.constant 0 : index
    %c0_4 = arith.constant 0 : index
    %3 = vector.load %arg3[%c0_3, %c0_4] : memref<256x32xf32, #tpu.memory_space<vmem>>, vector<256x32xf32>
    tpu.vector_store %arg3[%c0_3, %c0_4], %2 {strides = array<i32>} : memref<256x32xf32, #tpu.memory_space<vmem>>, vector<256x32xf32>,
    %cst_5 = arith.constant dense<0.000000e+00> : vector<32xf32>
    %4 = vector.multi_reduction <add>, %2, %cst_5 [0] : vector<256x32xf32> to vector<32xf32>
    %5 = vector.shape_cast %4 : vector<32xf32> to vector<1x32xf32>
    %6 = vector.shape_cast %5 : vector<1x32xf32> to vector<1x1x32xf32>
    %c0_6 = arith.constant 0 : index
    %c0_7 = arith.constant 0 : index
    %c0_8 = arith.constant 0 : index
    %7 = vector.load %arg4[%c0_6, %c0_7, %c0_8] : memref<1x2x32xf32, #tpu.memory_space<vmem>>, vector<1x1x32xf32>
    tpu.vector_store %arg4[%c0_6, %c0_7, %c0_8], %6 {strides = array<i32>} : memref<1x2x32xf32, #tpu.memory_space<vmem>>, vector<1x1x32xf32>,
    %8 = arith.mulf %2, %2 : vector<256x32xf32>
    %cst_9 = arith.constant dense<0.000000e+00> : vector<32xf32>
    %9 = vector.multi_reduction <add>, %8, %cst_9 [0] : vector<256x32xf32> to vector<32xf32>
    %10 = vector.shape_cast %9 : vector<32xf32> to vector<1x32xf32>
    %11 = vector.shape_cast %10 : vector<1x32xf32> to vector<1x1x32xf32>
    %c0_10 = arith.constant 0 : index
    %c1 = arith.constant 1 : index
    %c0_11 = arith.constant 0 : index
    %12 = vector.load %arg4[%c0_10, %c1, %c0_11] : memref<1x2x32xf32, #tpu.memory_space<vmem>>, vector<1x1x32xf32>
    tpu.vector_store %arg4[%c0_10, %c1, %c0_11], %11 {strides = array<i32>} : memref<1x2x32xf32, #tpu.memory_space<vmem>>, vector<1x1x32xf32>,
    return
  }
  func.func @transform_0(%arg0: i32) -> (i32, i32) {
    %c0_i32 = arith.constant 0 : i32
    %c0_i32_0 = arith.constant 0 : i32
    return %arg0, %c0_i32 : i32, i32
  }
  func.func @transform_1(%arg0: i32) -> (i32, i32) {
    %c0_i32 = arith.constant 0 : i32
    %c0_i32_0 = arith.constant 0 : i32
    %c0_i32_1 = arith.constant 0 : i32
    return %c0_i32, %c0_i32_0 : i32, i32
  }
  func.func @transform_2(%arg0: i32) -> (i32, i32) {
    %c0_i32 = arith.constant 0 : i32
    %c0_i32_0 = arith.constant 0 : i32
    return %arg0, %c0_i32 : i32, i32
  }
  func.func @transform_3(%arg0: i32) -> (i32, i32, i32) {
    %c0_i32 = arith.constant 0 : i32
    %c0_i32_0 = arith.constant 0 : i32
    %c0_i32_1 = arith.constant 0 : i32
    return %arg0, %c0_i32, %c0_i32_0 : i32, i32, i32
  }
}

module attributes {stable_mosaic.version = 11 : i64} {
  func.func @_stage_bn_kernel(%arg0: i32, %arg1: memref<256x32xf32, #tpu.memory_space<vmem>>, %arg2: memref<1x32xf32, #tpu.memory_space<vmem>>, %arg3: memref<1x32xf32, #tpu.memory_space<vmem>>, %arg4: memref<32x64xbf16, #tpu.memory_space<vmem>>, %arg5: memref<256x64xf32, #tpu.memory_space<vmem>>, %arg6: memref<1x2x64xf32, #tpu.memory_space<vmem>>) attributes {dimension_semantics = [#tpu.dimension_semantics<parallel>], iteration_bounds = array<i64: 3>, scalar_prefetch = 0 : i64, scratch_operands = 0 : i64, tpu.core_type = #tpu.core_type<tc>, window_params = [{transform_indices = @transform_0, window_bounds = array<i64: 256, 32>}, {pipeline_mode = #tpu.pipeline_mode<synchronous>, transform_indices = @transform_1, window_bounds = array<i64: 1, 32>}, {pipeline_mode = #tpu.pipeline_mode<synchronous>, transform_indices = @transform_2, window_bounds = array<i64: 1, 32>}, {pipeline_mode = #tpu.pipeline_mode<synchronous>, transform_indices = @transform_3, window_bounds = array<i64: 32, 64>}, {transform_indices = @transform_4, window_bounds = array<i64: 256, 64>}, {transform_indices = @transform_5, window_bounds = array<i64: 1, 2, 64>}]} {
    %c0 = arith.constant 0 : index
    %c0_0 = arith.constant 0 : index
    %0 = vector.load %arg1[%c0, %c0_0] : memref<256x32xf32, #tpu.memory_space<vmem>>, vector<256x32xf32>
    %c0_1 = arith.constant 0 : index
    %c0_2 = arith.constant 0 : index
    %1 = vector.load %arg2[%c0_1, %c0_2] : memref<1x32xf32, #tpu.memory_space<vmem>>, vector<1x32xf32>
    %2 = vector.broadcast %1 : vector<1x32xf32> to vector<256x32xf32>
    %3 = arith.mulf %0, %2 : vector<256x32xf32>
    %c0_3 = arith.constant 0 : index
    %c0_4 = arith.constant 0 : index
    %4 = vector.load %arg3[%c0_3, %c0_4] : memref<1x32xf32, #tpu.memory_space<vmem>>, vector<1x32xf32>
    %5 = vector.broadcast %4 : vector<1x32xf32> to vector<256x32xf32>
    %6 = arith.addf %3, %5 : vector<256x32xf32>
    %cst = arith.constant 0.000000e+00 : f32
    %7 = vector.broadcast %cst : f32 to vector<256x32xf32>
    %8 = arith.maximumf %6, %7 : vector<256x32xf32>
    %9 = arith.truncf %8 : vector<256x32xf32> to vector<256x32xbf16>
    %c0_5 = arith.constant 0 : index
    %c0_6 = arith.constant 0 : index
    %10 = vector.load %arg4[%c0_5, %c0_6] : memref<32x64xbf16, #tpu.memory_space<vmem>>, vector<32x64xbf16>
    %cst_7 = arith.constant dense<0.000000e+00> : vector<256x64xf32>
    %11 = tpu.matmul %9, %10, %cst_7 {dimension_numbers = #tpu.dot_dimension_numbers<[1], [0], [0], [1], [0, 0, 1, 1], [], []>} : vector<256x32xbf16>, vector<32x64xbf16>, vector<256x64xf32> -> vector<256x64xf32>
    %c0_8 = arith.constant 0 : index
    %c0_9 = arith.constant 0 : index
    %12 = vector.load %arg5[%c0_8, %c0_9] : memref<256x64xf32, #tpu.memory_space<vmem>>, vector<256x64xf32>
    tpu.vector_store %arg5[%c0_8, %c0_9], %11 {strides = array<i32>} : memref<256x64xf32, #tpu.memory_space<vmem>>, vector<256x64xf32>,
    %cst_10 = arith.constant dense<0.000000e+00> : vector<64xf32>
    %13 = vector.multi_reduction <add>, %11, %cst_10 [0] : vector<256x64xf32> to vector<64xf32>
    %14 = vector.shape_cast %13 : vector<64xf32> to vector<1x64xf32>
    %15 = vector.shape_cast %14 : vector<1x64xf32> to vector<1x1x64xf32>
    %c0_11 = arith.constant 0 : index
    %c0_12 = arith.constant 0 : index
    %c0_13 = arith.constant 0 : index
    %16 = vector.load %arg6[%c0_11, %c0_12, %c0_13] : memref<1x2x64xf32, #tpu.memory_space<vmem>>, vector<1x1x64xf32>
    tpu.vector_store %arg6[%c0_11, %c0_12, %c0_13], %15 {strides = array<i32>} : memref<1x2x64xf32, #tpu.memory_space<vmem>>, vector<1x1x64xf32>,
    %17 = arith.mulf %11, %11 : vector<256x64xf32>
    %cst_14 = arith.constant dense<0.000000e+00> : vector<64xf32>
    %18 = vector.multi_reduction <add>, %17, %cst_14 [0] : vector<256x64xf32> to vector<64xf32>
    %19 = vector.shape_cast %18 : vector<64xf32> to vector<1x64xf32>
    %20 = vector.shape_cast %19 : vector<1x64xf32> to vector<1x1x64xf32>
    %c0_15 = arith.constant 0 : index
    %c1 = arith.constant 1 : index
    %c0_16 = arith.constant 0 : index
    %21 = vector.load %arg6[%c0_15, %c1, %c0_16] : memref<1x2x64xf32, #tpu.memory_space<vmem>>, vector<1x1x64xf32>
    tpu.vector_store %arg6[%c0_15, %c1, %c0_16], %20 {strides = array<i32>} : memref<1x2x64xf32, #tpu.memory_space<vmem>>, vector<1x1x64xf32>,
    return
  }
  func.func @transform_0(%arg0: i32) -> (i32, i32) {
    %c0_i32 = arith.constant 0 : i32
    %c0_i32_0 = arith.constant 0 : i32
    return %arg0, %c0_i32 : i32, i32
  }
  func.func @transform_1(%arg0: i32) -> (i32, i32) {
    %c0_i32 = arith.constant 0 : i32
    %c0_i32_0 = arith.constant 0 : i32
    %c0_i32_1 = arith.constant 0 : i32
    return %c0_i32, %c0_i32_0 : i32, i32
  }
  func.func @transform_2(%arg0: i32) -> (i32, i32) {
    %c0_i32 = arith.constant 0 : i32
    %c0_i32_0 = arith.constant 0 : i32
    %c0_i32_1 = arith.constant 0 : i32
    return %c0_i32, %c0_i32_0 : i32, i32
  }
  func.func @transform_3(%arg0: i32) -> (i32, i32) {
    %c0_i32 = arith.constant 0 : i32
    %c0_i32_0 = arith.constant 0 : i32
    %c0_i32_1 = arith.constant 0 : i32
    return %c0_i32, %c0_i32_0 : i32, i32
  }
  func.func @transform_4(%arg0: i32) -> (i32, i32) {
    %c0_i32 = arith.constant 0 : i32
    %c0_i32_0 = arith.constant 0 : i32
    return %arg0, %c0_i32 : i32, i32
  }
  func.func @transform_5(%arg0: i32) -> (i32, i32, i32) {
    %c0_i32 = arith.constant 0 : i32
    %c0_i32_0 = arith.constant 0 : i32
    %c0_i32_1 = arith.constant 0 : i32
    return %arg0, %c0_i32, %c0_i32_0 : i32, i32, i32
  }
}

module attributes {stable_mosaic.version = 11 : i64} {
  func.func @_stage_latent_kernel(%arg0: i32, %arg1: memref<256x64xf32, #tpu.memory_space<vmem>>, %arg2: memref<1x64xf32, #tpu.memory_space<vmem>>, %arg3: memref<1x64xf32, #tpu.memory_space<vmem>>, %arg4: memref<64x10xbf16, #tpu.memory_space<vmem>>, %arg5: memref<1x10xf32, #tpu.memory_space<vmem>>, %arg6: memref<10x32xbf16, #tpu.memory_space<vmem>>, %arg7: memref<256x32xf32, #tpu.memory_space<vmem>>, %arg8: memref<1x2x32xf32, #tpu.memory_space<vmem>>) attributes {dimension_semantics = [#tpu.dimension_semantics<parallel>], iteration_bounds = array<i64: 3>, scalar_prefetch = 0 : i64, scratch_operands = 0 : i64, tpu.core_type = #tpu.core_type<tc>, window_params = [{transform_indices = @transform_0, window_bounds = array<i64: 256, 64>}, {pipeline_mode = #tpu.pipeline_mode<synchronous>, transform_indices = @transform_1, window_bounds = array<i64: 1, 64>}, {pipeline_mode = #tpu.pipeline_mode<synchronous>, transform_indices = @transform_2, window_bounds = array<i64: 1, 64>}, {pipeline_mode = #tpu.pipeline_mode<synchronous>, transform_indices = @transform_3, window_bounds = array<i64: 64, 10>}, {pipeline_mode = #tpu.pipeline_mode<synchronous>, transform_indices = @transform_4, window_bounds = array<i64: 1, 10>}, {pipeline_mode = #tpu.pipeline_mode<synchronous>, transform_indices = @transform_5, window_bounds = array<i64: 10, 32>}, {transform_indices = @transform_6, window_bounds = array<i64: 256, 32>}, {transform_indices = @transform_7, window_bounds = array<i64: 1, 2, 32>}]} {
    %c0 = arith.constant 0 : index
    %c0_0 = arith.constant 0 : index
    %0 = vector.load %arg1[%c0, %c0_0] : memref<256x64xf32, #tpu.memory_space<vmem>>, vector<256x64xf32>
    %c0_1 = arith.constant 0 : index
    %c0_2 = arith.constant 0 : index
    %1 = vector.load %arg2[%c0_1, %c0_2] : memref<1x64xf32, #tpu.memory_space<vmem>>, vector<1x64xf32>
    %2 = vector.broadcast %1 : vector<1x64xf32> to vector<256x64xf32>
    %3 = arith.mulf %0, %2 : vector<256x64xf32>
    %c0_3 = arith.constant 0 : index
    %c0_4 = arith.constant 0 : index
    %4 = vector.load %arg3[%c0_3, %c0_4] : memref<1x64xf32, #tpu.memory_space<vmem>>, vector<1x64xf32>
    %5 = vector.broadcast %4 : vector<1x64xf32> to vector<256x64xf32>
    %6 = arith.addf %3, %5 : vector<256x64xf32>
    %cst = arith.constant 0.000000e+00 : f32
    %7 = vector.broadcast %cst : f32 to vector<256x64xf32>
    %8 = arith.maximumf %6, %7 : vector<256x64xf32>
    %9 = arith.truncf %8 : vector<256x64xf32> to vector<256x64xbf16>
    %c0_5 = arith.constant 0 : index
    %c0_6 = arith.constant 0 : index
    %10 = vector.load %arg4[%c0_5, %c0_6] : memref<64x10xbf16, #tpu.memory_space<vmem>>, vector<64x10xbf16>
    %cst_7 = arith.constant dense<0.000000e+00> : vector<256x10xf32>
    %11 = tpu.matmul %9, %10, %cst_7 {dimension_numbers = #tpu.dot_dimension_numbers<[1], [0], [0], [1], [0, 0, 1, 1], [], []>} : vector<256x64xbf16>, vector<64x10xbf16>, vector<256x10xf32> -> vector<256x10xf32>
    %c0_8 = arith.constant 0 : index
    %c0_9 = arith.constant 0 : index
    %12 = vector.load %arg5[%c0_8, %c0_9] : memref<1x10xf32, #tpu.memory_space<vmem>>, vector<1x10xf32>
    %13 = vector.broadcast %12 : vector<1x10xf32> to vector<256x10xf32>
    %14 = arith.addf %11, %13 : vector<256x10xf32>
    %15 = arith.truncf %14 : vector<256x10xf32> to vector<256x10xbf16>
    %c0_10 = arith.constant 0 : index
    %c0_11 = arith.constant 0 : index
    %16 = vector.load %arg6[%c0_10, %c0_11] : memref<10x32xbf16, #tpu.memory_space<vmem>>, vector<10x32xbf16>
    %cst_12 = arith.constant dense<0.000000e+00> : vector<256x32xf32>
    %17 = tpu.matmul %15, %16, %cst_12 {dimension_numbers = #tpu.dot_dimension_numbers<[1], [0], [0], [1], [0, 0, 1, 1], [], []>} : vector<256x10xbf16>, vector<10x32xbf16>, vector<256x32xf32> -> vector<256x32xf32>
    %c0_13 = arith.constant 0 : index
    %c0_14 = arith.constant 0 : index
    %18 = vector.load %arg7[%c0_13, %c0_14] : memref<256x32xf32, #tpu.memory_space<vmem>>, vector<256x32xf32>
    tpu.vector_store %arg7[%c0_13, %c0_14], %17 {strides = array<i32>} : memref<256x32xf32, #tpu.memory_space<vmem>>, vector<256x32xf32>,
    %cst_15 = arith.constant dense<0.000000e+00> : vector<32xf32>
    %19 = vector.multi_reduction <add>, %17, %cst_15 [0] : vector<256x32xf32> to vector<32xf32>
    %20 = vector.shape_cast %19 : vector<32xf32> to vector<1x32xf32>
    %21 = vector.shape_cast %20 : vector<1x32xf32> to vector<1x1x32xf32>
    %c0_16 = arith.constant 0 : index
    %c0_17 = arith.constant 0 : index
    %c0_18 = arith.constant 0 : index
    %22 = vector.load %arg8[%c0_16, %c0_17, %c0_18] : memref<1x2x32xf32, #tpu.memory_space<vmem>>, vector<1x1x32xf32>
    tpu.vector_store %arg8[%c0_16, %c0_17, %c0_18], %21 {strides = array<i32>} : memref<1x2x32xf32, #tpu.memory_space<vmem>>, vector<1x1x32xf32>,
    %23 = arith.mulf %17, %17 : vector<256x32xf32>
    %cst_19 = arith.constant dense<0.000000e+00> : vector<32xf32>
    %24 = vector.multi_reduction <add>, %23, %cst_19 [0] : vector<256x32xf32> to vector<32xf32>
    %25 = vector.shape_cast %24 : vector<32xf32> to vector<1x32xf32>
    %26 = vector.shape_cast %25 : vector<1x32xf32> to vector<1x1x32xf32>
    %c0_20 = arith.constant 0 : index
    %c1 = arith.constant 1 : index
    %c0_21 = arith.constant 0 : index
    %27 = vector.load %arg8[%c0_20, %c1, %c0_21] : memref<1x2x32xf32, #tpu.memory_space<vmem>>, vector<1x1x32xf32>
    tpu.vector_store %arg8[%c0_20, %c1, %c0_21], %26 {strides = array<i32>} : memref<1x2x32xf32, #tpu.memory_space<vmem>>, vector<1x1x32xf32>,
    return
  }
  func.func @transform_0(%arg0: i32) -> (i32, i32) {
    %c0_i32 = arith.constant 0 : i32
    %c0_i32_0 = arith.constant 0 : i32
    return %arg0, %c0_i32 : i32, i32
  }
  func.func @transform_1(%arg0: i32) -> (i32, i32) {
    %c0_i32 = arith.constant 0 : i32
    %c0_i32_0 = arith.constant 0 : i32
    %c0_i32_1 = arith.constant 0 : i32
    return %c0_i32, %c0_i32_0 : i32, i32
  }
  func.func @transform_2(%arg0: i32) -> (i32, i32) {
    %c0_i32 = arith.constant 0 : i32
    %c0_i32_0 = arith.constant 0 : i32
    %c0_i32_1 = arith.constant 0 : i32
    return %c0_i32, %c0_i32_0 : i32, i32
  }
  func.func @transform_3(%arg0: i32) -> (i32, i32) {
    %c0_i32 = arith.constant 0 : i32
    %c0_i32_0 = arith.constant 0 : i32
    %c0_i32_1 = arith.constant 0 : i32
    return %c0_i32, %c0_i32_0 : i32, i32
  }
  func.func @transform_4(%arg0: i32) -> (i32, i32) {
    %c0_i32 = arith.constant 0 : i32
    %c0_i32_0 = arith.constant 0 : i32
    %c0_i32_1 = arith.constant 0 : i32
    return %c0_i32, %c0_i32_0 : i32, i32
  }
  func.func @transform_5(%arg0: i32) -> (i32, i32) {
    %c0_i32 = arith.constant 0 : i32
    %c0_i32_0 = arith.constant 0 : i32
    %c0_i32_1 = arith.constant 0 : i32
    return %c0_i32, %c0_i32_0 : i32, i32
  }
  func.func @transform_6(%arg0: i32) -> (i32, i32) {
    %c0_i32 = arith.constant 0 : i32
    %c0_i32_0 = arith.constant 0 : i32
    return %arg0, %c0_i32 : i32, i32
  }
  func.func @transform_7(%arg0: i32) -> (i32, i32, i32) {
    %c0_i32 = arith.constant 0 : i32
    %c0_i32_0 = arith.constant 0 : i32
    %c0_i32_1 = arith.constant 0 : i32
    return %arg0, %c0_i32, %c0_i32_0 : i32, i32, i32
  }
}

module attributes {stable_mosaic.version = 11 : i64} {
  func.func @_stage_final_kernel(%arg0: i32, %arg1: memref<256x64xf32, #tpu.memory_space<vmem>>, %arg2: memref<1x64xf32, #tpu.memory_space<vmem>>, %arg3: memref<1x64xf32, #tpu.memory_space<vmem>>, %arg4: memref<64x20xbf16, #tpu.memory_space<vmem>>, %arg5: memref<1x20xf32, #tpu.memory_space<vmem>>, %arg6: memref<256x20xf32, #tpu.memory_space<vmem>>) attributes {dimension_semantics = [#tpu.dimension_semantics<parallel>], iteration_bounds = array<i64: 3>, scalar_prefetch = 0 : i64, scratch_operands = 0 : i64, tpu.core_type = #tpu.core_type<tc>, window_params = [{transform_indices = @transform_0, window_bounds = array<i64: 256, 64>}, {pipeline_mode = #tpu.pipeline_mode<synchronous>, transform_indices = @transform_1, window_bounds = array<i64: 1, 64>}, {pipeline_mode = #tpu.pipeline_mode<synchronous>, transform_indices = @transform_2, window_bounds = array<i64: 1, 64>}, {pipeline_mode = #tpu.pipeline_mode<synchronous>, transform_indices = @transform_3, window_bounds = array<i64: 64, 20>}, {pipeline_mode = #tpu.pipeline_mode<synchronous>, transform_indices = @transform_4, window_bounds = array<i64: 1, 20>}, {transform_indices = @transform_5, window_bounds = array<i64: 256, 20>}]} {
    %c0 = arith.constant 0 : index
    %c0_0 = arith.constant 0 : index
    %0 = vector.load %arg1[%c0, %c0_0] : memref<256x64xf32, #tpu.memory_space<vmem>>, vector<256x64xf32>
    %c0_1 = arith.constant 0 : index
    %c0_2 = arith.constant 0 : index
    %1 = vector.load %arg2[%c0_1, %c0_2] : memref<1x64xf32, #tpu.memory_space<vmem>>, vector<1x64xf32>
    %2 = vector.broadcast %1 : vector<1x64xf32> to vector<256x64xf32>
    %3 = arith.mulf %0, %2 : vector<256x64xf32>
    %c0_3 = arith.constant 0 : index
    %c0_4 = arith.constant 0 : index
    %4 = vector.load %arg3[%c0_3, %c0_4] : memref<1x64xf32, #tpu.memory_space<vmem>>, vector<1x64xf32>
    %5 = vector.broadcast %4 : vector<1x64xf32> to vector<256x64xf32>
    %6 = arith.addf %3, %5 : vector<256x64xf32>
    %cst = arith.constant 0.000000e+00 : f32
    %7 = vector.broadcast %cst : f32 to vector<256x64xf32>
    %8 = arith.maximumf %6, %7 : vector<256x64xf32>
    %9 = arith.truncf %8 : vector<256x64xf32> to vector<256x64xbf16>
    %c0_5 = arith.constant 0 : index
    %c0_6 = arith.constant 0 : index
    %10 = vector.load %arg4[%c0_5, %c0_6] : memref<64x20xbf16, #tpu.memory_space<vmem>>, vector<64x20xbf16>
    %cst_7 = arith.constant dense<0.000000e+00> : vector<256x20xf32>
    %11 = tpu.matmul %9, %10, %cst_7 {dimension_numbers = #tpu.dot_dimension_numbers<[1], [0], [0], [1], [0, 0, 1, 1], [], []>} : vector<256x64xbf16>, vector<64x20xbf16>, vector<256x20xf32> -> vector<256x20xf32>
    %c0_8 = arith.constant 0 : index
    %c0_9 = arith.constant 0 : index
    %12 = vector.load %arg5[%c0_8, %c0_9] : memref<1x20xf32, #tpu.memory_space<vmem>>, vector<1x20xf32>
    %13 = vector.broadcast %12 : vector<1x20xf32> to vector<256x20xf32>
    %14 = arith.addf %11, %13 : vector<256x20xf32>
    %c0_10 = arith.constant 0 : index
    %c0_11 = arith.constant 0 : index
    %15 = vector.load %arg6[%c0_10, %c0_11] : memref<256x20xf32, #tpu.memory_space<vmem>>, vector<256x20xf32>
    tpu.vector_store %arg6[%c0_10, %c0_11], %14 {strides = array<i32>} : memref<256x20xf32, #tpu.memory_space<vmem>>, vector<256x20xf32>,
    return
  }
  func.func @transform_0(%arg0: i32) -> (i32, i32) {
    %c0_i32 = arith.constant 0 : i32
    %c0_i32_0 = arith.constant 0 : i32
    return %arg0, %c0_i32 : i32, i32
  }
  func.func @transform_1(%arg0: i32) -> (i32, i32) {
    %c0_i32 = arith.constant 0 : i32
    %c0_i32_0 = arith.constant 0 : i32
    %c0_i32_1 = arith.constant 0 : i32
    return %c0_i32, %c0_i32_0 : i32, i32
  }
  func.func @transform_2(%arg0: i32) -> (i32, i32) {
    %c0_i32 = arith.constant 0 : i32
    %c0_i32_0 = arith.constant 0 : i32
    %c0_i32_1 = arith.constant 0 : i32
    return %c0_i32, %c0_i32_0 : i32, i32
  }
  func.func @transform_3(%arg0: i32) -> (i32, i32) {
    %c0_i32 = arith.constant 0 : i32
    %c0_i32_0 = arith.constant 0 : i32
    %c0_i32_1 = arith.constant 0 : i32
    return %c0_i32, %c0_i32_0 : i32, i32
  }
  func.func @transform_4(%arg0: i32) -> (i32, i32) {
    %c0_i32 = arith.constant 0 : i32
    %c0_i32_0 = arith.constant 0 : i32
    %c0_i32_1 = arith.constant 0 : i32
    return %c0_i32, %c0_i32_0 : i32, i32
  }
  func.func @transform_5(%arg0: i32) -> (i32, i32) {
    %c0_i32 = arith.constant 0 : i32
    %c0_i32_0 = arith.constant 0 : i32
    return %arg0, %c0_i32 : i32, i32
  }
}

</mosaic_0001>

<llo_original>
// kernel: autoencoder_forward.5
$region0: #{autoencoder_forward.5}
  #allocation0 [shape = 'u32[]', space=smem, size = 0x4, offset = 0x4, fixed_abs, tag = 'smem constant byte address 0x4 - core index']
  #allocation1 [shape = 'u32[144,128]{1,0:T(1,128)}', space=vmem, size = 0x12000, scoped, tag = 'internal scratch']
  %s0 = inlined_call_operand.vmem [shape: bf16[768,20], index: 0, kind: input, shape index: {}]
  %s1 = inlined_call_operand.vmem [shape: bf16[20,32], index: 1, kind: input, shape index: {}]
  %s2 = inlined_call_operand.vmem [shape: f32[768,32], index: 2, kind: output, shape index: {0}]
  %s3 = inlined_call_operand.vmem [shape: f32[3,2,32], index: 3, kind: output, shape index: {1}]
  %4 = xla_tuple %s2, %s3
  %s5 = sld [smem:[#allocation0]]
  $region49: #{autoencoder_forward.5} parent=0
    _
  %s7 = ssub.s32 1, %s5
  %s8 = scalar_select 0, %s7, %s5
  loop: start=0, step=1, limit=5
  $region2: #{autoencoder_forward.5} parent=0 // loop_pre_header
    _
  $region3: #{autoencoder_forward.5} parent=0 // loop_header
    %s10 = sphi 0, %s14
    %p11 = scmp.ge.s32.totalorder %s10, 5
    %s20 = sphi 0, %s22
    %s23 = sphi 0, %s20
    %s24 = sphi 0, %s23
    %s40 = sphi 0, %s24
    %s44 = sphi 0, %s44
    %s46 = sphi 0, %s44
    %s47 = sphi 0, %s46
    %s61 = sphi 0, %s47
    %s67 = sphi 0, %s69
    %s70 = sphi 0, %s67
    %s71 = sphi 0, %s70
    %s87 = sphi 0, %s71
    %s93 = sphi 0, %s95
    %s96 = sphi 0, %s93
    %s97 = sphi 0, %s96
    %s113 = sphi 0, %s97
  $region4: #{autoencoder_forward.5} parent=0 // loop_header_branch
    %13 = sbr.rel (%p11) target = $region8
  $region5: #{autoencoder_forward.5} parent=0 // loop_body
    %s15 = ssub.s32 %s10, 1
    %s16 = ssub.s32 %s10, 2
    %s17 = sadd.s32 %s10, 1
    %s18 = ssub.s32 %s10, %s17
    %p19 = scmp.eq.s32.totalorder %s18, 0
    %s21 = sadd.s32 %s20, 1
    %s22 = scalar_select %p19, %s20, %s21
    %p25 = pneg %p19
    %p26 = scmp.eq.s32.totalorder %s10, 2
    %p27 = por %p25, %p26
    %p28 = scmp.ne.s32.totalorder %s20, %s23
    %p29 = scmp.eq.s32.totalorder %s10, 0
    %p30 = por %p28, %p29
    %p31 = scmp.ne.s32.totalorder %s20, %s23
    %p32 = scmp.eq.s32.totalorder %s15, 2
    %p33 = por %p31, %p32
    %p34 = scmp.ne.s32.totalorder %s23, %s24
    %p35 = scmp.eq.s32.totalorder %s15, 0
    %p36 = por %p34, %p35
    %p37 = scmp.ne.s32.totalorder %s23, %s24
    %p38 = scmp.eq.s32.totalorder %s16, 2
    %p39 = por %p37, %p38
    %p41 = scmp.ne.s32.totalorder %s24, %s40
    %p42 = scmp.eq.s32.totalorder %s16, 0
    %p43 = por %p41, %p42
    %s45 = sadd.s32 %s44, 1
    %p48 = scmp.eq.s32.totalorder %s10, 2
    %p49 = scmp.ne.s32.totalorder %s44, %s46
    %p50 = scmp.eq.s32.totalorder %s10, 0
    %p51 = por %p49, %p50
    %p52 = scmp.ne.s32.totalorder %s44, %s46
    %p53 = scmp.eq.s32.totalorder %s15, 2
    %p54 = por %p52, %p53
    %p55 = scmp.ne.s32.totalorder %s46, %s47
    %p56 = scmp.eq.s32.totalorder %s15, 0
    %p57 = por %p55, %p56
    %p58 = scmp.ne.s32.totalorder %s46, %s47
    %p59 = scmp.eq.s32.totalorder %s16, 2
    %p60 = por %p58, %p59
    %p62 = scmp.ne.s32.totalorder %s47, %s61
    %p63 = scmp.eq.s32.totalorder %s16, 0
    %p64 = por %p62, %p63
    %s65 = ssub.s32 %s10, %s17
    %p66 = scmp.eq.s32.totalorder %s65, 0
    %s68 = sadd.s32 %s67, 1
    %s69 = scalar_select %p66, %s67, %s68
    %p72 = pneg %p66
    %p73 = scmp.eq.s32.totalorder %s10, 2
    %p74 = por %p72, %p73
    %p75 = scmp.ne.s32.totalorder %s67, %s70
    %p76 = scmp.eq.s32.totalorder %s10, 0
    %p77 = por %p75, %p76
    %p78 = scmp.ne.s32.totalorder %s67, %s70
    %p79 = scmp.eq.s32.totalorder %s15, 2
    %p80 = por %p78, %p79
    %p81 = scmp.ne.s32.totalorder %s70, %s71
    %p82 = scmp.eq.s32.totalorder %s15, 0
    %p83 = por %p81, %p82
    %p84 = scmp.ne.s32.totalorder %s70, %s71
    %p85 = scmp.eq.s32.totalorder %s16, 2
    %p86 = por %p84, %p85
    %p88 = scmp.ne.s32.totalorder %s71, %s87
    %p89 = scmp.eq.s32.totalorder %s16, 0
    %p90 = por %p88, %p89
    %s91 = ssub.s32 %s10, %s17
    %p92 = scmp.eq.s32.totalorder %s91, 0
    %s94 = sadd.s32 %s93, 1
    %s95 = scalar_select %p92, %s93, %s94
    %p98 = pneg %p92
    %p99 = scmp.eq.s32.totalorder %s10, 2
    %p100 = por %p98, %p99
    %p101 = scmp.ne.s32.totalorder %s93, %s96
    %p102 = scmp.eq.s32.totalorder %s10, 0
    %p103 = por %p101, %p102
    %p104 = scmp.ne.s32.totalorder %s93, %s96
    %p105 = scmp.eq.s32.totalorder %s15, 2
    %p106 = por %p104, %p105
    %p107 = scmp.ne.s32.totalorder %s96, %s97
    %p108 = scmp.eq.s32.totalorder %s15, 0
    %p109 = por %p107, %p108
    %p110 = scmp.ne.s32.totalorder %s96, %s97
    %p111 = scmp.eq.s32.totalorder %s16, 2
    %p112 = por %p110, %p111
    %p114 = scmp.ne.s32.totalorder %s97, %s113
    %p115 = scmp.eq.s32.totalorder %s16, 0
    %p116 = por %p114, %p115
    %p117 = scmp.le.s32.totalorder 1, %s10
    %p118 = scmp.lt.s32.totalorder %s10, 4
    %p119 = pnand %p117, %p118
    %p120 = pneg %p119
    // Predicated region
    $region9: #{autoencoder_forward.5} parent=5 // pred_check
      _
    $region10: #{autoencoder_forward.5} parent=5 // pred_check_branch
      %122 = sbr.rel (%p119) target = $region12
    $region11: #{autoencoder_forward.5} parent=5 // pred_region
      %s123 = ssub.s32 %s10, 1
      // Predicated region
      $region13: #{autoencoder_forward.5} parent=11 // pred_check
        %p124 = pneg %p57
      $region14: #{autoencoder_forward.5} parent=11 // pred_check_branch
        %126 = sbr.rel (%p124) target = $region16
      $region15: #{autoencoder_forward.5} parent=11 // pred_region
        _
      $region16: #{autoencoder_forward.5} parent=11 // pred_fallthru
        _
    $region12: #{autoencoder_forward.5} parent=5 // pred_fallthru
      _
    %p127 = scmp.lt.s32.totalorder %s10, 3
    // Predicated region
    $region17: #{autoencoder_forward.5} parent=5 // pred_check
      %p128 = pneg %p127
    $region18: #{autoencoder_forward.5} parent=5 // pred_check_branch
      %130 = sbr.rel (%p128) target = $region20
    $region19: #{autoencoder_forward.5} parent=5 // pred_region
      // Predicated region
      $region21: #{autoencoder_forward.5} parent=19 // pred_check
        %p131 = pneg %p30
      $region22: #{autoencoder_forward.5} parent=19 // pred_check_branch
        %133 = sbr.rel (%p131) target = $region24
      $region23: #{autoencoder_forward.5} parent=19 // pred_region
        %s134 = smul.u32 32, %s10
        %p135 = scmp.lt.s32.totalorder %s134, 95
        %s136 = scalar_select %p135, %s134, 95
        %s137 = smul.addr %s136, 4
        %s138 = scalar_lea.vmem %s0, %s137
        %s139 = smul.u32 32, %s10
      $region24: #{autoencoder_forward.5} parent=19 // pred_fallthru
        _
    $region20: #{autoencoder_forward.5} parent=5 // pred_fallthru
      _
    %p140 = scmp.le.s32.totalorder 1, %s10
    %p141 = scmp.lt.s32.totalorder %s10, 4
    %p142 = pnand %p140, %p141
    %p143 = pneg %p142
    // Predicated region
    $region25: #{autoencoder_forward.5} parent=5 // pred_check
      _
    $region26: #{autoencoder_forward.5} parent=5 // pred_check_branch
      %145 = sbr.rel (%p142) target = $region28
    $region27: #{autoencoder_forward.5} parent=5 // pred_region
      %s146 = ssub.s32 %s10, 1
      %s147 = smul.u32 32, %s15
      %p148 = scmp.lt.s32.totalorder %s147, 95
      %s149 = scalar_select %p148, %s147, 95
      %s150 = smul.addr %s149, 4
      %s151 = scalar_lea.vmem %s0, %s150
      %p152 = pneg %p36
      %p153 = pneg %p33
      %p154 = pneg %p57
      %p155 = pneg %p54
      %p156 = pneg %p83
      %p157 = pneg %p80
      %s158 = smul.u32 32, %s15
      %p159 = scmp.lt.s32.totalorder %s158, 95
      %s160 = scalar_select %p159, %s158, 95
      %s161 = smul.addr %s160, 8
      %s162 = scalar_lea.vmem %s2, %s161
      %p163 = pneg %p109
      %p164 = pneg %p106
      %p165 = scmp.lt.s32.totalorder %s15, 2
      %s166 = scalar_select %p165, %s15, 2
      %s167 = smul.addr %s166, 2
      %s168 = scalar_lea.vmem %s3, %s167
      %s169 = smul.u32 32, %s15
      %p170 = scmp.lt.s32.totalorder %s169, 95
      %s171 = scalar_select %p170, %s169, 95
      %s172 = smul.addr %s171, 4
      %s173 = scalar_lea.vmem %s0, %s172
      %s174 = smul.u32 32, %s15
      %s175 = smul.u32 32, %s15
      %p176 = scmp.lt.s32.totalorder %s175, 95
      %s177 = scalar_select %p176, %s175, 95
      %s178 = smul.addr %s177, 8
      %s179 = scalar_lea.vmem %s2, %s178
      %s180 = smul.u32 32, %s15
      %p181 = scmp.lt.s32.totalorder %s15, 2
      %s182 = scalar_select %p181, %s15, 2
      %s183 = smul.addr %s182, 2
      %s184 = scalar_lea.vmem %s3, %s183
      %v186 = vld [vmem:[%s173] sm:$0xf]
      %v187 = vld [vmem:[%s173 + $0x4] sm:$0xf]
      %v188 = vld [vmem:[%s173 + $0x8] sm:$0xf]
      %v189 = vld [vmem:[%s173 + $0xc] sm:$0xf]
      %v190 = vld [vmem:[%s173 + $0x10] sm:$0xf]
      %v191 = vld [vmem:[%s173 + $0x14] sm:$0xf]
      %v192 = vld [vmem:[%s173 + $0x18] sm:$0xf]
      %v193 = vld [vmem:[%s173 + $0x1c] sm:$0xf]
      %v194 = vld [vmem:[%s173 + $0x20] sm:$0xf]
      %v195 = vld [vmem:[%s173 + $0x24] sm:$0xf]
      %v196 = vld [vmem:[%s173 + $0x28] sm:$0xf]
      %v197 = vld [vmem:[%s173 + $0x2c] sm:$0xf]
      %v198 = vld [vmem:[%s173 + $0x30] sm:$0xf]
      %v199 = vld [vmem:[%s173 + $0x34] sm:$0xf]
      %v200 = vld [vmem:[%s173 + $0x38] sm:$0xf]
      %v201 = vld [vmem:[%s173 + $0x3c] sm:$0xf]
      %v202 = vld [vmem:[%s173 + $0x40] sm:$0xf]
      %v203 = vld [vmem:[%s173 + $0x44] sm:$0xf]
      %v204 = vld [vmem:[%s173 + $0x48] sm:$0xf]
      %v205 = vld [vmem:[%s173 + $0x4c] sm:$0xf]
      %v206 = vld [vmem:[%s173 + $0x50] sm:$0xf]
      %v207 = vld [vmem:[%s173 + $0x54] sm:$0xf]
      %v208 = vld [vmem:[%s173 + $0x58] sm:$0xf]
      %v209 = vld [vmem:[%s173 + $0x5c] sm:$0xf]
      %v210 = vld [vmem:[%s173 + $0x60] sm:$0xf]
      %v211 = vld [vmem:[%s173 + $0x64] sm:$0xf]
      %v212 = vld [vmem:[%s173 + $0x68] sm:$0xf]
      %v213 = vld [vmem:[%s173 + $0x6c] sm:$0xf]
      %v214 = vld [vmem:[%s173 + $0x70] sm:$0xf]
      %v215 = vld [vmem:[%s173 + $0x74] sm:$0xf]
      %v216 = vld [vmem:[%s173 + $0x78] sm:$0xf]
      %v217 = vld [vmem:[%s173 + $0x7c] sm:$0xf]
      %v218 = vld [vmem:[%s1] sm:$0xf]
      %v219 = vld [vmem:[%s1 + $0x4] sm:$0xf]
      %v220 = vld [vmem:[%s1 + $0x8] sm:$0x3]
      %v253 = vunpack.c.l.b16 %v186
      %v254 = vunpack.c.l.b16 %v187
      %v255 = vunpack.c.l.b16 %v188
      %v256 = vunpack.c.l.b16 %v189
      %v257 = vunpack.c.l.b16 %v190
      %v258 = vunpack.c.l.b16 %v191
      %v259 = vunpack.c.l.b16 %v192
      %v260 = vunpack.c.l.b16 %v193
      %v261 = vunpack.c.l.b16 %v194
      %v262 = vunpack.c.l.b16 %v195
      %v263 = vunpack.c.l.b16 %v196
      %v264 = vunpack.c.l.b16 %v197
      %v265 = vunpack.c.l.b16 %v198
      %v266 = vunpack.c.l.b16 %v199
      %v267 = vunpack.c.l.b16 %v200
      %v268 = vunpack.c.l.b16 %v201
      %v269 = vunpack.c.l.b16 %v202
      %v270 = vunpack.c.l.b16 %v203
      %v271 = vunpack.c.l.b16 %v204
      %v272 = vunpack.c.l.b16 %v205
      %v273 = vunpack.c.l.b16 %v206
      %v274 = vunpack.c.l.b16 %v207
      %v275 = vunpack.c.l.b16 %v208
      %v276 = vunpack.c.l.b16 %v209
      %v277 = vunpack.c.l.b16 %v210
      %v278 = vunpack.c.l.b16 %v211
      %v279 = vunpack.c.l.b16 %v212
      %v280 = vunpack.c.l.b16 %v213
      %v281 = vunpack.c.l.b16 %v214
      %v282 = vunpack.c.l.b16 %v215
      %v283 = vunpack.c.l.b16 %v216
      %v284 = vunpack.c.l.b16 %v217
      %v285 = vpack.c.b16 %v254, %v253
      %v286 = vpack.c.b16 %v256, %v255
      %v287 = vpack.c.b16 %v258, %v257
      %v288 = vpack.c.b16 %v260, %v259
      %v289 = vpack.c.b16 %v262, %v261
      %v290 = vpack.c.b16 %v264, %v263
      %v291 = vpack.c.b16 %v266, %v265
      %v292 = vpack.c.b16 %v268, %v267
      %v293 = vpack.c.b16 %v270, %v269
      %v294 = vpack.c.b16 %v272, %v271
      %v295 = vpack.c.b16 %v274, %v273
      %v296 = vpack.c.b16 %v276, %v275
      %v297 = vpack.c.b16 %v278, %v277
      %v298 = vpack.c.b16 %v280, %v279
      %v299 = vpack.c.b16 %v282, %v281
      %v300 = vpack.c.b16 %v284, %v283
      %v304 = vunpack.c.l.b16 %v218
      %v305 = vunpack.c.l.b16 %v219
      %v306 = vunpack.c.l.b16 %v220
      %v307 = vpack.c.b16 %v305, %v304
      %v308 = vpack.c.b16 %v306, %v306
      %vm310 = vcmask 162816
      %v312 = vsel %vm310, %v285, 0
      %v315 = vsel %vm310, %v286, 0
      %v318 = vsel %vm310, %v287, 0
      %v321 = vsel %vm310, %v288, 0
      %v324 = vsel %vm310, %v289, 0
      %v327 = vsel %vm310, %v290, 0
      %v330 = vsel %vm310, %v291, 0
      %v333 = vsel %vm310, %v292, 0
      %v336 = vsel %vm310, %v293, 0
      %v339 = vsel %vm310, %v294, 0
      %v342 = vsel %vm310, %v295, 0
      %v345 = vsel %vm310, %v296, 0
      %v348 = vsel %vm310, %v297, 0
      %v351 = vsel %vm310, %v298, 0
      %v354 = vsel %vm310, %v299, 0
      %v357 = vsel %vm310, %v300, 0
      %vm359 = vcmask 1041408
      %v361 = vsel %vm359, %v308, 0
      %363 = vmatprep.subr.bf16.mxu0 0
      %364 = vmatpush1.bf16.msra.mxu0 %v307
      %365 = vmatprep.subr.bf16.mxu0 0
      %366 = vmatpush1.bf16.msra.mxu0 %v361
      %367 = vmatprep.subr.bf16.mxu0 0
      %368 = vmatpush1.bf16.msra.mxu0 0
      %369 = vmatprep.subr.bf16.mxu0 0
      %370 = vmatpush1.bf16.msra.mxu0 0
      %371 = vmatprep.subr.bf16.mxu0 0
      %372 = vmatpush1.bf16.msra.mxu0 0
      %373 = vmatprep.subr.bf16.mxu0 0
      %374 = vmatpush1.bf16.msra.mxu0 0
      %375 = vmatprep.subr.bf16.mxu0 0
      %376 = vmatpush1.bf16.msra.mxu0 0
      %377 = vmatprep.subr.bf16.mxu0 0
      %378 = vmatpush1.bf16.msra.mxu0 0
      %379 = vmatprep.subr.bf16.mxu0 0
      %380 = vmatpush1.bf16.msra.mxu0 0
      %381 = vmatprep.subr.bf16.mxu0 0
      %382 = vmatpush1.bf16.msra.mxu0 0
      %383 = vmatprep.subr.bf16.mxu0 0
      %384 = vmatpush1.bf16.msra.mxu0 0
      %385 = vmatprep.subr.bf16.mxu0 0
      %386 = vmatpush1.bf16.msra.mxu0 0
      %387 = vmatprep.subr.bf16.mxu0 0
      %388 = vmatpush1.bf16.msra.mxu0 0
      %389 = vmatprep.subr.bf16.mxu0 0
      %390 = vmatpush1.bf16.msra.mxu0 0
      %391 = vmatprep.subr.bf16.mxu0 0
      %392 = vmatpush1.bf16.msra.mxu0 0
      %393 = vmatprep.subr.bf16.mxu0 0
      %394 = vmatpush1.bf16.msra.mxu0 0
      %395 = vmatprep.mubr.bf16.mxu0 0
      %396 = vmatmul.mubr.bf16.gmra.mrb[0].mxu0 %v312
      %v397 = vpop.f32.mrb[0].mxu0
      %v398 = vadd.f32 0.0, %v397
      %v399 = vpop.f32.mrb[0].mxu0
      %v400 = vpop.f32.mrb[0].mxu0
      %v401 = vadd.f32 0.0, %v400
      %v402 = vpop.f32.mrb[0].mxu0
      %403 = vmatprep.mubr.bf16.mxu0 0
      %404 = vmatmul.mubr.bf16.gmra.mrb[0].mxu0 %v315
      %v405 = vpop.f32.mrb[0].mxu0
      %v406 = vadd.f32 0.0, %v405
      %v407 = vpop.f32.mrb[0].mxu0
      %v408 = vpop.f32.mrb[0].mxu0
      %v409 = vadd.f32 0.0, %v408
      %v410 = vpop.f32.mrb[0].mxu0
      %411 = vmatprep.mubr.bf16.mxu0 0
      %412 = vmatmul.mubr.bf16.gmra.mrb[0].mxu0 %v318
      %v413 = vpop.f32.mrb[0].mxu0
      %v414 = vadd.f32 0.0, %v413
      %v415 = vpop.f32.mrb[0].mxu0
      %v416 = vpop.f32.mrb[0].mxu0
      %v417 = vadd.f32 0.0, %v416
      %v418 = vpop.f32.mrb[0].mxu0
      %419 = vmatprep.mubr.bf16.mxu0 0
      %420 = vmatmul.mubr.bf16.gmra.mrb[0].mxu0 %v321
      %v421 = vpop.f32.mrb[0].mxu0
      %v422 = vadd.f32 0.0, %v421
      %v423 = vpop.f32.mrb[0].mxu0
      %v424 = vpop.f32.mrb[0].mxu0
      %v425 = vadd.f32 0.0, %v424
      %v426 = vpop.f32.mrb[0].mxu0
      %427 = vmatprep.mubr.bf16.mxu0 0
      %428 = vmatmul.mubr.bf16.gmra.mrb[0].mxu0 %v324
      %v429 = vpop.f32.mrb[0].mxu0
      %v430 = vadd.f32 0.0, %v429
      %v431 = vpop.f32.mrb[0].mxu0
      %v432 = vpop.f32.mrb[0].mxu0
      %v433 = vadd.f32 0.0, %v432
      %v434 = vpop.f32.mrb[0].mxu0
      %435 = vmatprep.mubr.bf16.mxu0 0
      %436 = vmatmul.mubr.bf16.gmra.mrb[0].mxu0 %v327
      %v437 = vpop.f32.mrb[0].mxu0
      %v438 = vadd.f32 0.0, %v437
      %v439 = vpop.f32.mrb[0].mxu0
      %v440 = vpop.f32.mrb[0].mxu0
      %v441 = vadd.f32 0.0, %v440
      %v442 = vpop.f32.mrb[0].mxu0
      %443 = vmatprep.mubr.bf16.mxu0 0
      %444 = vmatmul.mubr.bf16.gmra.mrb[0].mxu0 %v330
      %v445 = vpop.f32.mrb[0].mxu0
      %v446 = vadd.f32 0.0, %v445
      %v447 = vpop.f32.mrb[0].mxu0
      %v448 = vpop.f32.mrb[0].mxu0
      %v449 = vadd.f32 0.0, %v448
      %v450 = vpop.f32.mrb[0].mxu0
      %451 = vmatprep.mubr.bf16.mxu0 0
      %452 = vmatmul.mubr.bf16.gmra.mrb[0].mxu0 %v333
      %v453 = vpop.f32.mrb[0].mxu0
      %v454 = vadd.f32 0.0, %v453
      %v455 = vpop.f32.mrb[0].mxu0
      %v456 = vpop.f32.mrb[0].mxu0
      %v457 = vadd.f32 0.0, %v456
      %v458 = vpop.f32.mrb[0].mxu0
      %459 = vmatprep.mubr.bf16.mxu0 0
      %460 = vmatmul.mubr.bf16.gmra.mrb[0].mxu0 %v336
      %v461 = vpop.f32.mrb[0].mxu0
      %v462 = vadd.f32 0.0, %v461
      %v463 = vpop.f32.mrb[0].mxu0
      %v464 = vpop.f32.mrb[0].mxu0
      %v465 = vadd.f32 0.0, %v464
      %v466 = vpop.f32.mrb[0].mxu0
      %467 = vmatprep.mubr.bf16.mxu0 0
      %468 = vmatmul.mubr.bf16.gmra.mrb[0].mxu0 %v339
      %v469 = vpop.f32.mrb[0].mxu0
      %v470 = vadd.f32 0.0, %v469
      %v471 = vpop.f32.mrb[0].mxu0
      %v472 = vpop.f32.mrb[0].mxu0
      %v473 = vadd.f32 0.0, %v472
      %v474 = vpop.f32.mrb[0].mxu0
      %475 = vmatprep.mubr.bf16.mxu0 0
      %476 = vmatmul.mubr.bf16.gmra.mrb[0].mxu0 %v342
      %v477 = vpop.f32.mrb[0].mxu0
      %v478 = vadd.f32 0.0, %v477
      %v479 = vpop.f32.mrb[0].mxu0
      %v480 = vpop.f32.mrb[0].mxu0
      %v481 = vadd.f32 0.0, %v480
      %v482 = vpop.f32.mrb[0].mxu0
      %483 = vmatprep.mubr.bf16.mxu0 0
      %484 = vmatmul.mubr.bf16.gmra.mrb[0].mxu0 %v345
      %v485 = vpop.f32.mrb[0].mxu0
      %v486 = vadd.f32 0.0, %v485
      %v487 = vpop.f32.mrb[0].mxu0
      %v488 = vpop.f32.mrb[0].mxu0
      %v489 = vadd.f32 0.0, %v488
      %v490 = vpop.f32.mrb[0].mxu0
      %491 = vmatprep.mubr.bf16.mxu0 0
      %492 = vmatmul.mubr.bf16.gmra.mrb[0].mxu0 %v348
      %v493 = vpop.f32.mrb[0].mxu0
      %v494 = vadd.f32 0.0, %v493
      %v495 = vpop.f32.mrb[0].mxu0
      %v496 = vpop.f32.mrb[0].mxu0
      %v497 = vadd.f32 0.0, %v496
      %v498 = vpop.f32.mrb[0].mxu0
      %499 = vmatprep.mubr.bf16.mxu0 0
      %500 = vmatmul.mubr.bf16.gmra.mrb[0].mxu0 %v351
      %v501 = vpop.f32.mrb[0].mxu0
      %v502 = vadd.f32 0.0, %v501
      %v503 = vpop.f32.mrb[0].mxu0
      %v504 = vpop.f32.mrb[0].mxu0
      %v505 = vadd.f32 0.0, %v504
      %v506 = vpop.f32.mrb[0].mxu0
      %507 = vmatprep.mubr.bf16.mxu0 0
      %508 = vmatmul.mubr.bf16.gmra.mrb[0].mxu0 %v354
      %v509 = vpop.f32.mrb[0].mxu0
      %v510 = vadd.f32 0.0, %v509
      %v511 = vpop.f32.mrb[0].mxu0
      %v512 = vpop.f32.mrb[0].mxu0
      %v513 = vadd.f32 0.0, %v512
      %v514 = vpop.f32.mrb[0].mxu0
      %515 = vmatprep.mubr.bf16.mxu0 0
      %516 = vmatmul.mubr.bf16.gmra.mrb[0].mxu0 %v357
      %v517 = vpop.f32.mrb[0].mxu0
      %v518 = vadd.f32 0.0, %v517
      %v519 = vpop.f32.mrb[0].mxu0
      %v520 = vpop.f32.mrb[0].mxu0
      %v521 = vadd.f32 0.0, %v520
      %v522 = vpop.f32.mrb[0].mxu0
      %523 = vdwg.mxu0
      %vm524 = vcmask 261120
      %525 = vst.msk [vmem:[%s179] sm:$0xff] %vm524, %v398
      %526 = vst.msk [vmem:[%s179 + $0x8] sm:$0xff] %vm524, %v401
      %527 = vst.msk [vmem:[%s179 + $0x10] sm:$0xff] %vm524, %v406
      %528 = vst.msk [vmem:[%s179 + $0x18] sm:$0xff] %vm524, %v409
      %529 = vst.msk [vmem:[%s179 + $0x20] sm:$0xff] %vm524, %v414
      %530 = vst.msk [vmem:[%s179 + $0x28] sm:$0xff] %vm524, %v417
      %531 = vst.msk [vmem:[%s179 + $0x30] sm:$0xff] %vm524, %v422
      %532 = vst.msk [vmem:[%s179 + $0x38] sm:$0xff] %vm524, %v425
      %533 = vst.msk [vmem:[%s179 + $0x40] sm:$0xff] %vm524, %v430
      %534 = vst.msk [vmem:[%s179 + $0x48] sm:$0xff] %vm524, %v433
      %535 = vst.msk [vmem:[%s179 + $0x50] sm:$0xff] %vm524, %v438
      %536 = vst.msk [vmem:[%s179 + $0x58] sm:$0xff] %vm524, %v441
      %537 = vst.msk [vmem:[%s179 + $0x60] sm:$0xff] %vm524, %v446
      %538 = vst.msk [vmem:[%s179 + $0x68] sm:$0xff] %vm524, %v449
      %539 = vst.msk [vmem:[%s179 + $0x70] sm:$0xff] %vm524, %v454
      %540 = vst.msk [vmem:[%s179 + $0x78] sm:$0xff] %vm524, %v457
      %541 = vst.msk [vmem:[%s179 + $0x80] sm:$0xff] %vm524, %v462
      %542 = vst.msk [vmem:[%s179 + $0x88] sm:$0xff] %vm524, %v465
      %543 = vst.msk [vmem:[%s179 + $0x90] sm:$0xff] %vm524, %v470
      %544 = vst.msk [vmem:[%s179 + $0x98] sm:$0xff] %vm524, %v473
      %545 = vst.msk [vmem:[%s179 + $0xa0] sm:$0xff] %vm524, %v478
      %546 = vst.msk [vmem:[%s179 + $0xa8] sm:$0xff] %vm524, %v481
      %547 = vst.msk [vmem:[%s179 + $0xb0] sm:$0xff] %vm524, %v486
      %548 = vst.msk [vmem:[%s179 + $0xb8] sm:$0xff] %vm524, %v489
      %549 = vst.msk [vmem:[%s179 + $0xc0] sm:$0xff] %vm524, %v494
      %550 = vst.msk [vmem:[%s179 + $0xc8] sm:$0xff] %vm524, %v497
      %551 = vst.msk [vmem:[%s179 + $0xd0] sm:$0xff] %vm524, %v502
      %552 = vst.msk [vmem:[%s179 + $0xd8] sm:$0xff] %vm524, %v505
      %553 = vst.msk [vmem:[%s179 + $0xe0] sm:$0xff] %vm524, %v510
      %554 = vst.msk [vmem:[%s179 + $0xe8] sm:$0xff] %vm524, %v513
      %555 = vst.msk [vmem:[%s179 + $0xf0] sm:$0xff] %vm524, %v518
      %556 = vst.msk [vmem:[%s179 + $0xf8] sm:$0xff] %vm524, %v521
      %v557 = vsel %vm524, %v398, 0.0
      %v558 = vsel %vm524, %v401, 0.0
      %v559 = vadd.f32 %v557, %v558
      %v560 = vsel %vm524, %v406, 0.0
      %v561 = vadd.f32 %v559, %v560
      %v562 = vsel %vm524, %v409, 0.0
      %v563 = vadd.f32 %v561, %v562
      %v564 = vsel %vm524, %v414, 0.0
      %v565 = vadd.f32 %v563, %v564
      %v566 = vsel %vm524, %v417, 0.0
      %v567 = vadd.f32 %v565, %v566
      %v568 = vsel %vm524, %v422, 0.0
      %v569 = vadd.f32 %v567, %v568
      %v570 = vsel %vm524, %v425, 0.0
      %v571 = vadd.f32 %v569, %v570
      %v572 = vsel %vm524, %v430, 0.0
      %v573 = vadd.f32 %v571, %v572
      %v574 = vsel %vm524, %v433, 0.0
      %v575 = vadd.f32 %v573, %v574
      %v576 = vsel %vm524, %v438, 0.0
      %v577 = vadd.f32 %v575, %v576
      %v578 = vsel %vm524, %v441, 0.0
      %v579 = vadd.f32 %v577, %v578
      %v580 = vsel %vm524, %v446, 0.0
      %v581 = vadd.f32 %v579, %v580
      %v582 = vsel %vm524, %v449, 0.0
      %v583 = vadd.f32 %v581, %v582
      %v584 = vsel %vm524, %v454, 0.0
      %v585 = vadd.f32 %v583, %v584
      %v586 = vsel %vm524, %v457, 0.0
      %v587 = vadd.f32 %v585, %v586
      %v588 = vsel %vm524, %v462, 0.0
      %v589 = vadd.f32 %v587, %v588
      %v590 = vsel %vm524, %v465, 0.0
      %v591 = vadd.f32 %v589, %v590
      %v592 = vsel %vm524, %v470, 0.0
      %v593 = vadd.f32 %v591, %v592
      %v594 = vsel %vm524, %v473, 0.0
      %v595 = vadd.f32 %v593, %v594
      %v596 = vsel %vm524, %v478, 0.0
      %v597 = vadd.f32 %v595, %v596
      %v598 = vsel %vm524, %v481, 0.0
      %v599 = vadd.f32 %v597, %v598
      %v600 = vsel %vm524, %v486, 0.0
      %v601 = vadd.f32 %v599, %v600
      %v602 = vsel %vm524, %v489, 0.0
      %v603 = vadd.f32 %v601, %v602
      %v604 = vsel %vm524, %v494, 0.0
      %v605 = vadd.f32 %v603, %v604
      %v606 = vsel %vm524, %v497, 0.0
      %v607 = vadd.f32 %v605, %v606
      %v608 = vsel %vm524, %v502, 0.0
      %v609 = vadd.f32 %v607, %v608
      %v610 = vsel %vm524, %v505, 0.0
      %v611 = vadd.f32 %v609, %v610
      %v612 = vsel %vm524, %v510, 0.0
      %v613 = vadd.f32 %v611, %v612
      %v614 = vsel %vm524, %v513, 0.0
      %v615 = vadd.f32 %v613, %v614
      %v616 = vsel %vm524, %v518, 0.0
      %v617 = vadd.f32 %v615, %v616
      %v618 = vsel %vm524, %v521, 0.0
      %v619 = vadd.f32 %v617, %v618
      %v620 = vrot.slane %v619, 4
      %v621 = vadd.f32 %v619, %v620
      %v622 = vrot.slane %v621, 2
      %v623 = vadd.f32 %v621, %v622
      %v624 = vrot.slane %v623, 1
      %v625 = vadd.f32 %v623, %v624
      %vm626 = vcmask 253952
      %627 = vst.msk [vmem:[%s184] sm:$0x1] %vm626, %v625
      %v628 = vmul.f32 %v398, %v398
      %v629 = vmul.f32 %v401, %v401
      %v630 = vmul.f32 %v406, %v406
      %v631 = vmul.f32 %v409, %v409
      %v632 = vmul.f32 %v414, %v414
      %v633 = vmul.f32 %v417, %v417
      %v634 = vmul.f32 %v422, %v422
      %v635 = vmul.f32 %v425, %v425
      %v636 = vmul.f32 %v430, %v430
      %v637 = vmul.f32 %v433, %v433
      %v638 = vmul.f32 %v438, %v438
      %v639 = vmul.f32 %v441, %v441
      %v640 = vmul.f32 %v446, %v446
      %v641 = vmul.f32 %v449, %v449
      %v642 = vmul.f32 %v454, %v454
      %v643 = vmul.f32 %v457, %v457
      %v644 = vmul.f32 %v462, %v462
      %v645 = vmul.f32 %v465, %v465
      %v646 = vmul.f32 %v470, %v470
      %v647 = vmul.f32 %v473, %v473
      %v648 = vmul.f32 %v478, %v478
      %v649 = vmul.f32 %v481, %v481
      %v650 = vmul.f32 %v486, %v486
      %v651 = vmul.f32 %v489, %v489
      %v652 = vmul.f32 %v494, %v494
      %v653 = vmul.f32 %v497, %v497
      %v654 = vmul.f32 %v502, %v502
      %v655 = vmul.f32 %v505, %v505
      %v656 = vmul.f32 %v510, %v510
      %v657 = vmul.f32 %v513, %v513
      %v658 = vmul.f32 %v518, %v518
      %v659 = vmul.f32 %v521, %v521
      %v660 = vsel %vm524, %v628, 0.0
      %v661 = vsel %vm524, %v629, 0.0
      %v662 = vadd.f32 %v660, %v661
      %v663 = vsel %vm524, %v630, 0.0
      %v664 = vadd.f32 %v662, %v663
      %v665 = vsel %vm524, %v631, 0.0
      %v666 = vadd.f32 %v664, %v665
      %v667 = vsel %vm524, %v632, 0.0
      %v668 = vadd.f32 %v666, %v667
      %v669 = vsel %vm524, %v633, 0.0
      %v670 = vadd.f32 %v668, %v669
      %v671 = vsel %vm524, %v634, 0.0
      %v672 = vadd.f32 %v670, %v671
      %v673 = vsel %vm524, %v635, 0.0
      %v674 = vadd.f32 %v672, %v673
      %v675 = vsel %vm524, %v636, 0.0
      %v676 = vadd.f32 %v674, %v675
      %v677 = vsel %vm524, %v637, 0.0
      %v678 = vadd.f32 %v676, %v677
      %v679 = vsel %vm524, %v638, 0.0
      %v680 = vadd.f32 %v678, %v679
      %v681 = vsel %vm524, %v639, 0.0
      %v682 = vadd.f32 %v680, %v681
      %v683 = vsel %vm524, %v640, 0.0
      %v684 = vadd.f32 %v682, %v683
      %v685 = vsel %vm524, %v641, 0.0
      %v686 = vadd.f32 %v684, %v685
      %v687 = vsel %vm524, %v642, 0.0
      %v688 = vadd.f32 %v686, %v687
      %v689 = vsel %vm524, %v643, 0.0
      %v690 = vadd.f32 %v688, %v689
      %v691 = vsel %vm524, %v644, 0.0
      %v692 = vadd.f32 %v690, %v691
      %v693 = vsel %vm524, %v645, 0.0
      %v694 = vadd.f32 %v692, %v693
      %v695 = vsel %vm524, %v646, 0.0
      %v696 = vadd.f32 %v694, %v695
      %v697 = vsel %vm524, %v647, 0.0
      %v698 = vadd.f32 %v696, %v697
      %v699 = vsel %vm524, %v648, 0.0
      %v700 = vadd.f32 %v698, %v699
      %v701 = vsel %vm524, %v649, 0.0
      %v702 = vadd.f32 %v700, %v701
      %v703 = vsel %vm524, %v650, 0.0
      %v704 = vadd.f32 %v702, %v703
      %v705 = vsel %vm524, %v651, 0.0
      %v706 = vadd.f32 %v704, %v705
      %v707 = vsel %vm524, %v652, 0.0
      %v708 = vadd.f32 %v706, %v707
      %v709 = vsel %vm524, %v653, 0.0
      %v710 = vadd.f32 %v708, %v709
      %v711 = vsel %vm524, %v654, 0.0
      %v712 = vadd.f32 %v710, %v711
      %v713 = vsel %vm524, %v655, 0.0
      %v714 = vadd.f32 %v712, %v713
      %v715 = vsel %vm524, %v656, 0.0
      %v716 = vadd.f32 %v714, %v715
      %v717 = vsel %vm524, %v657, 0.0
      %v718 = vadd.f32 %v716, %v717
      %v719 = vsel %vm524, %v658, 0.0
      %v720 = vadd.f32 %v718, %v719
      %v721 = vsel %vm524, %v659, 0.0
      %v722 = vadd.f32 %v720, %v721
      %v723 = vrot.slane %v722, 4
      %v724 = vadd.f32 %v722, %v723
      %v725 = vrot.slane %v724, 2
      %v726 = vadd.f32 %v724, %v725
      %v727 = vrot.slane %v726, 1
      %v728 = vadd.f32 %v726, %v727
      %729 = vst.msk [vmem:[%s184 + $0x1] sm:$0x1] %vm626, %v728
      %s730 = smul.u32 32, %s15
      %p731 = scmp.lt.s32.totalorder %s730, 95
      %s732 = scalar_select %p731, %s730, 95
      %s733 = smul.addr %s732, 8
      %s734 = scalar_lea.vmem %s2, %s733
      %p735 = scmp.lt.s32.totalorder %s15, 2
      %s736 = scalar_select %p735, %s15, 2
      %s737 = smul.addr %s736, 2
      %s738 = scalar_lea.vmem %s3, %s737
      // Predicated region
      $region29: #{autoencoder_forward.5} parent=27 // pred_check
        %p739 = pneg %p80
      $region30: #{autoencoder_forward.5} parent=27 // pred_check_branch
        %741 = sbr.rel (%p739) target = $region32
      $region31: #{autoencoder_forward.5} parent=27 // pred_region
        %s742 = smul.u32 32, %s15
      $region32: #{autoencoder_forward.5} parent=27 // pred_fallthru
        _
      // Predicated region
      $region33: #{autoencoder_forward.5} parent=27 // pred_check
        %p743 = pneg %p106
      $region34: #{autoencoder_forward.5} parent=27 // pred_check_branch
        %745 = sbr.rel (%p743) target = $region36
      $region35: #{autoencoder_forward.5} parent=27 // pred_region
        _
      $region36: #{autoencoder_forward.5} parent=27 // pred_fallthru
        _
    $region28: #{autoencoder_forward.5} parent=5 // pred_fallthru
      _
    %p746 = scmp.le.s32.totalorder 2, %s10
    // Predicated region
    $region37: #{autoencoder_forward.5} parent=5 // pred_check
      %p747 = pneg %p746
    $region38: #{autoencoder_forward.5} parent=5 // pred_check_branch
      %749 = sbr.rel (%p747) target = $region40
    $region39: #{autoencoder_forward.5} parent=5 // pred_region
      %s750 = ssub.s32 %s10, 2
      // Predicated region
      $region41: #{autoencoder_forward.5} parent=39 // pred_check
        %p751 = pneg %p86
      $region42: #{autoencoder_forward.5} parent=39 // pred_check_branch
        %753 = sbr.rel (%p751) target = $region44
      $region43: #{autoencoder_forward.5} parent=39 // pred_region
        %s754 = smul.u32 32, %s16
        %p755 = scmp.lt.s32.totalorder %s754, 95
        %s756 = scalar_select %p755, %s754, 95
        %s757 = smul.addr %s756, 8
        %s758 = scalar_lea.vmem %s2, %s757
      $region44: #{autoencoder_forward.5} parent=39 // pred_fallthru
        _
      // Predicated region
      $region45: #{autoencoder_forward.5} parent=39 // pred_check
        %p759 = pneg %p112
      $region46: #{autoencoder_forward.5} parent=39 // pred_check_branch
        %761 = sbr.rel (%p759) target = $region48
      $region47: #{autoencoder_forward.5} parent=39 // pred_region
        %p762 = scmp.lt.s32.totalorder %s16, 2
        %s763 = scalar_select %p762, %s16, 2
        %s764 = smul.addr %s763, 2
        %s765 = scalar_lea.vmem %s3, %s764
      $region48: #{autoencoder_forward.5} parent=39 // pred_fallthru
        _
    $region40: #{autoencoder_forward.5} parent=5 // pred_fallthru
      _
  $region6: #{autoencoder_forward.5} parent=0 // loop_footer
    %s14 = sadd.s32 1, %s10
  $region7: #{autoencoder_forward.5} parent=0 // loop_footer_branch
    %9 = sbr.rel target = $region3
  $region8: #{autoencoder_forward.5} parent=0 // loop_exit
    _

// kernel: autoencoder_forward.6
$region0: #{autoencoder_forward.6}
  #allocation0 [shape = 'u32[]', space=smem, size = 0x4, offset = 0x4, fixed_abs, tag = 'smem constant byte address 0x4 - core index']
  #allocation1 [shape = 'u32[144,128]{1,0:T(1,128)}', space=vmem, size = 0x12000, scoped, tag = 'internal scratch']
  %s0 = inlined_call_operand.vmem [shape: f32[768,32], index: 0, kind: input, shape index: {}]
  %s1 = inlined_call_operand.vmem [shape: f32[1,32], index: 1, kind: input, shape index: {}]
  %s2 = inlined_call_operand.vmem [shape: f32[1,32], index: 2, kind: input, shape index: {}]
  %s3 = inlined_call_operand.vmem [shape: bf16[32,64], index: 3, kind: input, shape index: {}]
  %s4 = inlined_call_operand.vmem [shape: f32[768,64], index: 4, kind: output, shape index: {0}]
  %s5 = inlined_call_operand.vmem [shape: f32[3,2,64], index: 5, kind: output, shape index: {1}]
  %6 = xla_tuple %s4, %s5
  %s7 = sld [smem:[#allocation0]]
  $region57: #{autoencoder_forward.6} parent=0
    _
  %s9 = ssub.s32 1, %s7
  %s10 = scalar_select 0, %s9, %s7
  loop: start=0, step=1, limit=5
  $region2: #{autoencoder_forward.6} parent=0 // loop_pre_header
    _
  $region3: #{autoencoder_forward.6} parent=0 // loop_header
    %s12 = sphi 0, %s16
    %p13 = scmp.ge.s32.totalorder %s12, 5
    %s22 = sphi 0, %s24
    %s25 = sphi 0, %s22
    %s26 = sphi 0, %s25
    %s42 = sphi 0, %s26
    %s46 = sphi 0, %s46
    %s48 = sphi 0, %s46
    %s49 = sphi 0, %s48
    %s63 = sphi 0, %s49
    %s67 = sphi 0, %s67
    %s69 = sphi 0, %s67
    %s70 = sphi 0, %s69
    %s84 = sphi 0, %s70
    %s88 = sphi 0, %s88
    %s90 = sphi 0, %s88
    %s91 = sphi 0, %s90
    %s105 = sphi 0, %s91
    %s111 = sphi 0, %s113
    %s114 = sphi 0, %s111
    %s115 = sphi 0, %s114
    %s131 = sphi 0, %s115
    %s137 = sphi 0, %s139
    %s140 = sphi 0, %s137
    %s141 = sphi 0, %s140
    %s157 = sphi 0, %s141
  $region4: #{autoencoder_forward.6} parent=0 // loop_header_branch
    %15 = sbr.rel (%p13) target = $region8
  $region5: #{autoencoder_forward.6} parent=0 // loop_body
    %s17 = ssub.s32 %s12, 1
    %s18 = ssub.s32 %s12, 2
    %s19 = sadd.s32 %s12, 1
    %s20 = ssub.s32 %s12, %s19
    %p21 = scmp.eq.s32.totalorder %s20, 0
    %s23 = sadd.s32 %s22, 1
    %s24 = scalar_select %p21, %s22, %s23
    %p27 = pneg %p21
    %p28 = scmp.eq.s32.totalorder %s12, 2
    %p29 = por %p27, %p28
    %p30 = scmp.ne.s32.totalorder %s22, %s25
    %p31 = scmp.eq.s32.totalorder %s12, 0
    %p32 = por %p30, %p31
    %p33 = scmp.ne.s32.totalorder %s22, %s25
    %p34 = scmp.eq.s32.totalorder %s17, 2
    %p35 = por %p33, %p34
    %p36 = scmp.ne.s32.totalorder %s25, %s26
    %p37 = scmp.eq.s32.totalorder %s17, 0
    %p38 = por %p36, %p37
    %p39 = scmp.ne.s32.totalorder %s25, %s26
    %p40 = scmp.eq.s32.totalorder %s18, 2
    %p41 = por %p39, %p40
    %p43 = scmp.ne.s32.totalorder %s26, %s42
    %p44 = scmp.eq.s32.totalorder %s18, 0
    %p45 = por %p43, %p44
    %s47 = sadd.s32 %s46, 1
    %p50 = scmp.eq.s32.totalorder %s12, 2
    %p51 = scmp.ne.s32.totalorder %s46, %s48
    %p52 = scmp.eq.s32.totalorder %s12, 0
    %p53 = por %p51, %p52
    %p54 = scmp.ne.s32.totalorder %s46, %s48
    %p55 = scmp.eq.s32.totalorder %s17, 2
    %p56 = por %p54, %p55
    %p57 = scmp.ne.s32.totalorder %s48, %s49
    %p58 = scmp.eq.s32.totalorder %s17, 0
    %p59 = por %p57, %p58
    %p60 = scmp.ne.s32.totalorder %s48, %s49
    %p61 = scmp.eq.s32.totalorder %s18, 2
    %p62 = por %p60, %p61
    %p64 = scmp.ne.s32.totalorder %s49, %s63
    %p65 = scmp.eq.s32.totalorder %s18, 0
    %p66 = por %p64, %p65
    %s68 = sadd.s32 %s67, 1
    %p71 = scmp.eq.s32.totalorder %s12, 2
    %p72 = scmp.ne.s32.totalorder %s67, %s69
    %p73 = scmp.eq.s32.totalorder %s12, 0
    %p74 = por %p72, %p73
    %p75 = scmp.ne.s32.totalorder %s67, %s69
    %p76 = scmp.eq.s32.totalorder %s17, 2
    %p77 = por %p75, %p76
    %p78 = scmp.ne.s32.totalorder %s69, %s70
    %p79 = scmp.eq.s32.totalorder %s17, 0
    %p80 = por %p78, %p79
    %p81 = scmp.ne.s32.totalorder %s69, %s70
    %p82 = scmp.eq.s32.totalorder %s18, 2
    %p83 = por %p81, %p82
    %p85 = scmp.ne.s32.totalorder %s70, %s84
    %p86 = scmp.eq.s32.totalorder %s18, 0
    %p87 = por %p85, %p86
    %s89 = sadd.s32 %s88, 1
    %p92 = scmp.eq.s32.totalorder %s12, 2
    %p93 = scmp.ne.s32.totalorder %s88, %s90
    %p94 = scmp.eq.s32.totalorder %s12, 0
    %p95 = por %p93, %p94
    %p96 = scmp.ne.s32.totalorder %s88, %s90
    %p97 = scmp.eq.s32.totalorder %s17, 2
    %p98 = por %p96, %p97
    %p99 = scmp.ne.s32.totalorder %s90, %s91
    %p100 = scmp.eq.s32.totalorder %s17, 0
    %p101 = por %p99, %p100
    %p102 = scmp.ne.s32.totalorder %s90, %s91
    %p103 = scmp.eq.s32.totalorder %s18, 2
    %p104 = por %p102, %p103
    %p106 = scmp.ne.s32.totalorder %s91, %s105
    %p107 = scmp.eq.s32.totalorder %s18, 0
    %p108 = por %p106, %p107
    %s109 = ssub.s32 %s12, %s19
    %p110 = scmp.eq.s32.totalorder %s109, 0
    %s112 = sadd.s32 %s111, 1
    %s113 = scalar_select %p110, %s111, %s112
    %p116 = pneg %p110
    %p117 = scmp.eq.s32.totalorder %s12, 2
    %p118 = por %p116, %p117
    %p119 = scmp.ne.s32.totalorder %s111, %s114
    %p120 = scmp.eq.s32.totalorder %s12, 0
    %p121 = por %p119, %p120
    %p122 = scmp.ne.s32.totalorder %s111, %s114
    %p123 = scmp.eq.s32.totalorder %s17, 2
    %p124 = por %p122, %p123
    %p125 = scmp.ne.s32.totalorder %s114, %s115
    %p126 = scmp.eq.s32.totalorder %s17, 0
    %p127 = por %p125, %p126
    %p128 = scmp.ne.s32.totalorder %s114, %s115
    %p129 = scmp.eq.s32.totalorder %s18, 2
    %p130 = por %p128, %p129
    %p132 = scmp.ne.s32.totalorder %s115, %s131
    %p133 = scmp.eq.s32.totalorder %s18, 0
    %p134 = por %p132, %p133
    %s135 = ssub.s32 %s12, %s19
    %p136 = scmp.eq.s32.totalorder %s135, 0
    %s138 = sadd.s32 %s137, 1
    %s139 = scalar_select %p136, %s137, %s138
    %p142 = pneg %p136
    %p143 = scmp.eq.s32.totalorder %s12, 2
    %p144 = por %p142, %p143
    %p145 = scmp.ne.s32.totalorder %s137, %s140
    %p146 = scmp.eq.s32.totalorder %s12, 0
    %p147 = por %p145, %p146
    %p148 = scmp.ne.s32.totalorder %s137, %s140
    %p149 = scmp.eq.s32.totalorder %s17, 2
    %p150 = por %p148, %p149
    %p151 = scmp.ne.s32.totalorder %s140, %s141
    %p152 = scmp.eq.s32.totalorder %s17, 0
    %p153 = por %p151, %p152
    %p154 = scmp.ne.s32.totalorder %s140, %s141
    %p155 = scmp.eq.s32.totalorder %s18, 2
    %p156 = por %p154, %p155
    %p158 = scmp.ne.s32.totalorder %s141, %s157
    %p159 = scmp.eq.s32.totalorder %s18, 0
    %p160 = por %p158, %p159
    %p161 = scmp.le.s32.totalorder 1, %s12
    %p162 = scmp.lt.s32.totalorder %s12, 4
    %p163 = pnand %p161, %p162
    %p164 = pneg %p163
    // Predicated region
    $region9: #{autoencoder_forward.6} parent=5 // pred_check
      _
    $region10: #{autoencoder_forward.6} parent=5 // pred_check_branch
      %166 = sbr.rel (%p163) target = $region12
    $region11: #{autoencoder_forward.6} parent=5 // pred_region
      %s167 = ssub.s32 %s12, 1
      // Predicated region
      $region13: #{autoencoder_forward.6} parent=11 // pred_check
        %p168 = pneg %p59
      $region14: #{autoencoder_forward.6} parent=11 // pred_check_branch
        %170 = sbr.rel (%p168) target = $region16
      $region15: #{autoencoder_forward.6} parent=11 // pred_region
        _
      $region16: #{autoencoder_forward.6} parent=11 // pred_fallthru
        _
      // Predicated region
      $region17: #{autoencoder_forward.6} parent=11 // pred_check
        %p171 = pneg %p80
      $region18: #{autoencoder_forward.6} parent=11 // pred_check_branch
        %173 = sbr.rel (%p171) target = $region20
      $region19: #{autoencoder_forward.6} parent=11 // pred_region
        _
      $region20: #{autoencoder_forward.6} parent=11 // pred_fallthru
        _
      // Predicated region
      $region21: #{autoencoder_forward.6} parent=11 // pred_check
        %p174 = pneg %p101
      $region22: #{autoencoder_forward.6} parent=11 // pred_check_branch
        %176 = sbr.rel (%p174) target = $region24
      $region23: #{autoencoder_forward.6} parent=11 // pred_region
        _
      $region24: #{autoencoder_forward.6} parent=11 // pred_fallthru
        _
    $region12: #{autoencoder_forward.6} parent=5 // pred_fallthru
      _
    %p177 = scmp.lt.s32.totalorder %s12, 3
    // Predicated region
    $region25: #{autoencoder_forward.6} parent=5 // pred_check
      %p178 = pneg %p177
    $region26: #{autoencoder_forward.6} parent=5 // pred_check_branch
      %180 = sbr.rel (%p178) target = $region28
    $region27: #{autoencoder_forward.6} parent=5 // pred_region
      // Predicated region
      $region29: #{autoencoder_forward.6} parent=27 // pred_check
        %p181 = pneg %p32
      $region30: #{autoencoder_forward.6} parent=27 // pred_check_branch
        %183 = sbr.rel (%p181) target = $region32
      $region31: #{autoencoder_forward.6} parent=27 // pred_region
        %s184 = smul.u32 32, %s12
        %p185 = scmp.lt.s32.totalorder %s184, 95
        %s186 = scalar_select %p185, %s184, 95
        %s187 = smul.addr %s186, 8
        %s188 = scalar_lea.vmem %s0, %s187
        %s189 = smul.u32 32, %s12
      $region32: #{autoencoder_forward.6} parent=27 // pred_fallthru
        _
    $region28: #{autoencoder_forward.6} parent=5 // pred_fallthru
      _
    %p190 = scmp.le.s32.totalorder 1, %s12
    %p191 = scmp.lt.s32.totalorder %s12, 4
    %p192 = pnand %p190, %p191
    %p193 = pneg %p192
    // Predicated region
    $region33: #{autoencoder_forward.6} parent=5 // pred_check
      _
    $region34: #{autoencoder_forward.6} parent=5 // pred_check_branch
      %195 = sbr.rel (%p192) target = $region36
    $region35: #{autoencoder_forward.6} parent=5 // pred_region
      %s196 = ssub.s32 %s12, 1
      %s197 = smul.u32 32, %s17
      %p198 = scmp.lt.s32.totalorder %s197, 95
      %s199 = scalar_select %p198, %s197, 95
      %s200 = smul.addr %s199, 8
      %s201 = scalar_lea.vmem %s0, %s200
      %p202 = pneg %p38
      %p203 = pneg %p35
      %p204 = pneg %p59
      %p205 = pneg %p56
      %p206 = pneg %p80
      %p207 = pneg %p77
      %p208 = pneg %p101
      %p209 = pneg %p98
      %p210 = pneg %p127
      %p211 = pneg %p124
      %s212 = smul.u32 32, %s17
      %p213 = scmp.lt.s32.totalorder %s212, 95
      %s214 = scalar_select %p213, %s212, 95
      %s215 = smul.addr %s214, 8
      %s216 = scalar_lea.vmem %s4, %s215
      %p217 = pneg %p153
      %p218 = pneg %p150
      %p219 = scmp.lt.s32.totalorder %s17, 2
      %s220 = scalar_select %p219, %s17, 2
      %s221 = smul.addr %s220, 2
      %s222 = scalar_lea.vmem %s5, %s221
      %s223 = smul.u32 32, %s17
      %p224 = scmp.lt.s32.totalorder %s223, 95
      %s225 = scalar_select %p224, %s223, 95
      %s226 = smul.addr %s225, 8
      %s227 = scalar_lea.vmem %s0, %s226
      %s228 = smul.u32 32, %s17
      %s229 = smul.u32 32, %s17
      %p230 = scmp.lt.s32.totalorder %s229, 95
      %s231 = scalar_select %p230, %s229, 95
      %s232 = smul.addr %s231, 8
      %s233 = scalar_lea.vmem %s4, %s232
      %s234 = smul.u32 32, %s17
      %p235 = scmp.lt.s32.totalorder %s17, 2
      %s236 = scalar_select %p235, %s17, 2
      %s237 = smul.addr %s236, 2
      %s238 = scalar_lea.vmem %s5, %s237
      %v240 = vld [vmem:[%s227] sm:$0xff]
      %v241 = vld [vmem:[%s227 + $0x8] sm:$0xff]
      %v242 = vld [vmem:[%s227 + $0x10] sm:$0xff]
      %v243 = vld [vmem:[%s227 + $0x18] sm:$0xff]
      %v244 = vld [vmem:[%s227 + $0x20] sm:$0xff]
      %v245 = vld [vmem:[%s227 + $0x28] sm:$0xff]
      %v246 = vld [vmem:[%s227 + $0x30] sm:$0xff]
      %v247 = vld [vmem:[%s227 + $0x38] sm:$0xff]
      %v248 = vld [vmem:[%s227 + $0x40] sm:$0xff]
      %v249 = vld [vmem:[%s227 + $0x48] sm:$0xff]
      %v250 = vld [vmem:[%s227 + $0x50] sm:$0xff]
      %v251 = vld [vmem:[%s227 + $0x58] sm:$0xff]
      %v252 = vld [vmem:[%s227 + $0x60] sm:$0xff]
      %v253 = vld [vmem:[%s227 + $0x68] sm:$0xff]
      %v254 = vld [vmem:[%s227 + $0x70] sm:$0xff]
      %v255 = vld [vmem:[%s227 + $0x78] sm:$0xff]
      %v256 = vld [vmem:[%s227 + $0x80] sm:$0xff]
      %v257 = vld [vmem:[%s227 + $0x88] sm:$0xff]
      %v258 = vld [vmem:[%s227 + $0x90] sm:$0xff]
      %v259 = vld [vmem:[%s227 + $0x98] sm:$0xff]
      %v260 = vld [vmem:[%s227 + $0xa0] sm:$0xff]
      %v261 = vld [vmem:[%s227 + $0xa8] sm:$0xff]
      %v262 = vld [vmem:[%s227 + $0xb0] sm:$0xff]
      %v263 = vld [vmem:[%s227 + $0xb8] sm:$0xff]
      %v264 = vld [vmem:[%s227 + $0xc0] sm:$0xff]
      %v265 = vld [vmem:[%s227 + $0xc8] sm:$0xff]
      %v266 = vld [vmem:[%s227 + $0xd0] sm:$0xff]
      %v267 = vld [vmem:[%s227 + $0xd8] sm:$0xff]
      %v268 = vld [vmem:[%s227 + $0xe0] sm:$0xff]
      %v269 = vld [vmem:[%s227 + $0xe8] sm:$0xff]
      %v270 = vld [vmem:[%s227 + $0xf0] sm:$0xff]
      %v271 = vld [vmem:[%s227 + $0xf8] sm:$0xff]
      %v272 = vld [vmem:[%s1] sm:$0x1]
      %v274 = vlaneseq
      %v275 = vshrl.u32 %v274, 7
      %v276 = vsub.s32 0, %v275
      %v277 = vrot.slane %v272, %v276
      %v279 = vmul.f32 %v240, %v277
      %v280 = vmul.f32 %v241, %v277
      %v281 = vmul.f32 %v242, %v277
      %v282 = vmul.f32 %v243, %v277
      %v283 = vmul.f32 %v244, %v277
      %v284 = vmul.f32 %v245, %v277
      %v285 = vmul.f32 %v246, %v277
      %v286 = vmul.f32 %v247, %v277
      %v287 = vmul.f32 %v248, %v277
      %v288 = vmul.f32 %v249, %v277
      %v289 = vmul.f32 %v250, %v277
      %v290 = vmul.f32 %v251, %v277
      %v291 = vmul.f32 %v252, %v277
      %v292 = vmul.f32 %v253, %v277
      %v293 = vmul.f32 %v254, %v277
      %v294 = vmul.f32 %v255, %v277
      %v295 = vmul.f32 %v256, %v277
      %v296 = vmul.f32 %v257, %v277
      %v297 = vmul.f32 %v258, %v277
      %v298 = vmul.f32 %v259, %v277
      %v299 = vmul.f32 %v260, %v277
      %v300 = vmul.f32 %v261, %v277
      %v301 = vmul.f32 %v262, %v277
      %v302 = vmul.f32 %v263, %v277
      %v303 = vmul.f32 %v264, %v277
      %v304 = vmul.f32 %v265, %v277
      %v305 = vmul.f32 %v266, %v277
      %v306 = vmul.f32 %v267, %v277
      %v307 = vmul.f32 %v268, %v277
      %v308 = vmul.f32 %v269, %v277
      %v309 = vmul.f32 %v270, %v277
      %v310 = vmul.f32 %v271, %v277
      %v311 = vld [vmem:[%s2] sm:$0x1]
      %v313 = vlaneseq
      %v314 = vshrl.u32 %v313, 7
      %v315 = vsub.s32 0, %v314
      %v316 = vrot.slane %v311, %v315
      %v318 = vadd.f32 %v279, %v316
      %v319 = vadd.f32 %v280, %v316
      %v320 = vadd.f32 %v281, %v316
      %v321 = vadd.f32 %v282, %v316
      %v322 = vadd.f32 %v283, %v316
      %v323 = vadd.f32 %v284, %v316
      %v324 = vadd.f32 %v285, %v316
      %v325 = vadd.f32 %v286, %v316
      %v326 = vadd.f32 %v287, %v316
      %v327 = vadd.f32 %v288, %v316
      %v328 = vadd.f32 %v289, %v316
      %v329 = vadd.f32 %v290, %v316
      %v330 = vadd.f32 %v291, %v316
      %v331 = vadd.f32 %v292, %v316
      %v332 = vadd.f32 %v293, %v316
      %v333 = vadd.f32 %v294, %v316
      %v334 = vadd.f32 %v295, %v316
      %v335 = vadd.f32 %v296, %v316
      %v336 = vadd.f32 %v297, %v316
      %v337 = vadd.f32 %v298, %v316
      %v338 = vadd.f32 %v299, %v316
      %v339 = vadd.f32 %v300, %v316
      %v340 = vadd.f32 %v301, %v316
      %v341 = vadd.f32 %v302, %v316
      %v342 = vadd.f32 %v303, %v316
      %v343 = vadd.f32 %v304, %v316
      %v344 = vadd.f32 %v305, %v316
      %v345 = vadd.f32 %v306, %v316
      %v346 = vadd.f32 %v307, %v316
      %v347 = vadd.f32 %v308, %v316
      %v348 = vadd.f32 %v309, %v316
      %v349 = vadd.f32 %v310, %v316
      %v350 = vmax.f32 %v318, 0.0
      %v351 = vmax.f32 %v319, 0.0
      %v352 = vmax.f32 %v320, 0.0
      %v353 = vmax.f32 %v321, 0.0
      %v354 = vmax.f32 %v322, 0.0
      %v355 = vmax.f32 %v323, 0.0
      %v356 = vmax.f32 %v324, 0.0
      %v357 = vmax.f32 %v325, 0.0
      %v358 = vmax.f32 %v326, 0.0
      %v359 = vmax.f32 %v327, 0.0
      %v360 = vmax.f32 %v328, 0.0
      %v361 = vmax.f32 %v329, 0.0
      %v362 = vmax.f32 %v330, 0.0
      %v363 = vmax.f32 %v331, 0.0
      %v364 = vmax.f32 %v332, 0.0
      %v365 = vmax.f32 %v333, 0.0
      %v366 = vmax.f32 %v334, 0.0
      %v367 = vmax.f32 %v335, 0.0
      %v368 = vmax.f32 %v336, 0.0
      %v369 = vmax.f32 %v337, 0.0
      %v370 = vmax.f32 %v338, 0.0
      %v371 = vmax.f32 %v339, 0.0
      %v372 = vmax.f32 %v340, 0.0
      %v373 = vmax.f32 %v341, 0.0
      %v374 = vmax.f32 %v342, 0.0
      %v375 = vmax.f32 %v343, 0.0
      %v376 = vmax.f32 %v344, 0.0
      %v377 = vmax.f32 %v345, 0.0
      %v378 = vmax.f32 %v346, 0.0
      %v379 = vmax.f32 %v347, 0.0
      %v380 = vmax.f32 %v348, 0.0
      %v381 = vmax.f32 %v349, 0.0
      %v382 = vpack.c.bf16 %v351, %v350
      %v383 = vpack.c.bf16 %v353, %v352
      %v384 = vpack.c.bf16 %v355, %v354
      %v385 = vpack.c.bf16 %v357, %v356
      %v386 = vpack.c.bf16 %v359, %v358
      %v387 = vpack.c.bf16 %v361, %v360
      %v388 = vpack.c.bf16 %v363, %v362
      %v389 = vpack.c.bf16 %v365, %v364
      %v390 = vpack.c.bf16 %v367, %v366
      %v391 = vpack.c.bf16 %v369, %v368
      %v392 = vpack.c.bf16 %v371, %v370
      %v393 = vpack.c.bf16 %v373, %v372
      %v394 = vpack.c.bf16 %v375, %v374
      %v395 = vpack.c.bf16 %v377, %v376
      %v396 = vpack.c.bf16 %v379, %v378
      %v397 = vpack.c.bf16 %v381, %v380
      %v398 = vld [vmem:[%s3] sm:$0xf]
      %v399 = vld [vmem:[%s3 + $0x4] sm:$0xf]
      %v400 = vld [vmem:[%s3 + $0x8] sm:$0xf]
      %v401 = vld [vmem:[%s3 + $0xc] sm:$0xf]
      %v406 = vunpack.c.l.b16 %v398
      %v407 = vunpack.c.l.b16 %v399
      %v408 = vunpack.c.l.b16 %v400
      %v409 = vunpack.c.l.b16 %v401
      %v410 = vpack.c.b16 %v407, %v406
      %v411 = vpack.c.b16 %v409, %v408
      %vm414 = vcmask 261120
      %v416 = vsel %vm414, %v382, 0
      %v419 = vsel %vm414, %v383, 0
      %v422 = vsel %vm414, %v384, 0
      %v425 = vsel %vm414, %v385, 0
      %v428 = vsel %vm414, %v386, 0
      %v431 = vsel %vm414, %v387, 0
      %v434 = vsel %vm414, %v388, 0
      %v437 = vsel %vm414, %v389, 0
      %v440 = vsel %vm414, %v390, 0
      %v443 = vsel %vm414, %v391, 0
      %v446 = vsel %vm414, %v392, 0
      %v449 = vsel %vm414, %v393, 0
      %v452 = vsel %vm414, %v394, 0
      %v455 = vsel %vm414, %v395, 0
      %v458 = vsel %vm414, %v396, 0
      %v461 = vsel %vm414, %v397, 0
      %463 = vmatprep.subr.bf16.mxu0 0
      %464 = vmatpush1.bf16.msra.mxu0 %v410
      %465 = vmatprep.subr.bf16.mxu0 0
      %466 = vmatpush1.bf16.msra.mxu0 %v411
      %467 = vmatprep.subr.bf16.mxu0 0
      %468 = vmatpush1.bf16.msra.mxu0 0
      %469 = vmatprep.subr.bf16.mxu0 0
      %470 = vmatpush1.bf16.msra.mxu0 0
      %471 = vmatprep.subr.bf16.mxu0 0
      %472 = vmatpush1.bf16.msra.mxu0 0
      %473 = vmatprep.subr.bf16.mxu0 0
      %474 = vmatpush1.bf16.msra.mxu0 0
      %475 = vmatprep.subr.bf16.mxu0 0
      %476 = vmatpush1.bf16.msra.mxu0 0
      %477 = vmatprep.subr.bf16.mxu0 0
      %478 = vmatpush1.bf16.msra.mxu0 0
      %479 = vmatprep.subr.bf16.mxu0 0
      %480 = vmatpush1.bf16.msra.mxu0 0
      %481 = vmatprep.subr.bf16.mxu0 0
      %482 = vmatpush1.bf16.msra.mxu0 0
      %483 = vmatprep.subr.bf16.mxu0 0
      %484 = vmatpush1.bf16.msra.mxu0 0
      %485 = vmatprep.subr.bf16.mxu0 0
      %486 = vmatpush1.bf16.msra.mxu0 0
      %487 = vmatprep.subr.bf16.mxu0 0
      %488 = vmatpush1.bf16.msra.mxu0 0
      %489 = vmatprep.subr.bf16.mxu0 0
      %490 = vmatpush1.bf16.msra.mxu0 0
      %491 = vmatprep.subr.bf16.mxu0 0
      %492 = vmatpush1.bf16.msra.mxu0 0
      %493 = vmatprep.subr.bf16.mxu0 0
      %494 = vmatpush1.bf16.msra.mxu0 0
      %495 = vmatprep.mubr.bf16.mxu0 0
      %496 = vmatmul.mubr.bf16.gmra.mrb[0].mxu0 %v416
      %v497 = vpop.f32.mrb[0].mxu0
      %v498 = vadd.f32 0.0, %v497
      %v499 = vpop.f32.mrb[0].mxu0
      %v500 = vpop.f32.mrb[0].mxu0
      %v501 = vadd.f32 0.0, %v500
      %v502 = vpop.f32.mrb[0].mxu0
      %503 = vmatprep.mubr.bf16.mxu0 0
      %504 = vmatmul.mubr.bf16.gmra.mrb[0].mxu0 %v419
      %v505 = vpop.f32.mrb[0].mxu0
      %v506 = vadd.f32 0.0, %v505
      %v507 = vpop.f32.mrb[0].mxu0
      %v508 = vpop.f32.mrb[0].mxu0
      %v509 = vadd.f32 0.0, %v508
      %v510 = vpop.f32.mrb[0].mxu0
      %511 = vmatprep.mubr.bf16.mxu0 0
      %512 = vmatmul.mubr.bf16.gmra.mrb[0].mxu0 %v422
      %v513 = vpop.f32.mrb[0].mxu0
      %v514 = vadd.f32 0.0, %v513
      %v515 = vpop.f32.mrb[0].mxu0
      %v516 = vpop.f32.mrb[0].mxu0
      %v517 = vadd.f32 0.0, %v516
      %v518 = vpop.f32.mrb[0].mxu0
      %519 = vmatprep.mubr.bf16.mxu0 0
      %520 = vmatmul.mubr.bf16.gmra.mrb[0].mxu0 %v425
      %v521 = vpop.f32.mrb[0].mxu0
      %v522 = vadd.f32 0.0, %v521
      %v523 = vpop.f32.mrb[0].mxu0
      %v524 = vpop.f32.mrb[0].mxu0
      %v525 = vadd.f32 0.0, %v524
      %v526 = vpop.f32.mrb[0].mxu0
      %527 = vmatprep.mubr.bf16.mxu0 0
      %528 = vmatmul.mubr.bf16.gmra.mrb[0].mxu0 %v428
      %v529 = vpop.f32.mrb[0].mxu0
      %v530 = vadd.f32 0.0, %v529
      %v531 = vpop.f32.mrb[0].mxu0
      %v532 = vpop.f32.mrb[0].mxu0
      %v533 = vadd.f32 0.0, %v532
      %v534 = vpop.f32.mrb[0].mxu0
      %535 = vmatprep.mubr.bf16.mxu0 0
      %536 = vmatmul.mubr.bf16.gmra.mrb[0].mxu0 %v431
      %v537 = vpop.f32.mrb[0].mxu0
      %v538 = vadd.f32 0.0, %v537
      %v539 = vpop.f32.mrb[0].mxu0
      %v540 = vpop.f32.mrb[0].mxu0
      %v541 = vadd.f32 0.0, %v540
      %v542 = vpop.f32.mrb[0].mxu0
      %543 = vmatprep.mubr.bf16.mxu0 0
      %544 = vmatmul.mubr.bf16.gmra.mrb[0].mxu0 %v434
      %v545 = vpop.f32.mrb[0].mxu0
      %v546 = vadd.f32 0.0, %v545
      %v547 = vpop.f32.mrb[0].mxu0
      %v548 = vpop.f32.mrb[0].mxu0
      %v549 = vadd.f32 0.0, %v548
      %v550 = vpop.f32.mrb[0].mxu0
      %551 = vmatprep.mubr.bf16.mxu0 0
      %552 = vmatmul.mubr.bf16.gmra.mrb[0].mxu0 %v437
      %v553 = vpop.f32.mrb[0].mxu0
      %v554 = vadd.f32 0.0, %v553
      %v555 = vpop.f32.mrb[0].mxu0
      %v556 = vpop.f32.mrb[0].mxu0
      %v557 = vadd.f32 0.0, %v556
      %v558 = vpop.f32.mrb[0].mxu0
      %559 = vmatprep.mubr.bf16.mxu0 0
      %560 = vmatmul.mubr.bf16.gmra.mrb[0].mxu0 %v440
      %v561 = vpop.f32.mrb[0].mxu0
      %v562 = vadd.f32 0.0, %v561
      %v563 = vpop.f32.mrb[0].mxu0
      %v564 = vpop.f32.mrb[0].mxu0
      %v565 = vadd.f32 0.0, %v564
      %v566 = vpop.f32.mrb[0].mxu0
      %567 = vmatprep.mubr.bf16.mxu0 0
      %568 = vmatmul.mubr.bf16.gmra.mrb[0].mxu0 %v443
      %v569 = vpop.f32.mrb[0].mxu0
      %v570 = vadd.f32 0.0, %v569
      %v571 = vpop.f32.mrb[0].mxu0
      %v572 = vpop.f32.mrb[0].mxu0
      %v573 = vadd.f32 0.0, %v572
      %v574 = vpop.f32.mrb[0].mxu0
      %575 = vmatprep.mubr.bf16.mxu0 0
      %576 = vmatmul.mubr.bf16.gmra.mrb[0].mxu0 %v446
      %v577 = vpop.f32.mrb[0].mxu0
      %v578 = vadd.f32 0.0, %v577
      %v579 = vpop.f32.mrb[0].mxu0
      %v580 = vpop.f32.mrb[0].mxu0
      %v581 = vadd.f32 0.0, %v580
      %v582 = vpop.f32.mrb[0].mxu0
      %583 = vmatprep.mubr.bf16.mxu0 0
      %584 = vmatmul.mubr.bf16.gmra.mrb[0].mxu0 %v449
      %v585 = vpop.f32.mrb[0].mxu0
      %v586 = vadd.f32 0.0, %v585
      %v587 = vpop.f32.mrb[0].mxu0
      %v588 = vpop.f32.mrb[0].mxu0
      %v589 = vadd.f32 0.0, %v588
      %v590 = vpop.f32.mrb[0].mxu0
      %591 = vmatprep.mubr.bf16.mxu0 0
      %592 = vmatmul.mubr.bf16.gmra.mrb[0].mxu0 %v452
      %v593 = vpop.f32.mrb[0].mxu0
      %v594 = vadd.f32 0.0, %v593
      %v595 = vpop.f32.mrb[0].mxu0
      %v596 = vpop.f32.mrb[0].mxu0
      %v597 = vadd.f32 0.0, %v596
      %v598 = vpop.f32.mrb[0].mxu0
      %599 = vmatprep.mubr.bf16.mxu0 0
      %600 = vmatmul.mubr.bf16.gmra.mrb[0].mxu0 %v455
      %v601 = vpop.f32.mrb[0].mxu0
      %v602 = vadd.f32 0.0, %v601
      %v603 = vpop.f32.mrb[0].mxu0
      %v604 = vpop.f32.mrb[0].mxu0
      %v605 = vadd.f32 0.0, %v604
      %v606 = vpop.f32.mrb[0].mxu0
      %607 = vmatprep.mubr.bf16.mxu0 0
      %608 = vmatmul.mubr.bf16.gmra.mrb[0].mxu0 %v458
      %v609 = vpop.f32.mrb[0].mxu0
      %v610 = vadd.f32 0.0, %v609
      %v611 = vpop.f32.mrb[0].mxu0
      %v612 = vpop.f32.mrb[0].mxu0
      %v613 = vadd.f32 0.0, %v612
      %v614 = vpop.f32.mrb[0].mxu0
      %615 = vmatprep.mubr.bf16.mxu0 0
      %616 = vmatmul.mubr.bf16.gmra.mrb[0].mxu0 %v461
      %v617 = vpop.f32.mrb[0].mxu0
      %v618 = vadd.f32 0.0, %v617
      %v619 = vpop.f32.mrb[0].mxu0
      %v620 = vpop.f32.mrb[0].mxu0
      %v621 = vadd.f32 0.0, %v620
      %v622 = vpop.f32.mrb[0].mxu0
      %623 = vdwg.mxu0
      %vm624 = vcmask 523264
      %625 = vst.msk [vmem:[%s233] sm:$0xff] %vm624, %v498
      %626 = vst.msk [vmem:[%s233 + $0x8] sm:$0xff] %vm624, %v501
      %627 = vst.msk [vmem:[%s233 + $0x10] sm:$0xff] %vm624, %v506
      %628 = vst.msk [vmem:[%s233 + $0x18] sm:$0xff] %vm624, %v509
      %629 = vst.msk [vmem:[%s233 + $0x20] sm:$0xff] %vm624, %v514
      %630 = vst.msk [vmem:[%s233 + $0x28] sm:$0xff] %vm624, %v517
      %631 = vst.msk [vmem:[%s233 + $0x30] sm:$0xff] %vm624, %v522
      %632 = vst.msk [vmem:[%s233 + $0x38] sm:$0xff] %vm624, %v525
      %633 = vst.msk [vmem:[%s233 + $0x40] sm:$0xff] %vm624, %v530
      %634 = vst.msk [vmem:[%s233 + $0x48] sm:$0xff] %vm624, %v533
      %635 = vst.msk [vmem:[%s233 + $0x50] sm:$0xff] %vm624, %v538
      %636 = vst.msk [vmem:[%s233 + $0x58] sm:$0xff] %vm624, %v541
      %637 = vst.msk [vmem:[%s233 + $0x60] sm:$0xff] %vm624, %v546
      %638 = vst.msk [vmem:[%s233 + $0x68] sm:$0xff] %vm624, %v549
      %639 = vst.msk [vmem:[%s233 + $0x70] sm:$0xff] %vm624, %v554
      %640 = vst.msk [vmem:[%s233 + $0x78] sm:$0xff] %vm624, %v557
      %641 = vst.msk [vmem:[%s233 + $0x80] sm:$0xff] %vm624, %v562
      %642 = vst.msk [vmem:[%s233 + $0x88] sm:$0xff] %vm624, %v565
      %643 = vst.msk [vmem:[%s233 + $0x90] sm:$0xff] %vm624, %v570
      %644 = vst.msk [vmem:[%s233 + $0x98] sm:$0xff] %vm624, %v573
      %645 = vst.msk [vmem:[%s233 + $0xa0] sm:$0xff] %vm624, %v578
      %646 = vst.msk [vmem:[%s233 + $0xa8] sm:$0xff] %vm624, %v581
      %647 = vst.msk [vmem:[%s233 + $0xb0] sm:$0xff] %vm624, %v586
      %648 = vst.msk [vmem:[%s233 + $0xb8] sm:$0xff] %vm624, %v589
      %649 = vst.msk [vmem:[%s233 + $0xc0] sm:$0xff] %vm624, %v594
      %650 = vst.msk [vmem:[%s233 + $0xc8] sm:$0xff] %vm624, %v597
      %651 = vst.msk [vmem:[%s233 + $0xd0] sm:$0xff] %vm624, %v602
      %652 = vst.msk [vmem:[%s233 + $0xd8] sm:$0xff] %vm624, %v605
      %653 = vst.msk [vmem:[%s233 + $0xe0] sm:$0xff] %vm624, %v610
      %654 = vst.msk [vmem:[%s233 + $0xe8] sm:$0xff] %vm624, %v613
      %655 = vst.msk [vmem:[%s233 + $0xf0] sm:$0xff] %vm624, %v618
      %656 = vst.msk [vmem:[%s233 + $0xf8] sm:$0xff] %vm624, %v621
      %v657 = vsel %vm624, %v498, 0.0
      %v658 = vsel %vm624, %v501, 0.0
      %v659 = vadd.f32 %v657, %v658
      %v660 = vsel %vm624, %v506, 0.0
      %v661 = vadd.f32 %v659, %v660
      %v662 = vsel %vm624, %v509, 0.0
      %v663 = vadd.f32 %v661, %v662
      %v664 = vsel %vm624, %v514, 0.0
      %v665 = vadd.f32 %v663, %v664
      %v666 = vsel %vm624, %v517, 0.0
      %v667 = vadd.f32 %v665, %v666
      %v668 = vsel %vm624, %v522, 0.0
      %v669 = vadd.f32 %v667, %v668
      %v670 = vsel %vm624, %v525, 0.0
      %v671 = vadd.f32 %v669, %v670
      %v672 = vsel %vm624, %v530, 0.0
      %v673 = vadd.f32 %v671, %v672
      %v674 = vsel %vm624, %v533, 0.0
      %v675 = vadd.f32 %v673, %v674
      %v676 = vsel %vm624, %v538, 0.0
      %v677 = vadd.f32 %v675, %v676
      %v678 = vsel %vm624, %v541, 0.0
      %v679 = vadd.f32 %v677, %v678
      %v680 = vsel %vm624, %v546, 0.0
      %v681 = vadd.f32 %v679, %v680
      %v682 = vsel %vm624, %v549, 0.0
      %v683 = vadd.f32 %v681, %v682
      %v684 = vsel %vm624, %v554, 0.0
      %v685 = vadd.f32 %v683, %v684
      %v686 = vsel %vm624, %v557, 0.0
      %v687 = vadd.f32 %v685, %v686
      %v688 = vsel %vm624, %v562, 0.0
      %v689 = vadd.f32 %v687, %v688
      %v690 = vsel %vm624, %v565, 0.0
      %v691 = vadd.f32 %v689, %v690
      %v692 = vsel %vm624, %v570, 0.0
      %v693 = vadd.f32 %v691, %v692
      %v694 = vsel %vm624, %v573, 0.0
      %v695 = vadd.f32 %v693, %v694
      %v696 = vsel %vm624, %v578, 0.0
      %v697 = vadd.f32 %v695, %v696
      %v698 = vsel %vm624, %v581, 0.0
      %v699 = vadd.f32 %v697, %v698
      %v700 = vsel %vm624, %v586, 0.0
      %v701 = vadd.f32 %v699, %v700
      %v702 = vsel %vm624, %v589, 0.0
      %v703 = vadd.f32 %v701, %v702
      %v704 = vsel %vm624, %v594, 0.0
      %v705 = vadd.f32 %v703, %v704
      %v706 = vsel %vm624, %v597, 0.0
      %v707 = vadd.f32 %v705, %v706
      %v708 = vsel %vm624, %v602, 0.0
      %v709 = vadd.f32 %v707, %v708
      %v710 = vsel %vm624, %v605, 0.0
      %v711 = vadd.f32 %v709, %v710
      %v712 = vsel %vm624, %v610, 0.0
      %v713 = vadd.f32 %v711, %v712
      %v714 = vsel %vm624, %v613, 0.0
      %v715 = vadd.f32 %v713, %v714
      %v716 = vsel %vm624, %v618, 0.0
      %v717 = vadd.f32 %v715, %v716
      %v718 = vsel %vm624, %v621, 0.0
      %v719 = vadd.f32 %v717, %v718
      %v720 = vrot.slane %v719, 4
      %v721 = vadd.f32 %v719, %v720
      %v722 = vrot.slane %v721, 2
      %v723 = vadd.f32 %v721, %v722
      %v724 = vrot.slane %v723, 1
      %v725 = vadd.f32 %v723, %v724
      %vm726 = vcmask 516096
      %727 = vst.msk [vmem:[%s238] sm:$0x1] %vm726, %v725
      %v728 = vmul.f32 %v498, %v498
      %v729 = vmul.f32 %v501, %v501
      %v730 = vmul.f32 %v506, %v506
      %v731 = vmul.f32 %v509, %v509
      %v732 = vmul.f32 %v514, %v514
      %v733 = vmul.f32 %v517, %v517
      %v734 = vmul.f32 %v522, %v522
      %v735 = vmul.f32 %v525, %v525
      %v736 = vmul.f32 %v530, %v530
      %v737 = vmul.f32 %v533, %v533
      %v738 = vmul.f32 %v538, %v538
      %v739 = vmul.f32 %v541, %v541
      %v740 = vmul.f32 %v546, %v546
      %v741 = vmul.f32 %v549, %v549
      %v742 = vmul.f32 %v554, %v554
      %v743 = vmul.f32 %v557, %v557
      %v744 = vmul.f32 %v562, %v562
      %v745 = vmul.f32 %v565, %v565
      %v746 = vmul.f32 %v570, %v570
      %v747 = vmul.f32 %v573, %v573
      %v748 = vmul.f32 %v578, %v578
      %v749 = vmul.f32 %v581, %v581
      %v750 = vmul.f32 %v586, %v586
      %v751 = vmul.f32 %v589, %v589
      %v752 = vmul.f32 %v594, %v594
      %v753 = vmul.f32 %v597, %v597
      %v754 = vmul.f32 %v602, %v602
      %v755 = vmul.f32 %v605, %v605
      %v756 = vmul.f32 %v610, %v610
      %v757 = vmul.f32 %v613, %v613
      %v758 = vmul.f32 %v618, %v618
      %v759 = vmul.f32 %v621, %v621
      %v760 = vsel %vm624, %v728, 0.0
      %v761 = vsel %vm624, %v729, 0.0
      %v762 = vadd.f32 %v760, %v761
      %v763 = vsel %vm624, %v730, 0.0
      %v764 = vadd.f32 %v762, %v763
      %v765 = vsel %vm624, %v731, 0.0
      %v766 = vadd.f32 %v764, %v765
      %v767 = vsel %vm624, %v732, 0.0
      %v768 = vadd.f32 %v766, %v767
      %v769 = vsel %vm624, %v733, 0.0
      %v770 = vadd.f32 %v768, %v769
      %v771 = vsel %vm624, %v734, 0.0
      %v772 = vadd.f32 %v770, %v771
      %v773 = vsel %vm624, %v735, 0.0
      %v774 = vadd.f32 %v772, %v773
      %v775 = vsel %vm624, %v736, 0.0
      %v776 = vadd.f32 %v774, %v775
      %v777 = vsel %vm624, %v737, 0.0
      %v778 = vadd.f32 %v776, %v777
      %v779 = vsel %vm624, %v738, 0.0
      %v780 = vadd.f32 %v778, %v779
      %v781 = vsel %vm624, %v739, 0.0
      %v782 = vadd.f32 %v780, %v781
      %v783 = vsel %vm624, %v740, 0.0
      %v784 = vadd.f32 %v782, %v783
      %v785 = vsel %vm624, %v741, 0.0
      %v786 = vadd.f32 %v784, %v785
      %v787 = vsel %vm624, %v742, 0.0
      %v788 = vadd.f32 %v786, %v787
      %v789 = vsel %vm624, %v743, 0.0
      %v790 = vadd.f32 %v788, %v789
      %v791 = vsel %vm624, %v744, 0.0
      %v792 = vadd.f32 %v790, %v791
      %v793 = vsel %vm624, %v745, 0.0
      %v794 = vadd.f32 %v792, %v793
      %v795 = vsel %vm624, %v746, 0.0
      %v796 = vadd.f32 %v794, %v795
      %v797 = vsel %vm624, %v747, 0.0
      %v798 = vadd.f32 %v796, %v797
      %v799 = vsel %vm624, %v748, 0.0
      %v800 = vadd.f32 %v798, %v799
      %v801 = vsel %vm624, %v749, 0.0
      %v802 = vadd.f32 %v800, %v801
      %v803 = vsel %vm624, %v750, 0.0
      %v804 = vadd.f32 %v802, %v803
      %v805 = vsel %vm624, %v751, 0.0
      %v806 = vadd.f32 %v804, %v805
      %v807 = vsel %vm624, %v752, 0.0
      %v808 = vadd.f32 %v806, %v807
      %v809 = vsel %vm624, %v753, 0.0
      %v810 = vadd.f32 %v808, %v809
      %v811 = vsel %vm624, %v754, 0.0
      %v812 = vadd.f32 %v810, %v811
      %v813 = vsel %vm624, %v755, 0.0
      %v814 = vadd.f32 %v812, %v813
      %v815 = vsel %vm624, %v756, 0.0
      %v816 = vadd.f32 %v814, %v815
      %v817 = vsel %vm624, %v757, 0.0
      %v818 = vadd.f32 %v816, %v817
      %v819 = vsel %vm624, %v758, 0.0
      %v820 = vadd.f32 %v818, %v819
      %v821 = vsel %vm624, %v759, 0.0
      %v822 = vadd.f32 %v820, %v821
      %v823 = vrot.slane %v822, 4
      %v824 = vadd.f32 %v822, %v823
      %v825 = vrot.slane %v824, 2
      %v826 = vadd.f32 %v824, %v825
      %v827 = vrot.slane %v826, 1
      %v828 = vadd.f32 %v826, %v827
      %829 = vst.msk [vmem:[%s238 + $0x1] sm:$0x1] %vm726, %v828
      %s830 = smul.u32 32, %s17
      %p831 = scmp.lt.s32.totalorder %s830, 95
      %s832 = scalar_select %p831, %s830, 95
      %s833 = smul.addr %s832, 8
      %s834 = scalar_lea.vmem %s4, %s833
      %p835 = scmp.lt.s32.totalorder %s17, 2
      %s836 = scalar_select %p835, %s17, 2
      %s837 = smul.addr %s836, 2
      %s838 = scalar_lea.vmem %s5, %s837
      // Predicated region
      $region37: #{autoencoder_forward.6} parent=35 // pred_check
        %p839 = pneg %p124
      $region38: #{autoencoder_forward.6} parent=35 // pred_check_branch
        %841 = sbr.rel (%p839) target = $region40
      $region39: #{autoencoder_forward.6} parent=35 // pred_region
        %s842 = smul.u32 32, %s17
      $region40: #{autoencoder_forward.6} parent=35 // pred_fallthru
        _
      // Predicated region
      $region41: #{autoencoder_forward.6} parent=35 // pred_check
        %p843 = pneg %p150
      $region42: #{autoencoder_forward.6} parent=35 // pred_check_branch
        %845 = sbr.rel (%p843) target = $region44
      $region43: #{autoencoder_forward.6} parent=35 // pred_region
        _
      $region44: #{autoencoder_forward.6} parent=35 // pred_fallthru
        _
    $region36: #{autoencoder_forward.6} parent=5 // pred_fallthru
      _
    %p846 = scmp.le.s32.totalorder 2, %s12
    // Predicated region
    $region45: #{autoencoder_forward.6} parent=5 // pred_check
      %p847 = pneg %p846
    $region46: #{autoencoder_forward.6} parent=5 // pred_check_branch
      %849 = sbr.rel (%p847) target = $region48
    $region47: #{autoencoder_forward.6} parent=5 // pred_region
      %s850 = ssub.s32 %s12, 2
      // Predicated region
      $region49: #{autoencoder_forward.6} parent=47 // pred_check
        %p851 = pneg %p130
      $region50: #{autoencoder_forward.6} parent=47 // pred_check_branch
        %853 = sbr.rel (%p851) target = $region52
      $region51: #{autoencoder_forward.6} parent=47 // pred_region
        %s854 = smul.u32 32, %s18
        %p855 = scmp.lt.s32.totalorder %s854, 95
        %s856 = scalar_select %p855, %s854, 95
        %s857 = smul.addr %s856, 8
        %s858 = scalar_lea.vmem %s4, %s857
      $region52: #{autoencoder_forward.6} parent=47 // pred_fallthru
        _
      // Predicated region
      $region53: #{autoencoder_forward.6} parent=47 // pred_check
        %p859 = pneg %p156
      $region54: #{autoencoder_forward.6} parent=47 // pred_check_branch
        %861 = sbr.rel (%p859) target = $region56
      $region55: #{autoencoder_forward.6} parent=47 // pred_region
        %p862 = scmp.lt.s32.totalorder %s18, 2
        %s863 = scalar_select %p862, %s18, 2
        %s864 = smul.addr %s863, 2
        %s865 = scalar_lea.vmem %s5, %s864
      $region56: #{autoencoder_forward.6} parent=47 // pred_fallthru
        _
    $region48: #{autoencoder_forward.6} parent=5 // pred_fallthru
      _
  $region6: #{autoencoder_forward.6} parent=0 // loop_footer
    %s16 = sadd.s32 1, %s12
  $region7: #{autoencoder_forward.6} parent=0 // loop_footer_branch
    %11 = sbr.rel target = $region3
  $region8: #{autoencoder_forward.6} parent=0 // loop_exit
    _

// kernel: autoencoder_forward.7
$region0: #{autoencoder_forward.7}
  #allocation0 [shape = 'u32[]', space=smem, size = 0x4, offset = 0x4, fixed_abs, tag = 'smem constant byte address 0x4 - core index']
  #allocation1 [shape = 'u32[144,128]{1,0:T(1,128)}', space=vmem, size = 0x12000, scoped, tag = 'internal scratch']
  %s0 = inlined_call_operand.vmem [shape: f32[768,64], index: 0, kind: input, shape index: {}]
  %s1 = inlined_call_operand.vmem [shape: f32[1,64], index: 1, kind: input, shape index: {}]
  %s2 = inlined_call_operand.vmem [shape: f32[1,64], index: 2, kind: input, shape index: {}]
  %s3 = inlined_call_operand.vmem [shape: bf16[64,10], index: 3, kind: input, shape index: {}]
  %s4 = inlined_call_operand.vmem [shape: f32[1,10], index: 4, kind: input, shape index: {}]
  %s5 = inlined_call_operand.vmem [shape: bf16[10,32], index: 5, kind: input, shape index: {}]
  %s6 = inlined_call_operand.vmem [shape: f32[768,32], index: 6, kind: output, shape index: {0}]
  %s7 = inlined_call_operand.vmem [shape: f32[3,2,32], index: 7, kind: output, shape index: {1}]
  %8 = xla_tuple %s6, %s7
  %s9 = sld [smem:[#allocation0]]
  $region65: #{autoencoder_forward.7} parent=0
    _
  %s11 = ssub.s32 1, %s9
  %s12 = scalar_select 0, %s11, %s9
  loop: start=0, step=1, limit=5
  $region2: #{autoencoder_forward.7} parent=0 // loop_pre_header
    _
  $region3: #{autoencoder_forward.7} parent=0 // loop_header
    %s14 = sphi 0, %s18
    %p15 = scmp.ge.s32.totalorder %s14, 5
    %s24 = sphi 0, %s26
    %s27 = sphi 0, %s24
    %s28 = sphi 0, %s27
    %s44 = sphi 0, %s28
    %s48 = sphi 0, %s48
    %s50 = sphi 0, %s48
    %s51 = sphi 0, %s50
    %s65 = sphi 0, %s51
    %s69 = sphi 0, %s69
    %s71 = sphi 0, %s69
    %s72 = sphi 0, %s71
    %s86 = sphi 0, %s72
    %s90 = sphi 0, %s90
    %s92 = sphi 0, %s90
    %s93 = sphi 0, %s92
    %s107 = sphi 0, %s93
    %s111 = sphi 0, %s111
    %s113 = sphi 0, %s111
    %s114 = sphi 0, %s113
    %s128 = sphi 0, %s114
    %s132 = sphi 0, %s132
    %s134 = sphi 0, %s132
    %s135 = sphi 0, %s134
    %s149 = sphi 0, %s135
    %s155 = sphi 0, %s157
    %s158 = sphi 0, %s155
    %s159 = sphi 0, %s158
    %s175 = sphi 0, %s159
    %s181 = sphi 0, %s183
    %s184 = sphi 0, %s181
    %s185 = sphi 0, %s184
    %s201 = sphi 0, %s185
  $region4: #{autoencoder_forward.7} parent=0 // loop_header_branch
    %17 = sbr.rel (%p15) target = $region8
  $region5: #{autoencoder_forward.7} parent=0 // loop_body
    %s19 = ssub.s32 %s14, 1
    %s20 = ssub.s32 %s14, 2
    %s21 = sadd.s32 %s14, 1
    %s22 = ssub.s32 %s14, %s21
    %p23 = scmp.eq.s32.totalorder %s22, 0
    %s25 = sadd.s32 %s24, 1
    %s26 = scalar_select %p23, %s24, %s25
    %p29 = pneg %p23
    %p30 = scmp.eq.s32.totalorder %s14, 2
    %p31 = por %p29, %p30
    %p32 = scmp.ne.s32.totalorder %s24, %s27
    %p33 = scmp.eq.s32.totalorder %s14, 0
    %p34 = por %p32, %p33
    %p35 = scmp.ne.s32.totalorder %s24, %s27
    %p36 = scmp.eq.s32.totalorder %s19, 2
    %p37 = por %p35, %p36
    %p38 = scmp.ne.s32.totalorder %s27, %s28
    %p39 = scmp.eq.s32.totalorder %s19, 0
    %p40 = por %p38, %p39
    %p41 = scmp.ne.s32.totalorder %s27, %s28
    %p42 = scmp.eq.s32.totalorder %s20, 2
    %p43 = por %p41, %p42
    %p45 = scmp.ne.s32.totalorder %s28, %s44
    %p46 = scmp.eq.s32.totalorder %s20, 0
    %p47 = por %p45, %p46
    %s49 = sadd.s32 %s48, 1
    %p52 = scmp.eq.s32.totalorder %s14, 2
    %p53 = scmp.ne.s32.totalorder %s48, %s50
    %p54 = scmp.eq.s32.totalorder %s14, 0
    %p55 = por %p53, %p54
    %p56 = scmp.ne.s32.totalorder %s48, %s50
    %p57 = scmp.eq.s32.totalorder %s19, 2
    %p58 = por %p56, %p57
    %p59 = scmp.ne.s32.totalorder %s50, %s51
    %p60 = scmp.eq.s32.totalorder %s19, 0
    %p61 = por %p59, %p60
    %p62 = scmp.ne.s32.totalorder %s50, %s51
    %p63 = scmp.eq.s32.totalorder %s20, 2
    %p64 = por %p62, %p63
    %p66 = scmp.ne.s32.totalorder %s51, %s65
    %p67 = scmp.eq.s32.totalorder %s20, 0
    %p68 = por %p66, %p67
    %s70 = sadd.s32 %s69, 1
    %p73 = scmp.eq.s32.totalorder %s14, 2
    %p74 = scmp.ne.s32.totalorder %s69, %s71
    %p75 = scmp.eq.s32.totalorder %s14, 0
    %p76 = por %p74, %p75
    %p77 = scmp.ne.s32.totalorder %s69, %s71
    %p78 = scmp.eq.s32.totalorder %s19, 2
    %p79 = por %p77, %p78
    %p80 = scmp.ne.s32.totalorder %s71, %s72
    %p81 = scmp.eq.s32.totalorder %s19, 0
    %p82 = por %p80, %p81
    %p83 = scmp.ne.s32.totalorder %s71, %s72
    %p84 = scmp.eq.s32.totalorder %s20, 2
    %p85 = por %p83, %p84
    %p87 = scmp.ne.s32.totalorder %s72, %s86
    %p88 = scmp.eq.s32.totalorder %s20, 0
    %p89 = por %p87, %p88
    %s91 = sadd.s32 %s90, 1
    %p94 = scmp.eq.s32.totalorder %s14, 2
    %p95 = scmp.ne.s32.totalorder %s90, %s92
    %p96 = scmp.eq.s32.totalorder %s14, 0
    %p97 = por %p95, %p96
    %p98 = scmp.ne.s32.totalorder %s90, %s92
    %p99 = scmp.eq.s32.totalorder %s19, 2
    %p100 = por %p98, %p99
    %p101 = scmp.ne.s32.totalorder %s92, %s93
    %p102 = scmp.eq.s32.totalorder %s19, 0
    %p103 = por %p101, %p102
    %p104 = scmp.ne.s32.totalorder %s92, %s93
    %p105 = scmp.eq.s32.totalorder %s20, 2
    %p106 = por %p104, %p105
    %p108 = scmp.ne.s32.totalorder %s93, %s107
    %p109 = scmp.eq.s32.totalorder %s20, 0
    %p110 = por %p108, %p109
    %s112 = sadd.s32 %s111, 1
    %p115 = scmp.eq.s32.totalorder %s14, 2
    %p116 = scmp.ne.s32.totalorder %s111, %s113
    %p117 = scmp.eq.s32.totalorder %s14, 0
    %p118 = por %p116, %p117
    %p119 = scmp.ne.s32.totalorder %s111, %s113
    %p120 = scmp.eq.s32.totalorder %s19, 2
    %p121 = por %p119, %p120
    %p122 = scmp.ne.s32.totalorder %s113, %s114
    %p123 = scmp.eq.s32.totalorder %s19, 0
    %p124 = por %p122, %p123
    %p125 = scmp.ne.s32.totalorder %s113, %s114
    %p126 = scmp.eq.s32.totalorder %s20, 2
    %p127 = por %p125, %p126
    %p129 = scmp.ne.s32.totalorder %s114, %s128
    %p130 = scmp.eq.s32.totalorder %s20, 0
    %p131 = por %p129, %p130
    %s133 = sadd.s32 %s132, 1
    %p136 = scmp.eq.s32.totalorder %s14, 2
    %p137 = scmp.ne.s32.totalorder %s132, %s134
    %p138 = scmp.eq.s32.totalorder %s14, 0
    %p139 = por %p137, %p138
    %p140 = scmp.ne.s32.totalorder %s132, %s134
    %p141 = scmp.eq.s32.totalorder %s19, 2
    %p142 = por %p140, %p141
    %p143 = scmp.ne.s32.totalorder %s134, %s135
    %p144 = scmp.eq.s32.totalorder %s19, 0
    %p145 = por %p143, %p144
    %p146 = scmp.ne.s32.totalorder %s134, %s135
    %p147 = scmp.eq.s32.totalorder %s20, 2
    %p148 = por %p146, %p147
    %p150 = scmp.ne.s32.totalorder %s135, %s149
    %p151 = scmp.eq.s32.totalorder %s20, 0
    %p152 = por %p150, %p151
    %s153 = ssub.s32 %s14, %s21
    %p154 = scmp.eq.s32.totalorder %s153, 0
    %s156 = sadd.s32 %s155, 1
    %s157 = scalar_select %p154, %s155, %s156
    %p160 = pneg %p154
    %p161 = scmp.eq.s32.totalorder %s14, 2
    %p162 = por %p160, %p161
    %p163 = scmp.ne.s32.totalorder %s155, %s158
    %p164 = scmp.eq.s32.totalorder %s14, 0
    %p165 = por %p163, %p164
    %p166 = scmp.ne.s32.totalorder %s155, %s158
    %p167 = scmp.eq.s32.totalorder %s19, 2
    %p168 = por %p166, %p167
    %p169 = scmp.ne.s32.totalorder %s158, %s159
    %p170 = scmp.eq.s32.totalorder %s19, 0
    %p171 = por %p169, %p170
    %p172 = scmp.ne.s32.totalorder %s158, %s159
    %p173 = scmp.eq.s32.totalorder %s20, 2
    %p174 = por %p172, %p173
    %p176 = scmp.ne.s32.totalorder %s159, %s175
    %p177 = scmp.eq.s32.totalorder %s20, 0
    %p178 = por %p176, %p177
    %s179 = ssub.s32 %s14, %s21
    %p180 = scmp.eq.s32.totalorder %s179, 0
    %s182 = sadd.s32 %s181, 1
    %s183 = scalar_select %p180, %s181, %s182
    %p186 = pneg %p180
    %p187 = scmp.eq.s32.totalorder %s14, 2
    %p188 = por %p186, %p187
    %p189 = scmp.ne.s32.totalorder %s181, %s184
    %p190 = scmp.eq.s32.totalorder %s14, 0
    %p191 = por %p189, %p190
    %p192 = scmp.ne.s32.totalorder %s181, %s184
    %p193 = scmp.eq.s32.totalorder %s19, 2
    %p194 = por %p192, %p193
    %p195 = scmp.ne.s32.totalorder %s184, %s185
    %p196 = scmp.eq.s32.totalorder %s19, 0
    %p197 = por %p195, %p196
    %p198 = scmp.ne.s32.totalorder %s184, %s185
    %p199 = scmp.eq.s32.totalorder %s20, 2
    %p200 = por %p198, %p199
    %p202 = scmp.ne.s32.totalorder %s185, %s201
    %p203 = scmp.eq.s32.totalorder %s20, 0
    %p204 = por %p202, %p203
    %p205 = scmp.le.s32.totalorder 1, %s14
    %p206 = scmp.lt.s32.totalorder %s14, 4
    %p207 = pnand %p205, %p206
    %p208 = pneg %p207
    // Predicated region
    $region9: #{autoencoder_forward.7} parent=5 // pred_check
      _
    $region10: #{autoencoder_forward.7} parent=5 // pred_check_branch
      %210 = sbr.rel (%p207) target = $region12
    $region11: #{autoencoder_forward.7} parent=5 // pred_region
      %s211 = ssub.s32 %s14, 1
      // Predicated region
      $region13: #{autoencoder_forward.7} parent=11 // pred_check
        %p212 = pneg %p61
      $region14: #{autoencoder_forward.7} parent=11 // pred_check_branch
        %214 = sbr.rel (%p212) target = $region16
      $region15: #{autoencoder_forward.7} parent=11 // pred_region
        _
      $region16: #{autoencoder_forward.7} parent=11 // pred_fallthru
        _
      // Predicated region
      $region17: #{autoencoder_forward.7} parent=11 // pred_check
        %p215 = pneg %p82
      $region18: #{autoencoder_forward.7} parent=11 // pred_check_branch
        %217 = sbr.rel (%p215) target = $region20
      $region19: #{autoencoder_forward.7} parent=11 // pred_region
        _
      $region20: #{autoencoder_forward.7} parent=11 // pred_fallthru
        _
      // Predicated region
      $region21: #{autoencoder_forward.7} parent=11 // pred_check
        %p218 = pneg %p103
      $region22: #{autoencoder_forward.7} parent=11 // pred_check_branch
        %220 = sbr.rel (%p218) target = $region24
      $region23: #{autoencoder_forward.7} parent=11 // pred_region
        _
      $region24: #{autoencoder_forward.7} parent=11 // pred_fallthru
        _
      // Predicated region
      $region25: #{autoencoder_forward.7} parent=11 // pred_check
        %p221 = pneg %p124
      $region26: #{autoencoder_forward.7} parent=11 // pred_check_branch
        %223 = sbr.rel (%p221) target = $region28
      $region27: #{autoencoder_forward.7} parent=11 // pred_region
        _
      $region28: #{autoencoder_forward.7} parent=11 // pred_fallthru
        _
      // Predicated region
      $region29: #{autoencoder_forward.7} parent=11 // pred_check
        %p224 = pneg %p145
      $region30: #{autoencoder_forward.7} parent=11 // pred_check_branch
        %226 = sbr.rel (%p224) target = $region32
      $region31: #{autoencoder_forward.7} parent=11 // pred_region
        _
      $region32: #{autoencoder_forward.7} parent=11 // pred_fallthru
        _
    $region12: #{autoencoder_forward.7} parent=5 // pred_fallthru
      _
    %p227 = scmp.lt.s32.totalorder %s14, 3
    // Predicated region
    $region33: #{autoencoder_forward.7} parent=5 // pred_check
      %p228 = pneg %p227
    $region34: #{autoencoder_forward.7} parent=5 // pred_check_branch
      %230 = sbr.rel (%p228) target = $region36
    $region35: #{autoencoder_forward.7} parent=5 // pred_region
      // Predicated region
      $region37: #{autoencoder_forward.7} parent=35 // pred_check
        %p231 = pneg %p34
      $region38: #{autoencoder_forward.7} parent=35 // pred_check_branch
        %233 = sbr.rel (%p231) target = $region40
      $region39: #{autoencoder_forward.7} parent=35 // pred_region
        %s234 = smul.u32 32, %s14
        %p235 = scmp.lt.s32.totalorder %s234, 95
        %s236 = scalar_select %p235, %s234, 95
        %s237 = smul.addr %s236, 8
        %s238 = scalar_lea.vmem %s0, %s237
        %s239 = smul.u32 32, %s14
      $region40: #{autoencoder_forward.7} parent=35 // pred_fallthru
        _
    $region36: #{autoencoder_forward.7} parent=5 // pred_fallthru
      _
    %p240 = scmp.le.s32.totalorder 1, %s14
    %p241 = scmp.lt.s32.totalorder %s14, 4
    %p242 = pnand %p240, %p241
    %p243 = pneg %p242
    // Predicated region
    $region41: #{autoencoder_forward.7} parent=5 // pred_check
      _
    $region42: #{autoencoder_forward.7} parent=5 // pred_check_branch
      %245 = sbr.rel (%p242) target = $region44
    $region43: #{autoencoder_forward.7} parent=5 // pred_region
      %s246 = ssub.s32 %s14, 1
      %s247 = smul.u32 32, %s19
      %p248 = scmp.lt.s32.totalorder %s247, 95
      %s249 = scalar_select %p248, %s247, 95
      %s250 = smul.addr %s249, 8
      %s251 = scalar_lea.vmem %s0, %s250
      %p252 = pneg %p40
      %p253 = pneg %p37
      %p254 = pneg %p61
      %p255 = pneg %p58
      %p256 = pneg %p82
      %p257 = pneg %p79
      %p258 = pneg %p103
      %p259 = pneg %p100
      %p260 = pneg %p124
      %p261 = pneg %p121
      %p262 = pneg %p145
      %p263 = pneg %p142
      %p264 = pneg %p171
      %p265 = pneg %p168
      %s266 = smul.u32 32, %s19
      %p267 = scmp.lt.s32.totalorder %s266, 95
      %s268 = scalar_select %p267, %s266, 95
      %s269 = smul.addr %s268, 8
      %s270 = scalar_lea.vmem %s6, %s269
      %p271 = pneg %p197
      %p272 = pneg %p194
      %p273 = scmp.lt.s32.totalorder %s19, 2
      %s274 = scalar_select %p273, %s19, 2
      %s275 = smul.addr %s274, 2
      %s276 = scalar_lea.vmem %s7, %s275
      %s277 = smul.u32 32, %s19
      %p278 = scmp.lt.s32.totalorder %s277, 95
      %s279 = scalar_select %p278, %s277, 95
      %s280 = smul.addr %s279, 8
      %s281 = scalar_lea.vmem %s0, %s280
      %s282 = smul.u32 32, %s19
      %s283 = smul.u32 32, %s19
      %p284 = scmp.lt.s32.totalorder %s283, 95
      %s285 = scalar_select %p284, %s283, 95
      %s286 = smul.addr %s285, 8
      %s287 = scalar_lea.vmem %s6, %s286
      %s288 = smul.u32 32, %s19
      %p289 = scmp.lt.s32.totalorder %s19, 2
      %s290 = scalar_select %p289, %s19, 2
      %s291 = smul.addr %s290, 2
      %s292 = scalar_lea.vmem %s7, %s291
      %v294 = vld [vmem:[%s281] sm:$0xff]
      %v295 = vld [vmem:[%s281 + $0x8] sm:$0xff]
      %v296 = vld [vmem:[%s281 + $0x10] sm:$0xff]
      %v297 = vld [vmem:[%s281 + $0x18] sm:$0xff]
      %v298 = vld [vmem:[%s281 + $0x20] sm:$0xff]
      %v299 = vld [vmem:[%s281 + $0x28] sm:$0xff]
      %v300 = vld [vmem:[%s281 + $0x30] sm:$0xff]
      %v301 = vld [vmem:[%s281 + $0x38] sm:$0xff]
      %v302 = vld [vmem:[%s281 + $0x40] sm:$0xff]
      %v303 = vld [vmem:[%s281 + $0x48] sm:$0xff]
      %v304 = vld [vmem:[%s281 + $0x50] sm:$0xff]
      %v305 = vld [vmem:[%s281 + $0x58] sm:$0xff]
      %v306 = vld [vmem:[%s281 + $0x60] sm:$0xff]
      %v307 = vld [vmem:[%s281 + $0x68] sm:$0xff]
      %v308 = vld [vmem:[%s281 + $0x70] sm:$0xff]
      %v309 = vld [vmem:[%s281 + $0x78] sm:$0xff]
      %v310 = vld [vmem:[%s281 + $0x80] sm:$0xff]
      %v311 = vld [vmem:[%s281 + $0x88] sm:$0xff]
      %v312 = vld [vmem:[%s281 + $0x90] sm:$0xff]
      %v313 = vld [vmem:[%s281 + $0x98] sm:$0xff]
      %v314 = vld [vmem:[%s281 + $0xa0] sm:$0xff]
      %v315 = vld [vmem:[%s281 + $0xa8] sm:$0xff]
      %v316 = vld [vmem:[%s281 + $0xb0] sm:$0xff]
      %v317 = vld [vmem:[%s281 + $0xb8] sm:$0xff]
      %v318 = vld [vmem:[%s281 + $0xc0] sm:$0xff]
      %v319 = vld [vmem:[%s281 + $0xc8] sm:$0xff]
      %v320 = vld [vmem:[%s281 + $0xd0] sm:$0xff]
      %v321 = vld [vmem:[%s281 + $0xd8] sm:$0xff]
      %v322 = vld [vmem:[%s281 + $0xe0] sm:$0xff]
      %v323 = vld [vmem:[%s281 + $0xe8] sm:$0xff]
      %v324 = vld [vmem:[%s281 + $0xf0] sm:$0xff]
      %v325 = vld [vmem:[%s281 + $0xf8] sm:$0xff]
      %v326 = vld [vmem:[%s1] sm:$0x1]
      %v328 = vlaneseq
      %v329 = vshrl.u32 %v328, 7
      %v330 = vsub.s32 0, %v329
      %v331 = vrot.slane %v326, %v330
      %v333 = vmul.f32 %v294, %v331
      %v334 = vmul.f32 %v295, %v331
      %v335 = vmul.f32 %v296, %v331
      %v336 = vmul.f32 %v297, %v331
      %v337 = vmul.f32 %v298, %v331
      %v338 = vmul.f32 %v299, %v331
      %v339 = vmul.f32 %v300, %v331
      %v340 = vmul.f32 %v301, %v331
      %v341 = vmul.f32 %v302, %v331
      %v342 = vmul.f32 %v303, %v331
      %v343 = vmul.f32 %v304, %v331
      %v344 = vmul.f32 %v305, %v331
      %v345 = vmul.f32 %v306, %v331
      %v346 = vmul.f32 %v307, %v331
      %v347 = vmul.f32 %v308, %v331
      %v348 = vmul.f32 %v309, %v331
      %v349 = vmul.f32 %v310, %v331
      %v350 = vmul.f32 %v311, %v331
      %v351 = vmul.f32 %v312, %v331
      %v352 = vmul.f32 %v313, %v331
      %v353 = vmul.f32 %v314, %v331
      %v354 = vmul.f32 %v315, %v331
      %v355 = vmul.f32 %v316, %v331
      %v356 = vmul.f32 %v317, %v331
      %v357 = vmul.f32 %v318, %v331
      %v358 = vmul.f32 %v319, %v331
      %v359 = vmul.f32 %v320, %v331
      %v360 = vmul.f32 %v321, %v331
      %v361 = vmul.f32 %v322, %v331
      %v362 = vmul.f32 %v323, %v331
      %v363 = vmul.f32 %v324, %v331
      %v364 = vmul.f32 %v325, %v331
      %v365 = vld [vmem:[%s2] sm:$0x1]
      %v367 = vlaneseq
      %v368 = vshrl.u32 %v367, 7
      %v369 = vsub.s32 0, %v368
      %v370 = vrot.slane %v365, %v369
      %v372 = vadd.f32 %v333, %v370
      %v373 = vadd.f32 %v334, %v370
      %v374 = vadd.f32 %v335, %v370
      %v375 = vadd.f32 %v336, %v370
      %v376 = vadd.f32 %v337, %v370
      %v377 = vadd.f32 %v338, %v370
      %v378 = vadd.f32 %v339, %v370
      %v379 = vadd.f32 %v340, %v370
      %v380 = vadd.f32 %v341, %v370
      %v381 = vadd.f32 %v342, %v370
      %v382 = vadd.f32 %v343, %v370
      %v383 = vadd.f32 %v344, %v370
      %v384 = vadd.f32 %v345, %v370
      %v385 = vadd.f32 %v346, %v370
      %v386 = vadd.f32 %v347, %v370
      %v387 = vadd.f32 %v348, %v370
      %v388 = vadd.f32 %v349, %v370
      %v389 = vadd.f32 %v350, %v370
      %v390 = vadd.f32 %v351, %v370
      %v391 = vadd.f32 %v352, %v370
      %v392 = vadd.f32 %v353, %v370
      %v393 = vadd.f32 %v354, %v370
      %v394 = vadd.f32 %v355, %v370
      %v395 = vadd.f32 %v356, %v370
      %v396 = vadd.f32 %v357, %v370
      %v397 = vadd.f32 %v358, %v370
      %v398 = vadd.f32 %v359, %v370
      %v399 = vadd.f32 %v360, %v370
      %v400 = vadd.f32 %v361, %v370
      %v401 = vadd.f32 %v362, %v370
      %v402 = vadd.f32 %v363, %v370
      %v403 = vadd.f32 %v364, %v370
      %v404 = vmax.f32 %v372, 0.0
      %v405 = vmax.f32 %v373, 0.0
      %v406 = vmax.f32 %v374, 0.0
      %v407 = vmax.f32 %v375, 0.0
      %v408 = vmax.f32 %v376, 0.0
      %v409 = vmax.f32 %v377, 0.0
      %v410 = vmax.f32 %v378, 0.0
      %v411 = vmax.f32 %v379, 0.0
      %v412 = vmax.f32 %v380, 0.0
      %v413 = vmax.f32 %v381, 0.0
      %v414 = vmax.f32 %v382, 0.0
      %v415 = vmax.f32 %v383, 0.0
      %v416 = vmax.f32 %v384, 0.0
      %v417 = vmax.f32 %v385, 0.0
      %v418 = vmax.f32 %v386, 0.0
      %v419 = vmax.f32 %v387, 0.0
      %v420 = vmax.f32 %v388, 0.0
      %v421 = vmax.f32 %v389, 0.0
      %v422 = vmax.f32 %v390, 0.0
      %v423 = vmax.f32 %v391, 0.0
      %v424 = vmax.f32 %v392, 0.0
      %v425 = vmax.f32 %v393, 0.0
      %v426 = vmax.f32 %v394, 0.0
      %v427 = vmax.f32 %v395, 0.0
      %v428 = vmax.f32 %v396, 0.0
      %v429 = vmax.f32 %v397, 0.0
      %v430 = vmax.f32 %v398, 0.0
      %v431 = vmax.f32 %v399, 0.0
      %v432 = vmax.f32 %v400, 0.0
      %v433 = vmax.f32 %v401, 0.0
      %v434 = vmax.f32 %v402, 0.0
      %v435 = vmax.f32 %v403, 0.0
      %v436 = vpack.c.bf16 %v405, %v404
      %v437 = vpack.c.bf16 %v407, %v406
      %v438 = vpack.c.bf16 %v409, %v408
      %v439 = vpack.c.bf16 %v411, %v410
      %v440 = vpack.c.bf16 %v413, %v412
      %v441 = vpack.c.bf16 %v415, %v414
      %v442 = vpack.c.bf16 %v417, %v416
      %v443 = vpack.c.bf16 %v419, %v418
      %v444 = vpack.c.bf16 %v421, %v420
      %v445 = vpack.c.bf16 %v423, %v422
      %v446 = vpack.c.bf16 %v425, %v424
      %v447 = vpack.c.bf16 %v427, %v426
      %v448 = vpack.c.bf16 %v429, %v428
      %v449 = vpack.c.bf16 %v431, %v430
      %v450 = vpack.c.bf16 %v433, %v432
      %v451 = vpack.c.bf16 %v435, %v434
      %v452 = vld [vmem:[%s3] sm:$0xf]
      %v453 = vld [vmem:[%s3 + $0x4] sm:$0xf]
      %v454 = vld [vmem:[%s3 + $0x8] sm:$0xf]
      %v455 = vld [vmem:[%s3 + $0xc] sm:$0xf]
      %v456 = vld [vmem:[%s3 + $0x10] sm:$0xf]
      %v457 = vld [vmem:[%s3 + $0x14] sm:$0xf]
      %v458 = vld [vmem:[%s3 + $0x18] sm:$0xf]
      %v459 = vld [vmem:[%s3 + $0x1c] sm:$0xf]
      %v460 = vld [vmem:[%s4] sm:$0x1]
      %v462 = vlaneseq
      %v463 = vshrl.u32 %v462, 7
      %v464 = vsub.s32 0, %v463
      %v465 = vrot.slane %v460, %v464
      %v475 = vunpack.c.l.b16 %v452
      %v476 = vunpack.c.l.b16 %v453
      %v477 = vunpack.c.l.b16 %v454
      %v478 = vunpack.c.l.b16 %v455
      %v479 = vunpack.c.l.b16 %v456
      %v480 = vunpack.c.l.b16 %v457
      %v481 = vunpack.c.l.b16 %v458
      %v482 = vunpack.c.l.b16 %v459
      %v483 = vpack.c.b16 %v476, %v475
      %v484 = vpack.c.b16 %v478, %v477
      %v485 = vpack.c.b16 %v480, %v479
      %v486 = vpack.c.b16 %v482, %v481
      %vm491 = vcmask 523264
      %v493 = vsel %vm491, %v436, 0
      %v496 = vsel %vm491, %v437, 0
      %v499 = vsel %vm491, %v438, 0
      %v502 = vsel %vm491, %v439, 0
      %v505 = vsel %vm491, %v440, 0
      %v508 = vsel %vm491, %v441, 0
      %v511 = vsel %vm491, %v442, 0
      %v514 = vsel %vm491, %v443, 0
      %v517 = vsel %vm491, %v444, 0
      %v520 = vsel %vm491, %v445, 0
      %v523 = vsel %vm491, %v446, 0
      %v526 = vsel %vm491, %v447, 0
      %v529 = vsel %vm491, %v448, 0
      %v532 = vsel %vm491, %v449, 0
      %v535 = vsel %vm491, %v450, 0
      %v538 = vsel %vm491, %v451, 0
      %540 = vmatprep.subr.bf16.mxu0 0
      %541 = vmatpush1.bf16.msra.mxu0 %v483
      %542 = vmatprep.subr.bf16.mxu0 0
      %543 = vmatpush1.bf16.msra.mxu0 %v484
      %544 = vmatprep.subr.bf16.mxu0 0
      %545 = vmatpush1.bf16.msra.mxu0 %v485
      %546 = vmatprep.subr.bf16.mxu0 0
      %547 = vmatpush1.bf16.msra.mxu0 %v486
      %548 = vmatprep.subr.bf16.mxu0 0
      %549 = vmatpush1.bf16.msra.mxu0 0
      %550 = vmatprep.subr.bf16.mxu0 0
      %551 = vmatpush1.bf16.msra.mxu0 0
      %552 = vmatprep.subr.bf16.mxu0 0
      %553 = vmatpush1.bf16.msra.mxu0 0
      %554 = vmatprep.subr.bf16.mxu0 0
      %555 = vmatpush1.bf16.msra.mxu0 0
      %556 = vmatprep.subr.bf16.mxu0 0
      %557 = vmatpush1.bf16.msra.mxu0 0
      %558 = vmatprep.subr.bf16.mxu0 0
      %559 = vmatpush1.bf16.msra.mxu0 0
      %560 = vmatprep.subr.bf16.mxu0 0
      %561 = vmatpush1.bf16.msra.mxu0 0
      %562 = vmatprep.subr.bf16.mxu0 0
      %563 = vmatpush1.bf16.msra.mxu0 0
      %564 = vmatprep.subr.bf16.mxu0 0
      %565 = vmatpush1.bf16.msra.mxu0 0
      %566 = vmatprep.subr.bf16.mxu0 0
      %567 = vmatpush1.bf16.msra.mxu0 0
      %568 = vmatprep.subr.bf16.mxu0 0
      %569 = vmatpush1.bf16.msra.mxu0 0
      %570 = vmatprep.subr.bf16.mxu0 0
      %571 = vmatpush1.bf16.msra.mxu0 0
      %572 = vmatprep.mubr.bf16.mxu0 0
      %573 = vmatmul.mubr.bf16.gmra.mrb[0].mxu0 %v493
      %v574 = vpop.f32.mrb[0].mxu0
      %v575 = vadd.f32 %v465, %v574
      %v576 = vpop.f32.mrb[0].mxu0
      %v577 = vpop.f32.mrb[0].mxu0
      %v578 = vadd.f32 %v465, %v577
      %v579 = vpop.f32.mrb[0].mxu0
      %580 = vmatprep.mubr.bf16.mxu0 0
      %581 = vmatmul.mubr.bf16.gmra.mrb[0].mxu0 %v496
      %v582 = vpop.f32.mrb[0].mxu0
      %v583 = vadd.f32 %v465, %v582
      %v584 = vpop.f32.mrb[0].mxu0
      %v585 = vpop.f32.mrb[0].mxu0
      %v586 = vadd.f32 %v465, %v585
      %v587 = vpop.f32.mrb[0].mxu0
      %588 = vmatprep.mubr.bf16.mxu0 0
      %589 = vmatmul.mubr.bf16.gmra.mrb[0].mxu0 %v499
      %v590 = vpop.f32.mrb[0].mxu0
      %v591 = vadd.f32 %v465, %v590
      %v592 = vpop.f32.mrb[0].mxu0
      %v593 = vpop.f32.mrb[0].mxu0
      %v594 = vadd.f32 %v465, %v593
      %v595 = vpop.f32.mrb[0].mxu0
      %596 = vmatprep.mubr.bf16.mxu0 0
      %597 = vmatmul.mubr.bf16.gmra.mrb[0].mxu0 %v502
      %v598 = vpop.f32.mrb[0].mxu0
      %v599 = vadd.f32 %v465, %v598
      %v600 = vpop.f32.mrb[0].mxu0
      %v601 = vpop.f32.mrb[0].mxu0
      %v602 = vadd.f32 %v465, %v601
      %v603 = vpop.f32.mrb[0].mxu0
      %604 = vmatprep.mubr.bf16.mxu0 0
      %605 = vmatmul.mubr.bf16.gmra.mrb[0].mxu0 %v505
      %v606 = vpop.f32.mrb[0].mxu0
      %v607 = vadd.f32 %v465, %v606
      %v608 = vpop.f32.mrb[0].mxu0
      %v609 = vpop.f32.mrb[0].mxu0
      %v610 = vadd.f32 %v465, %v609
      %v611 = vpop.f32.mrb[0].mxu0
      %612 = vmatprep.mubr.bf16.mxu0 0
      %613 = vmatmul.mubr.bf16.gmra.mrb[0].mxu0 %v508
      %v614 = vpop.f32.mrb[0].mxu0
      %v615 = vadd.f32 %v465, %v614
      %v616 = vpop.f32.mrb[0].mxu0
      %v617 = vpop.f32.mrb[0].mxu0
      %v618 = vadd.f32 %v465, %v617
      %v619 = vpop.f32.mrb[0].mxu0
      %620 = vmatprep.mubr.bf16.mxu0 0
      %621 = vmatmul.mubr.bf16.gmra.mrb[0].mxu0 %v511
      %v622 = vpop.f32.mrb[0].mxu0
      %v623 = vadd.f32 %v465, %v622
      %v624 = vpop.f32.mrb[0].mxu0
      %v625 = vpop.f32.mrb[0].mxu0
      %v626 = vadd.f32 %v465, %v625
      %v627 = vpop.f32.mrb[0].mxu0
      %628 = vmatprep.mubr.bf16.mxu0 0
      %629 = vmatmul.mubr.bf16.gmra.mrb[0].mxu0 %v514
      %v630 = vpop.f32.mrb[0].mxu0
      %v631 = vadd.f32 %v465, %v630
      %v632 = vpop.f32.mrb[0].mxu0
      %v633 = vpop.f32.mrb[0].mxu0
      %v634 = vadd.f32 %v465, %v633
      %v635 = vpop.f32.mrb[0].mxu0
      %636 = vmatprep.mubr.bf16.mxu0 0
      %637 = vmatmul.mubr.bf16.gmra.mrb[0].mxu0 %v517
      %v638 = vpop.f32.mrb[0].mxu0
      %v639 = vadd.f32 %v465, %v638
      %v640 = vpop.f32.mrb[0].mxu0
      %v641 = vpop.f32.mrb[0].mxu0
      %v642 = vadd.f32 %v465, %v641
      %v643 = vpop.f32.mrb[0].mxu0
      %644 = vmatprep.mubr.bf16.mxu0 0
      %645 = vmatmul.mubr.bf16.gmra.mrb[0].mxu0 %v520
      %v646 = vpop.f32.mrb[0].mxu0
      %v647 = vadd.f32 %v465, %v646
      %v648 = vpop.f32.mrb[0].mxu0
      %v649 = vpop.f32.mrb[0].mxu0
      %v650 = vadd.f32 %v465, %v649
      %v651 = vpop.f32.mrb[0].mxu0
      %652 = vmatprep.mubr.bf16.mxu0 0
      %653 = vmatmul.mubr.bf16.gmra.mrb[0].mxu0 %v523
      %v654 = vpop.f32.mrb[0].mxu0
      %v655 = vadd.f32 %v465, %v654
      %v656 = vpop.f32.mrb[0].mxu0
      %v657 = vpop.f32.mrb[0].mxu0
      %v658 = vadd.f32 %v465, %v657
      %v659 = vpop.f32.mrb[0].mxu0
      %660 = vmatprep.mubr.bf16.mxu0 0
      %661 = vmatmul.mubr.bf16.gmra.mrb[0].mxu0 %v526
      %v662 = vpop.f32.mrb[0].mxu0
      %v663 = vadd.f32 %v465, %v662
      %v664 = vpop.f32.mrb[0].mxu0
      %v665 = vpop.f32.mrb[0].mxu0
      %v666 = vadd.f32 %v465, %v665
      %v667 = vpop.f32.mrb[0].mxu0
      %668 = vmatprep.mubr.bf16.mxu0 0
      %669 = vmatmul.mubr.bf16.gmra.mrb[0].mxu0 %v529
      %v670 = vpop.f32.mrb[0].mxu0
      %v671 = vadd.f32 %v465, %v670
      %v672 = vpop.f32.mrb[0].mxu0
      %v673 = vpop.f32.mrb[0].mxu0
      %v674 = vadd.f32 %v465, %v673
      %v675 = vpop.f32.mrb[0].mxu0
      %676 = vmatprep.mubr.bf16.mxu0 0
      %677 = vmatmul.mubr.bf16.gmra.mrb[0].mxu0 %v532
      %v678 = vpop.f32.mrb[0].mxu0
      %v679 = vadd.f32 %v465, %v678
      %v680 = vpop.f32.mrb[0].mxu0
      %v681 = vpop.f32.mrb[0].mxu0
      %v682 = vadd.f32 %v465, %v681
      %v683 = vpop.f32.mrb[0].mxu0
      %684 = vmatprep.mubr.bf16.mxu0 0
      %685 = vmatmul.mubr.bf16.gmra.mrb[0].mxu0 %v535
      %v686 = vpop.f32.mrb[0].mxu0
      %v687 = vadd.f32 %v465, %v686
      %v688 = vpop.f32.mrb[0].mxu0
      %v689 = vpop.f32.mrb[0].mxu0
      %v690 = vadd.f32 %v465, %v689
      %v691 = vpop.f32.mrb[0].mxu0
      %692 = vmatprep.mubr.bf16.mxu0 0
      %693 = vmatmul.mubr.bf16.gmra.mrb[0].mxu0 %v538
      %v694 = vpop.f32.mrb[0].mxu0
      %v695 = vadd.f32 %v465, %v694
      %v696 = vpop.f32.mrb[0].mxu0
      %v697 = vpop.f32.mrb[0].mxu0
      %v698 = vadd.f32 %v465, %v697
      %v699 = vpop.f32.mrb[0].mxu0
      %700 = vdwg.mxu0
      %v701 = vpack.c.bf16 %v578, %v575
      %v702 = vpack.c.bf16 %v586, %v583
      %v703 = vpack.c.bf16 %v594, %v591
      %v704 = vpack.c.bf16 %v602, %v599
      %v705 = vpack.c.bf16 %v610, %v607
      %v706 = vpack.c.bf16 %v618, %v615
      %v707 = vpack.c.bf16 %v626, %v623
      %v708 = vpack.c.bf16 %v634, %v631
      %v709 = vpack.c.bf16 %v642, %v639
      %v710 = vpack.c.bf16 %v650, %v647
      %v711 = vpack.c.bf16 %v658, %v655
      %v712 = vpack.c.bf16 %v666, %v663
      %v713 = vpack.c.bf16 %v674, %v671
      %v714 = vpack.c.bf16 %v682, %v679
      %v715 = vpack.c.bf16 %v690, %v687
      %v716 = vpack.c.bf16 %v698, %v695
      %v717 = vld [vmem:[%s5] sm:$0xf]
      %v718 = vld [vmem:[%s5 + $0x4] sm:$0x1]
      %v721 = vunpack.c.l.b16 %v717
      %v722 = vunpack.c.l.b16 %v718
      %v723 = vpack.c.b16 %v722, %v721
      %vm724 = vcmask 80896
      %v726 = vsel %vm724, %v701, 0
      %v729 = vsel %vm724, %v702, 0
      %v732 = vsel %vm724, %v703, 0
      %v735 = vsel %vm724, %v704, 0
      %v738 = vsel %vm724, %v705, 0
      %v741 = vsel %vm724, %v706, 0
      %v744 = vsel %vm724, %v707, 0
      %v747 = vsel %vm724, %v708, 0
      %v750 = vsel %vm724, %v709, 0
      %v753 = vsel %vm724, %v710, 0
      %v756 = vsel %vm724, %v711, 0
      %v759 = vsel %vm724, %v712, 0
      %v762 = vsel %vm724, %v713, 0
      %v765 = vsel %vm724, %v714, 0
      %v768 = vsel %vm724, %v715, 0
      %v771 = vsel %vm724, %v716, 0
      %vm773 = vcmask 1044480
      %v775 = vsel %vm773, %v723, 0
      %777 = vmatprep.subr.bf16.mxu0 0
      %778 = vmatpush1.bf16.msra.mxu0 %v775
      %779 = vmatprep.subr.bf16.mxu0 0
      %780 = vmatpush1.bf16.msra.mxu0 0
      %781 = vmatprep.subr.bf16.mxu0 0
      %782 = vmatpush1.bf16.msra.mxu0 0
      %783 = vmatprep.subr.bf16.mxu0 0
      %784 = vmatpush1.bf16.msra.mxu0 0
      %785 = vmatprep.subr.bf16.mxu0 0
      %786 = vmatpush1.bf16.msra.mxu0 0
      %787 = vmatprep.subr.bf16.mxu0 0
      %788 = vmatpush1.bf16.msra.mxu0 0
      %789 = vmatprep.subr.bf16.mxu0 0
      %790 = vmatpush1.bf16.msra.mxu0 0
      %791 = vmatprep.subr.bf16.mxu0 0
      %792 = vmatpush1.bf16.msra.mxu0 0
      %793 = vmatprep.subr.bf16.mxu0 0
      %794 = vmatpush1.bf16.msra.mxu0 0
      %795 = vmatprep.subr.bf16.mxu0 0
      %796 = vmatpush1.bf16.msra.mxu0 0
      %797 = vmatprep.subr.bf16.mxu0 0
      %798 = vmatpush1.bf16.msra.mxu0 0
      %799 = vmatprep.subr.bf16.mxu0 0
      %800 = vmatpush1.bf16.msra.mxu0 0
      %801 = vmatprep.subr.bf16.mxu0 0
      %802 = vmatpush1.bf16.msra.mxu0 0
      %803 = vmatprep.subr.bf16.mxu0 0
      %804 = vmatpush1.bf16.msra.mxu0 0
      %805 = vmatprep.subr.bf16.mxu0 0
      %806 = vmatpush1.bf16.msra.mxu0 0
      %807 = vmatprep.subr.bf16.mxu0 0
      %808 = vmatpush1.bf16.msra.mxu0 0
      %809 = vmatprep.mubr.bf16.mxu0 0
      %810 = vmatmul.mubr.bf16.gmra.mrb[0].mxu0 %v726
      %v811 = vpop.f32.mrb[0].mxu0
      %v812 = vadd.f32 0.0, %v811
      %v813 = vpop.f32.mrb[0].mxu0
      %v814 = vpop.f32.mrb[0].mxu0
      %v815 = vadd.f32 0.0, %v814
      %v816 = vpop.f32.mrb[0].mxu0
      %817 = vmatprep.mubr.bf16.mxu0 0
      %818 = vmatmul.mubr.bf16.gmra.mrb[0].mxu0 %v729
      %v819 = vpop.f32.mrb[0].mxu0
      %v820 = vadd.f32 0.0, %v819
      %v821 = vpop.f32.mrb[0].mxu0
      %v822 = vpop.f32.mrb[0].mxu0
      %v823 = vadd.f32 0.0, %v822
      %v824 = vpop.f32.mrb[0].mxu0
      %825 = vmatprep.mubr.bf16.mxu0 0
      %826 = vmatmul.mubr.bf16.gmra.mrb[0].mxu0 %v732
      %v827 = vpop.f32.mrb[0].mxu0
      %v828 = vadd.f32 0.0, %v827
      %v829 = vpop.f32.mrb[0].mxu0
      %v830 = vpop.f32.mrb[0].mxu0
      %v831 = vadd.f32 0.0, %v830
      %v832 = vpop.f32.mrb[0].mxu0
      %833 = vmatprep.mubr.bf16.mxu0 0
      %834 = vmatmul.mubr.bf16.gmra.mrb[0].mxu0 %v735
      %v835 = vpop.f32.mrb[0].mxu0
      %v836 = vadd.f32 0.0, %v835
      %v837 = vpop.f32.mrb[0].mxu0
      %v838 = vpop.f32.mrb[0].mxu0
      %v839 = vadd.f32 0.0, %v838
      %v840 = vpop.f32.mrb[0].mxu0
      %841 = vmatprep.mubr.bf16.mxu0 0
      %842 = vmatmul.mubr.bf16.gmra.mrb[0].mxu0 %v738
      %v843 = vpop.f32.mrb[0].mxu0
      %v844 = vadd.f32 0.0, %v843
      %v845 = vpop.f32.mrb[0].mxu0
      %v846 = vpop.f32.mrb[0].mxu0
      %v847 = vadd.f32 0.0, %v846
      %v848 = vpop.f32.mrb[0].mxu0
      %849 = vmatprep.mubr.bf16.mxu0 0
      %850 = vmatmul.mubr.bf16.gmra.mrb[0].mxu0 %v741
      %v851 = vpop.f32.mrb[0].mxu0
      %v852 = vadd.f32 0.0, %v851
      %v853 = vpop.f32.mrb[0].mxu0
      %v854 = vpop.f32.mrb[0].mxu0
      %v855 = vadd.f32 0.0, %v854
      %v856 = vpop.f32.mrb[0].mxu0
      %857 = vmatprep.mubr.bf16.mxu0 0
      %858 = vmatmul.mubr.bf16.gmra.mrb[0].mxu0 %v744
      %v859 = vpop.f32.mrb[0].mxu0
      %v860 = vadd.f32 0.0, %v859
      %v861 = vpop.f32.mrb[0].mxu0
      %v862 = vpop.f32.mrb[0].mxu0
      %v863 = vadd.f32 0.0, %v862
      %v864 = vpop.f32.mrb[0].mxu0
      %865 = vmatprep.mubr.bf16.mxu0 0
      %866 = vmatmul.mubr.bf16.gmra.mrb[0].mxu0 %v747
      %v867 = vpop.f32.mrb[0].mxu0
      %v868 = vadd.f32 0.0, %v867
      %v869 = vpop.f32.mrb[0].mxu0
      %v870 = vpop.f32.mrb[0].mxu0
      %v871 = vadd.f32 0.0, %v870
      %v872 = vpop.f32.mrb[0].mxu0
      %873 = vmatprep.mubr.bf16.mxu0 0
      %874 = vmatmul.mubr.bf16.gmra.mrb[0].mxu0 %v750
      %v875 = vpop.f32.mrb[0].mxu0
      %v876 = vadd.f32 0.0, %v875
      %v877 = vpop.f32.mrb[0].mxu0
      %v878 = vpop.f32.mrb[0].mxu0
      %v879 = vadd.f32 0.0, %v878
      %v880 = vpop.f32.mrb[0].mxu0
      %881 = vmatprep.mubr.bf16.mxu0 0
      %882 = vmatmul.mubr.bf16.gmra.mrb[0].mxu0 %v753
      %v883 = vpop.f32.mrb[0].mxu0
      %v884 = vadd.f32 0.0, %v883
      %v885 = vpop.f32.mrb[0].mxu0
      %v886 = vpop.f32.mrb[0].mxu0
      %v887 = vadd.f32 0.0, %v886
      %v888 = vpop.f32.mrb[0].mxu0
      %889 = vmatprep.mubr.bf16.mxu0 0
      %890 = vmatmul.mubr.bf16.gmra.mrb[0].mxu0 %v756
      %v891 = vpop.f32.mrb[0].mxu0
      %v892 = vadd.f32 0.0, %v891
      %v893 = vpop.f32.mrb[0].mxu0
      %v894 = vpop.f32.mrb[0].mxu0
      %v895 = vadd.f32 0.0, %v894
      %v896 = vpop.f32.mrb[0].mxu0
      %897 = vmatprep.mubr.bf16.mxu0 0
      %898 = vmatmul.mubr.bf16.gmra.mrb[0].mxu0 %v759
      %v899 = vpop.f32.mrb[0].mxu0
      %v900 = vadd.f32 0.0, %v899
      %v901 = vpop.f32.mrb[0].mxu0
      %v902 = vpop.f32.mrb[0].mxu0
      %v903 = vadd.f32 0.0, %v902
      %v904 = vpop.f32.mrb[0].mxu0
      %905 = vmatprep.mubr.bf16.mxu0 0
      %906 = vmatmul.mubr.bf16.gmra.mrb[0].mxu0 %v762
      %v907 = vpop.f32.mrb[0].mxu0
      %v908 = vadd.f32 0.0, %v907
      %v909 = vpop.f32.mrb[0].mxu0
      %v910 = vpop.f32.mrb[0].mxu0
      %v911 = vadd.f32 0.0, %v910
      %v912 = vpop.f32.mrb[0].mxu0
      %913 = vmatprep.mubr.bf16.mxu0 0
      %914 = vmatmul.mubr.bf16.gmra.mrb[0].mxu0 %v765
      %v915 = vpop.f32.mrb[0].mxu0
      %v916 = vadd.f32 0.0, %v915
      %v917 = vpop.f32.mrb[0].mxu0
      %v918 = vpop.f32.mrb[0].mxu0
      %v919 = vadd.f32 0.0, %v918
      %v920 = vpop.f32.mrb[0].mxu0
      %921 = vmatprep.mubr.bf16.mxu0 0
      %922 = vmatmul.mubr.bf16.gmra.mrb[0].mxu0 %v768
      %v923 = vpop.f32.mrb[0].mxu0
      %v924 = vadd.f32 0.0, %v923
      %v925 = vpop.f32.mrb[0].mxu0
      %v926 = vpop.f32.mrb[0].mxu0
      %v927 = vadd.f32 0.0, %v926
      %v928 = vpop.f32.mrb[0].mxu0
      %929 = vmatprep.mubr.bf16.mxu0 0
      %930 = vmatmul.mubr.bf16.gmra.mrb[0].mxu0 %v771
      %v931 = vpop.f32.mrb[0].mxu0
      %v932 = vadd.f32 0.0, %v931
      %v933 = vpop.f32.mrb[0].mxu0
      %v934 = vpop.f32.mrb[0].mxu0
      %v935 = vadd.f32 0.0, %v934
      %v936 = vpop.f32.mrb[0].mxu0
      %937 = vdwg.mxu0
      %vm938 = vcmask 261120
      %939 = vst.msk [vmem:[%s287] sm:$0xff] %vm938, %v812
      %940 = vst.msk [vmem:[%s287 + $0x8] sm:$0xff] %vm938, %v815
      %941 = vst.msk [vmem:[%s287 + $0x10] sm:$0xff] %vm938, %v820
      %942 = vst.msk [vmem:[%s287 + $0x18] sm:$0xff] %vm938, %v823
      %943 = vst.msk [vmem:[%s287 + $0x20] sm:$0xff] %vm938, %v828
      %944 = vst.msk [vmem:[%s287 + $0x28] sm:$0xff] %vm938, %v831
      %945 = vst.msk [vmem:[%s287 + $0x30] sm:$0xff] %vm938, %v836
      %946 = vst.msk [vmem:[%s287 + $0x38] sm:$0xff] %vm938, %v839
      %947 = vst.msk [vmem:[%s287 + $0x40] sm:$0xff] %vm938, %v844
      %948 = vst.msk [vmem:[%s287 + $0x48] sm:$0xff] %vm938, %v847
      %949 = vst.msk [vmem:[%s287 + $0x50] sm:$0xff] %vm938, %v852
      %950 = vst.msk [vmem:[%s287 + $0x58] sm:$0xff] %vm938, %v855
      %951 = vst.msk [vmem:[%s287 + $0x60] sm:$0xff] %vm938, %v860
      %952 = vst.msk [vmem:[%s287 + $0x68] sm:$0xff] %vm938, %v863
      %953 = vst.msk [vmem:[%s287 + $0x70] sm:$0xff] %vm938, %v868
      %954 = vst.msk [vmem:[%s287 + $0x78] sm:$0xff] %vm938, %v871
      %955 = vst.msk [vmem:[%s287 + $0x80] sm:$0xff] %vm938, %v876
      %956 = vst.msk [vmem:[%s287 + $0x88] sm:$0xff] %vm938, %v879
      %957 = vst.msk [vmem:[%s287 + $0x90] sm:$0xff] %vm938, %v884
      %958 = vst.msk [vmem:[%s287 + $0x98] sm:$0xff] %vm938, %v887
      %959 = vst.msk [vmem:[%s287 + $0xa0] sm:$0xff] %vm938, %v892
      %960 = vst.msk [vmem:[%s287 + $0xa8] sm:$0xff] %vm938, %v895
      %961 = vst.msk [vmem:[%s287 + $0xb0] sm:$0xff] %vm938, %v900
      %962 = vst.msk [vmem:[%s287 + $0xb8] sm:$0xff] %vm938, %v903
      %963 = vst.msk [vmem:[%s287 + $0xc0] sm:$0xff] %vm938, %v908
      %964 = vst.msk [vmem:[%s287 + $0xc8] sm:$0xff] %vm938, %v911
      %965 = vst.msk [vmem:[%s287 + $0xd0] sm:$0xff] %vm938, %v916
      %966 = vst.msk [vmem:[%s287 + $0xd8] sm:$0xff] %vm938, %v919
      %967 = vst.msk [vmem:[%s287 + $0xe0] sm:$0xff] %vm938, %v924
      %968 = vst.msk [vmem:[%s287 + $0xe8] sm:$0xff] %vm938, %v927
      %969 = vst.msk [vmem:[%s287 + $0xf0] sm:$0xff] %vm938, %v932
      %970 = vst.msk [vmem:[%s287 + $0xf8] sm:$0xff] %vm938, %v935
      %v971 = vsel %vm938, %v812, 0.0
      %v972 = vsel %vm938, %v815, 0.0
      %v973 = vadd.f32 %v971, %v972
      %v974 = vsel %vm938, %v820, 0.0
      %v975 = vadd.f32 %v973, %v974
      %v976 = vsel %vm938, %v823, 0.0
      %v977 = vadd.f32 %v975, %v976
      %v978 = vsel %vm938, %v828, 0.0
      %v979 = vadd.f32 %v977, %v978
      %v980 = vsel %vm938, %v831, 0.0
      %v981 = vadd.f32 %v979, %v980
      %v982 = vsel %vm938, %v836, 0.0
      %v983 = vadd.f32 %v981, %v982
      %v984 = vsel %vm938, %v839, 0.0
      %v985 = vadd.f32 %v983, %v984
      %v986 = vsel %vm938, %v844, 0.0
      %v987 = vadd.f32 %v985, %v986
      %v988 = vsel %vm938, %v847, 0.0
      %v989 = vadd.f32 %v987, %v988
      %v990 = vsel %vm938, %v852, 0.0
      %v991 = vadd.f32 %v989, %v990
      %v992 = vsel %vm938, %v855, 0.0
      %v993 = vadd.f32 %v991, %v992
      %v994 = vsel %vm938, %v860, 0.0
      %v995 = vadd.f32 %v993, %v994
      %v996 = vsel %vm938, %v863, 0.0
      %v997 = vadd.f32 %v995, %v996
      %v998 = vsel %vm938, %v868, 0.0
      %v999 = vadd.f32 %v997, %v998
      %v1000 = vsel %vm938, %v871, 0.0
      %v1001 = vadd.f32 %v999, %v1000
      %v1002 = vsel %vm938, %v876, 0.0
      %v1003 = vadd.f32 %v1001, %v1002
      %v1004 = vsel %vm938, %v879, 0.0
      %v1005 = vadd.f32 %v1003, %v1004
      %v1006 = vsel %vm938, %v884, 0.0
      %v1007 = vadd.f32 %v1005, %v1006
      %v1008 = vsel %vm938, %v887, 0.0
      %v1009 = vadd.f32 %v1007, %v1008
      %v1010 = vsel %vm938, %v892, 0.0
      %v1011 = vadd.f32 %v1009, %v1010
      %v1012 = vsel %vm938, %v895, 0.0
      %v1013 = vadd.f32 %v1011, %v1012
      %v1014 = vsel %vm938, %v900, 0.0
      %v1015 = vadd.f32 %v1013, %v1014
      %v1016 = vsel %vm938, %v903, 0.0
      %v1017 = vadd.f32 %v1015, %v1016
      %v1018 = vsel %vm938, %v908, 0.0
      %v1019 = vadd.f32 %v1017, %v1018
      %v1020 = vsel %vm938, %v911, 0.0
      %v1021 = vadd.f32 %v1019, %v1020
      %v1022 = vsel %vm938, %v916, 0.0
      %v1023 = vadd.f32 %v1021, %v1022
      %v1024 = vsel %vm938, %v919, 0.0
      %v1025 = vadd.f32 %v1023, %v1024
      %v1026 = vsel %vm938, %v924, 0.0
      %v1027 = vadd.f32 %v1025, %v1026
      %v1028 = vsel %vm938, %v927, 0.0
      %v1029 = vadd.f32 %v1027, %v1028
      %v1030 = vsel %vm938, %v932, 0.0
      %v1031 = vadd.f32 %v1029, %v1030
      %v1032 = vsel %vm938, %v935, 0.0
      %v1033 = vadd.f32 %v1031, %v1032
      %v1034 = vrot.slane %v1033, 4
      %v1035 = vadd.f32 %v1033, %v1034
      %v1036 = vrot.slane %v1035, 2
      %v1037 = vadd.f32 %v1035, %v1036
      %v1038 = vrot.slane %v1037, 1
      %v1039 = vadd.f32 %v1037, %v1038
      %vm1040 = vcmask 253952
      %1041 = vst.msk [vmem:[%s292] sm:$0x1] %vm1040, %v1039
      %v1042 = vmul.f32 %v812, %v812
      %v1043 = vmul.f32 %v815, %v815
      %v1044 = vmul.f32 %v820, %v820
      %v1045 = vmul.f32 %v823, %v823
      %v1046 = vmul.f32 %v828, %v828
      %v1047 = vmul.f32 %v831, %v831
      %v1048 = vmul.f32 %v836, %v836
      %v1049 = vmul.f32 %v839, %v839
      %v1050 = vmul.f32 %v844, %v844
      %v1051 = vmul.f32 %v847, %v847
      %v1052 = vmul.f32 %v852, %v852
      %v1053 = vmul.f32 %v855, %v855
      %v1054 = vmul.f32 %v860, %v860
      %v1055 = vmul.f32 %v863, %v863
      %v1056 = vmul.f32 %v868, %v868
      %v1057 = vmul.f32 %v871, %v871
      %v1058 = vmul.f32 %v876, %v876
      %v1059 = vmul.f32 %v879, %v879
      %v1060 = vmul.f32 %v884, %v884
      %v1061 = vmul.f32 %v887, %v887
      %v1062 = vmul.f32 %v892, %v892
      %v1063 = vmul.f32 %v895, %v895
      %v1064 = vmul.f32 %v900, %v900
      %v1065 = vmul.f32 %v903, %v903
      %v1066 = vmul.f32 %v908, %v908
      %v1067 = vmul.f32 %v911, %v911
      %v1068 = vmul.f32 %v916, %v916
      %v1069 = vmul.f32 %v919, %v919
      %v1070 = vmul.f32 %v924, %v924
      %v1071 = vmul.f32 %v927, %v927
      %v1072 = vmul.f32 %v932, %v932
      %v1073 = vmul.f32 %v935, %v935
      %v1074 = vsel %vm938, %v1042, 0.0
      %v1075 = vsel %vm938, %v1043, 0.0
      %v1076 = vadd.f32 %v1074, %v1075
      %v1077 = vsel %vm938, %v1044, 0.0
      %v1078 = vadd.f32 %v1076, %v1077
      %v1079 = vsel %vm938, %v1045, 0.0
      %v1080 = vadd.f32 %v1078, %v1079
      %v1081 = vsel %vm938, %v1046, 0.0
      %v1082 = vadd.f32 %v1080, %v1081
      %v1083 = vsel %vm938, %v1047, 0.0
      %v1084 = vadd.f32 %v1082, %v1083
      %v1085 = vsel %vm938, %v1048, 0.0
      %v1086 = vadd.f32 %v1084, %v1085
      %v1087 = vsel %vm938, %v1049, 0.0
      %v1088 = vadd.f32 %v1086, %v1087
      %v1089 = vsel %vm938, %v1050, 0.0
      %v1090 = vadd.f32 %v1088, %v1089
      %v1091 = vsel %vm938, %v1051, 0.0
      %v1092 = vadd.f32 %v1090, %v1091
      %v1093 = vsel %vm938, %v1052, 0.0
      %v1094 = vadd.f32 %v1092, %v1093
      %v1095 = vsel %vm938, %v1053, 0.0
      %v1096 = vadd.f32 %v1094, %v1095
      %v1097 = vsel %vm938, %v1054, 0.0
      %v1098 = vadd.f32 %v1096, %v1097
      %v1099 = vsel %vm938, %v1055, 0.0
      %v1100 = vadd.f32 %v1098, %v1099
      %v1101 = vsel %vm938, %v1056, 0.0
      %v1102 = vadd.f32 %v1100, %v1101
      %v1103 = vsel %vm938, %v1057, 0.0
      %v1104 = vadd.f32 %v1102, %v1103
      %v1105 = vsel %vm938, %v1058, 0.0
      %v1106 = vadd.f32 %v1104, %v1105
      %v1107 = vsel %vm938, %v1059, 0.0
      %v1108 = vadd.f32 %v1106, %v1107
      %v1109 = vsel %vm938, %v1060, 0.0
      %v1110 = vadd.f32 %v1108, %v1109
      %v1111 = vsel %vm938, %v1061, 0.0
      %v1112 = vadd.f32 %v1110, %v1111
      %v1113 = vsel %vm938, %v1062, 0.0
      %v1114 = vadd.f32 %v1112, %v1113
      %v1115 = vsel %vm938, %v1063, 0.0
      %v1116 = vadd.f32 %v1114, %v1115
      %v1117 = vsel %vm938, %v1064, 0.0
      %v1118 = vadd.f32 %v1116, %v1117
      %v1119 = vsel %vm938, %v1065, 0.0
      %v1120 = vadd.f32 %v1118, %v1119
      %v1121 = vsel %vm938, %v1066, 0.0
      %v1122 = vadd.f32 %v1120, %v1121
      %v1123 = vsel %vm938, %v1067, 0.0
      %v1124 = vadd.f32 %v1122, %v1123
      %v1125 = vsel %vm938, %v1068, 0.0
      %v1126 = vadd.f32 %v1124, %v1125
      %v1127 = vsel %vm938, %v1069, 0.0
      %v1128 = vadd.f32 %v1126, %v1127
      %v1129 = vsel %vm938, %v1070, 0.0
      %v1130 = vadd.f32 %v1128, %v1129
      %v1131 = vsel %vm938, %v1071, 0.0
      %v1132 = vadd.f32 %v1130, %v1131
      %v1133 = vsel %vm938, %v1072, 0.0
      %v1134 = vadd.f32 %v1132, %v1133
      %v1135 = vsel %vm938, %v1073, 0.0
      %v1136 = vadd.f32 %v1134, %v1135
      %v1137 = vrot.slane %v1136, 4
      %v1138 = vadd.f32 %v1136, %v1137
      %v1139 = vrot.slane %v1138, 2
      %v1140 = vadd.f32 %v1138, %v1139
      %v1141 = vrot.slane %v1140, 1
      %v1142 = vadd.f32 %v1140, %v1141
      %1143 = vst.msk [vmem:[%s292 + $0x1] sm:$0x1] %vm1040, %v1142
      %s1144 = smul.u32 32, %s19
      %p1145 = scmp.lt.s32.totalorder %s1144, 95
      %s1146 = scalar_select %p1145, %s1144, 95
      %s1147 = smul.addr %s1146, 8
      %s1148 = scalar_lea.vmem %s6, %s1147
      %p1149 = scmp.lt.s32.totalorder %s19, 2
      %s1150 = scalar_select %p1149, %s19, 2
      %s1151 = smul.addr %s1150, 2
      %s1152 = scalar_lea.vmem %s7, %s1151
      // Predicated region
      $region45: #{autoencoder_forward.7} parent=43 // pred_check
        %p1153 = pneg %p168
      $region46: #{autoencoder_forward.7} parent=43 // pred_check_branch
        %1155 = sbr.rel (%p1153) target = $region48
      $region47: #{autoencoder_forward.7} parent=43 // pred_region
        %s1156 = smul.u32 32, %s19
      $region48: #{autoencoder_forward.7} parent=43 // pred_fallthru
        _
      // Predicated region
      $region49: #{autoencoder_forward.7} parent=43 // pred_check
        %p1157 = pneg %p194
      $region50: #{autoencoder_forward.7} parent=43 // pred_check_branch
        %1159 = sbr.rel (%p1157) target = $region52
      $region51: #{autoencoder_forward.7} parent=43 // pred_region
        _
      $region52: #{autoencoder_forward.7} parent=43 // pred_fallthru
        _
    $region44: #{autoencoder_forward.7} parent=5 // pred_fallthru
      _
    %p1160 = scmp.le.s32.totalorder 2, %s14
    // Predicated region
    $region53: #{autoencoder_forward.7} parent=5 // pred_check
      %p1161 = pneg %p1160
    $region54: #{autoencoder_forward.7} parent=5 // pred_check_branch
      %1163 = sbr.rel (%p1161) target = $region56
    $region55: #{autoencoder_forward.7} parent=5 // pred_region
      %s1164 = ssub.s32 %s14, 2
      // Predicated region
      $region57: #{autoencoder_forward.7} parent=55 // pred_check
        %p1165 = pneg %p174
      $region58: #{autoencoder_forward.7} parent=55 // pred_check_branch
        %1167 = sbr.rel (%p1165) target = $region60
      $region59: #{autoencoder_forward.7} parent=55 // pred_region
        %s1168 = smul.u32 32, %s20
        %p1169 = scmp.lt.s32.totalorder %s1168, 95
        %s1170 = scalar_select %p1169, %s1168, 95
        %s1171 = smul.addr %s1170, 8
        %s1172 = scalar_lea.vmem %s6, %s1171
      $region60: #{autoencoder_forward.7} parent=55 // pred_fallthru
        _
      // Predicated region
      $region61: #{autoencoder_forward.7} parent=55 // pred_check
        %p1173 = pneg %p200
      $region62: #{autoencoder_forward.7} parent=55 // pred_check_branch
        %1175 = sbr.rel (%p1173) target = $region64
      $region63: #{autoencoder_forward.7} parent=55 // pred_region
        %p1176 = scmp.lt.s32.totalorder %s20, 2
        %s1177 = scalar_select %p1176, %s20, 2
        %s1178 = smul.addr %s1177, 2
        %s1179 = scalar_lea.vmem %s7, %s1178
      $region64: #{autoencoder_forward.7} parent=55 // pred_fallthru
        _
    $region56: #{autoencoder_forward.7} parent=5 // pred_fallthru
      _
  $region6: #{autoencoder_forward.7} parent=0 // loop_footer
    %s18 = sadd.s32 1, %s14
  $region7: #{autoencoder_forward.7} parent=0 // loop_footer_branch
    %13 = sbr.rel target = $region3
  $region8: #{autoencoder_forward.7} parent=0 // loop_exit
    _

// kernel: autoencoder_forward.9
$region0: #{autoencoder_forward.9}
  #allocation0 [shape = 'u32[]', space=smem, size = 0x4, offset = 0x4, fixed_abs, tag = 'smem constant byte address 0x4 - core index']
  #allocation1 [shape = 'u32[144,128]{1,0:T(1,128)}', space=vmem, size = 0x12000, scoped, tag = 'internal scratch']
  %s0 = inlined_call_operand.vmem [shape: f32[768,64], index: 0, kind: input, shape index: {}]
  %s1 = inlined_call_operand.vmem [shape: f32[1,64], index: 1, kind: input, shape index: {}]
  %s2 = inlined_call_operand.vmem [shape: f32[1,64], index: 2, kind: input, shape index: {}]
  %s3 = inlined_call_operand.vmem [shape: bf16[64,20], index: 3, kind: input, shape index: {}]
  %s4 = inlined_call_operand.vmem [shape: f32[1,20], index: 4, kind: input, shape index: {}]
  %s5 = inlined_call_operand.vmem [shape: f32[768,20], index: 5, kind: output, shape index: {}]
  %s6 = sld [smem:[#allocation0]]
  $region53: #{autoencoder_forward.9} parent=0
    _
  %s8 = ssub.s32 1, %s6
  %s9 = scalar_select 0, %s8, %s6
  loop: start=0, step=1, limit=5
  $region2: #{autoencoder_forward.9} parent=0 // loop_pre_header
    _
  $region3: #{autoencoder_forward.9} parent=0 // loop_header
    %s11 = sphi 0, %s15
    %p12 = scmp.ge.s32.totalorder %s11, 5
    %s21 = sphi 0, %s23
    %s24 = sphi 0, %s21
    %s25 = sphi 0, %s24
    %s41 = sphi 0, %s25
    %s45 = sphi 0, %s45
    %s47 = sphi 0, %s45
    %s48 = sphi 0, %s47
    %s62 = sphi 0, %s48
    %s66 = sphi 0, %s66
    %s68 = sphi 0, %s66
    %s69 = sphi 0, %s68
    %s83 = sphi 0, %s69
    %s87 = sphi 0, %s87
    %s89 = sphi 0, %s87
    %s90 = sphi 0, %s89
    %s104 = sphi 0, %s90
    %s108 = sphi 0, %s108
    %s110 = sphi 0, %s108
    %s111 = sphi 0, %s110
    %s125 = sphi 0, %s111
    %s131 = sphi 0, %s133
    %s134 = sphi 0, %s131
    %s135 = sphi 0, %s134
    %s151 = sphi 0, %s135
  $region4: #{autoencoder_forward.9} parent=0 // loop_header_branch
    %14 = sbr.rel (%p12) target = $region8
  $region5: #{autoencoder_forward.9} parent=0 // loop_body
    %s16 = ssub.s32 %s11, 1
    %s17 = ssub.s32 %s11, 2
    %s18 = sadd.s32 %s11, 1
    %s19 = ssub.s32 %s11, %s18
    %p20 = scmp.eq.s32.totalorder %s19, 0
    %s22 = sadd.s32 %s21, 1
    %s23 = scalar_select %p20, %s21, %s22
    %p26 = pneg %p20
    %p27 = scmp.eq.s32.totalorder %s11, 2
    %p28 = por %p26, %p27
    %p29 = scmp.ne.s32.totalorder %s21, %s24
    %p30 = scmp.eq.s32.totalorder %s11, 0
    %p31 = por %p29, %p30
    %p32 = scmp.ne.s32.totalorder %s21, %s24
    %p33 = scmp.eq.s32.totalorder %s16, 2
    %p34 = por %p32, %p33
    %p35 = scmp.ne.s32.totalorder %s24, %s25
    %p36 = scmp.eq.s32.totalorder %s16, 0
    %p37 = por %p35, %p36
    %p38 = scmp.ne.s32.totalorder %s24, %s25
    %p39 = scmp.eq.s32.totalorder %s17, 2
    %p40 = por %p38, %p39
    %p42 = scmp.ne.s32.totalorder %s25, %s41
    %p43 = scmp.eq.s32.totalorder %s17, 0
    %p44 = por %p42, %p43
    %s46 = sadd.s32 %s45, 1
    %p49 = scmp.eq.s32.totalorder %s11, 2
    %p50 = scmp.ne.s32.totalorder %s45, %s47
    %p51 = scmp.eq.s32.totalorder %s11, 0
    %p52 = por %p50, %p51
    %p53 = scmp.ne.s32.totalorder %s45, %s47
    %p54 = scmp.eq.s32.totalorder %s16, 2
    %p55 = por %p53, %p54
    %p56 = scmp.ne.s32.totalorder %s47, %s48
    %p57 = scmp.eq.s32.totalorder %s16, 0
    %p58 = por %p56, %p57
    %p59 = scmp.ne.s32.totalorder %s47, %s48
    %p60 = scmp.eq.s32.totalorder %s17, 2
    %p61 = por %p59, %p60
    %p63 = scmp.ne.s32.totalorder %s48, %s62
    %p64 = scmp.eq.s32.totalorder %s17, 0
    %p65 = por %p63, %p64
    %s67 = sadd.s32 %s66, 1
    %p70 = scmp.eq.s32.totalorder %s11, 2
    %p71 = scmp.ne.s32.totalorder %s66, %s68
    %p72 = scmp.eq.s32.totalorder %s11, 0
    %p73 = por %p71, %p72
    %p74 = scmp.ne.s32.totalorder %s66, %s68
    %p75 = scmp.eq.s32.totalorder %s16, 2
    %p76 = por %p74, %p75
    %p77 = scmp.ne.s32.totalorder %s68, %s69
    %p78 = scmp.eq.s32.totalorder %s16, 0
    %p79 = por %p77, %p78
    %p80 = scmp.ne.s32.totalorder %s68, %s69
    %p81 = scmp.eq.s32.totalorder %s17, 2
    %p82 = por %p80, %p81
    %p84 = scmp.ne.s32.totalorder %s69, %s83
    %p85 = scmp.eq.s32.totalorder %s17, 0
    %p86 = por %p84, %p85
    %s88 = sadd.s32 %s87, 1
    %p91 = scmp.eq.s32.totalorder %s11, 2
    %p92 = scmp.ne.s32.totalorder %s87, %s89
    %p93 = scmp.eq.s32.totalorder %s11, 0
    %p94 = por %p92, %p93
    %p95 = scmp.ne.s32.totalorder %s87, %s89
    %p96 = scmp.eq.s32.totalorder %s16, 2
    %p97 = por %p95, %p96
    %p98 = scmp.ne.s32.totalorder %s89, %s90
    %p99 = scmp.eq.s32.totalorder %s16, 0
    %p100 = por %p98, %p99
    %p101 = scmp.ne.s32.totalorder %s89, %s90
    %p102 = scmp.eq.s32.totalorder %s17, 2
    %p103 = por %p101, %p102
    %p105 = scmp.ne.s32.totalorder %s90, %s104
    %p106 = scmp.eq.s32.totalorder %s17, 0
    %p107 = por %p105, %p106
    %s109 = sadd.s32 %s108, 1
    %p112 = scmp.eq.s32.totalorder %s11, 2
    %p113 = scmp.ne.s32.totalorder %s108, %s110
    %p114 = scmp.eq.s32.totalorder %s11, 0
    %p115 = por %p113, %p114
    %p116 = scmp.ne.s32.totalorder %s108, %s110
    %p117 = scmp.eq.s32.totalorder %s16, 2
    %p118 = por %p116, %p117
    %p119 = scmp.ne.s32.totalorder %s110, %s111
    %p120 = scmp.eq.s32.totalorder %s16, 0
    %p121 = por %p119, %p120
    %p122 = scmp.ne.s32.totalorder %s110, %s111
    %p123 = scmp.eq.s32.totalorder %s17, 2
    %p124 = por %p122, %p123
    %p126 = scmp.ne.s32.totalorder %s111, %s125
    %p127 = scmp.eq.s32.totalorder %s17, 0
    %p128 = por %p126, %p127
    %s129 = ssub.s32 %s11, %s18
    %p130 = scmp.eq.s32.totalorder %s129, 0
    %s132 = sadd.s32 %s131, 1
    %s133 = scalar_select %p130, %s131, %s132
    %p136 = pneg %p130
    %p137 = scmp.eq.s32.totalorder %s11, 2
    %p138 = por %p136, %p137
    %p139 = scmp.ne.s32.totalorder %s131, %s134
    %p140 = scmp.eq.s32.totalorder %s11, 0
    %p141 = por %p139, %p140
    %p142 = scmp.ne.s32.totalorder %s131, %s134
    %p143 = scmp.eq.s32.totalorder %s16, 2
    %p144 = por %p142, %p143
    %p145 = scmp.ne.s32.totalorder %s134, %s135
    %p146 = scmp.eq.s32.totalorder %s16, 0
    %p147 = por %p145, %p146
    %p148 = scmp.ne.s32.totalorder %s134, %s135
    %p149 = scmp.eq.s32.totalorder %s17, 2
    %p150 = por %p148, %p149
    %p152 = scmp.ne.s32.totalorder %s135, %s151
    %p153 = scmp.eq.s32.totalorder %s17, 0
    %p154 = por %p152, %p153
    %p155 = scmp.le.s32.totalorder 1, %s11
    %p156 = scmp.lt.s32.totalorder %s11, 4
    %p157 = pnand %p155, %p156
    %p158 = pneg %p157
    // Predicated region
    $region9: #{autoencoder_forward.9} parent=5 // pred_check
      _
    $region10: #{autoencoder_forward.9} parent=5 // pred_check_branch
      %160 = sbr.rel (%p157) target = $region12
    $region11: #{autoencoder_forward.9} parent=5 // pred_region
      %s161 = ssub.s32 %s11, 1
      // Predicated region
      $region13: #{autoencoder_forward.9} parent=11 // pred_check
        %p162 = pneg %p58
      $region14: #{autoencoder_forward.9} parent=11 // pred_check_branch
        %164 = sbr.rel (%p162) target = $region16
      $region15: #{autoencoder_forward.9} parent=11 // pred_region
        _
      $region16: #{autoencoder_forward.9} parent=11 // pred_fallthru
        _
      // Predicated region
      $region17: #{autoencoder_forward.9} parent=11 // pred_check
        %p165 = pneg %p79
      $region18: #{autoencoder_forward.9} parent=11 // pred_check_branch
        %167 = sbr.rel (%p165) target = $region20
      $region19: #{autoencoder_forward.9} parent=11 // pred_region
        _
      $region20: #{autoencoder_forward.9} parent=11 // pred_fallthru
        _
      // Predicated region
      $region21: #{autoencoder_forward.9} parent=11 // pred_check
        %p168 = pneg %p100
      $region22: #{autoencoder_forward.9} parent=11 // pred_check_branch
        %170 = sbr.rel (%p168) target = $region24
      $region23: #{autoencoder_forward.9} parent=11 // pred_region
        _
      $region24: #{autoencoder_forward.9} parent=11 // pred_fallthru
        _
      // Predicated region
      $region25: #{autoencoder_forward.9} parent=11 // pred_check
        %p171 = pneg %p121
      $region26: #{autoencoder_forward.9} parent=11 // pred_check_branch
        %173 = sbr.rel (%p171) target = $region28
      $region27: #{autoencoder_forward.9} parent=11 // pred_region
        _
      $region28: #{autoencoder_forward.9} parent=11 // pred_fallthru
        _
    $region12: #{autoencoder_forward.9} parent=5 // pred_fallthru
      _
    %p174 = scmp.lt.s32.totalorder %s11, 3
    // Predicated region
    $region29: #{autoencoder_forward.9} parent=5 // pred_check
      %p175 = pneg %p174
    $region30: #{autoencoder_forward.9} parent=5 // pred_check_branch
      %177 = sbr.rel (%p175) target = $region32
    $region31: #{autoencoder_forward.9} parent=5 // pred_region
      // Predicated region
      $region33: #{autoencoder_forward.9} parent=31 // pred_check
        %p178 = pneg %p31
      $region34: #{autoencoder_forward.9} parent=31 // pred_check_branch
        %180 = sbr.rel (%p178) target = $region36
      $region35: #{autoencoder_forward.9} parent=31 // pred_region
        %s181 = smul.u32 32, %s11
        %p182 = scmp.lt.s32.totalorder %s181, 95
        %s183 = scalar_select %p182, %s181, 95
        %s184 = smul.addr %s183, 8
        %s185 = scalar_lea.vmem %s0, %s184
        %s186 = smul.u32 32, %s11
      $region36: #{autoencoder_forward.9} parent=31 // pred_fallthru
        _
    $region32: #{autoencoder_forward.9} parent=5 // pred_fallthru
      _
    %p187 = scmp.le.s32.totalorder 1, %s11
    %p188 = scmp.lt.s32.totalorder %s11, 4
    %p189 = pnand %p187, %p188
    %p190 = pneg %p189
    // Predicated region
    $region37: #{autoencoder_forward.9} parent=5 // pred_check
      _
    $region38: #{autoencoder_forward.9} parent=5 // pred_check_branch
      %192 = sbr.rel (%p189) target = $region40
    $region39: #{autoencoder_forward.9} parent=5 // pred_region
      %s193 = ssub.s32 %s11, 1
      %s194 = smul.u32 32, %s16
      %p195 = scmp.lt.s32.totalorder %s194, 95
      %s196 = scalar_select %p195, %s194, 95
      %s197 = smul.addr %s196, 8
      %s198 = scalar_lea.vmem %s0, %s197
      %p199 = pneg %p37
      %p200 = pneg %p34
      %p201 = pneg %p58
      %p202 = pneg %p55
      %p203 = pneg %p79
      %p204 = pneg %p76
      %p205 = pneg %p100
      %p206 = pneg %p97
      %p207 = pneg %p121
      %p208 = pneg %p118
      %p209 = pneg %p147
      %p210 = pneg %p144
      %s211 = smul.u32 32, %s16
      %p212 = scmp.lt.s32.totalorder %s211, 95
      %s213 = scalar_select %p212, %s211, 95
      %s214 = smul.addr %s213, 8
      %s215 = scalar_lea.vmem %s5, %s214
      %s216 = smul.u32 32, %s16
      %p217 = scmp.lt.s32.totalorder %s216, 95
      %s218 = scalar_select %p217, %s216, 95
      %s219 = smul.addr %s218, 8
      %s220 = scalar_lea.vmem %s0, %s219
      %s221 = smul.u32 32, %s16
      %s222 = smul.u32 32, %s16
      %p223 = scmp.lt.s32.totalorder %s222, 95
      %s224 = scalar_select %p223, %s222, 95
      %s225 = smul.addr %s224, 8
      %s226 = scalar_lea.vmem %s5, %s225
      %s227 = smul.u32 32, %s16
      %v229 = vld [vmem:[%s220] sm:$0xff]
      %v230 = vld [vmem:[%s220 + $0x8] sm:$0xff]
      %v231 = vld [vmem:[%s220 + $0x10] sm:$0xff]
      %v232 = vld [vmem:[%s220 + $0x18] sm:$0xff]
      %v233 = vld [vmem:[%s220 + $0x20] sm:$0xff]
      %v234 = vld [vmem:[%s220 + $0x28] sm:$0xff]
      %v235 = vld [vmem:[%s220 + $0x30] sm:$0xff]
      %v236 = vld [vmem:[%s220 + $0x38] sm:$0xff]
      %v237 = vld [vmem:[%s220 + $0x40] sm:$0xff]
      %v238 = vld [vmem:[%s220 + $0x48] sm:$0xff]
      %v239 = vld [vmem:[%s220 + $0x50] sm:$0xff]
      %v240 = vld [vmem:[%s220 + $0x58] sm:$0xff]
      %v241 = vld [vmem:[%s220 + $0x60] sm:$0xff]
      %v242 = vld [vmem:[%s220 + $0x68] sm:$0xff]
      %v243 = vld [vmem:[%s220 + $0x70] sm:$0xff]
      %v244 = vld [vmem:[%s220 + $0x78] sm:$0xff]
      %v245 = vld [vmem:[%s220 + $0x80] sm:$0xff]
      %v246 = vld [vmem:[%s220 + $0x88] sm:$0xff]
      %v247 = vld [vmem:[%s220 + $0x90] sm:$0xff]
      %v248 = vld [vmem:[%s220 + $0x98] sm:$0xff]
      %v249 = vld [vmem:[%s220 + $0xa0] sm:$0xff]
      %v250 = vld [vmem:[%s220 + $0xa8] sm:$0xff]
      %v251 = vld [vmem:[%s220 + $0xb0] sm:$0xff]
      %v252 = vld [vmem:[%s220 + $0xb8] sm:$0xff]
      %v253 = vld [vmem:[%s220 + $0xc0] sm:$0xff]
      %v254 = vld [vmem:[%s220 + $0xc8] sm:$0xff]
      %v255 = vld [vmem:[%s220 + $0xd0] sm:$0xff]
      %v256 = vld [vmem:[%s220 + $0xd8] sm:$0xff]
      %v257 = vld [vmem:[%s220 + $0xe0] sm:$0xff]
      %v258 = vld [vmem:[%s220 + $0xe8] sm:$0xff]
      %v259 = vld [vmem:[%s220 + $0xf0] sm:$0xff]
      %v260 = vld [vmem:[%s220 + $0xf8] sm:$0xff]
      %v261 = vld [vmem:[%s1] sm:$0x1]
      %v263 = vlaneseq
      %v264 = vshrl.u32 %v263, 7
      %v265 = vsub.s32 0, %v264
      %v266 = vrot.slane %v261, %v265
      %v268 = vmul.f32 %v229, %v266
      %v269 = vmul.f32 %v230, %v266
      %v270 = vmul.f32 %v231, %v266
      %v271 = vmul.f32 %v232, %v266
      %v272 = vmul.f32 %v233, %v266
      %v273 = vmul.f32 %v234, %v266
      %v274 = vmul.f32 %v235, %v266
      %v275 = vmul.f32 %v236, %v266
      %v276 = vmul.f32 %v237, %v266
      %v277 = vmul.f32 %v238, %v266
      %v278 = vmul.f32 %v239, %v266
      %v279 = vmul.f32 %v240, %v266
      %v280 = vmul.f32 %v241, %v266
      %v281 = vmul.f32 %v242, %v266
      %v282 = vmul.f32 %v243, %v266
      %v283 = vmul.f32 %v244, %v266
      %v284 = vmul.f32 %v245, %v266
      %v285 = vmul.f32 %v246, %v266
      %v286 = vmul.f32 %v247, %v266
      %v287 = vmul.f32 %v248, %v266
      %v288 = vmul.f32 %v249, %v266
      %v289 = vmul.f32 %v250, %v266
      %v290 = vmul.f32 %v251, %v266
      %v291 = vmul.f32 %v252, %v266
      %v292 = vmul.f32 %v253, %v266
      %v293 = vmul.f32 %v254, %v266
      %v294 = vmul.f32 %v255, %v266
      %v295 = vmul.f32 %v256, %v266
      %v296 = vmul.f32 %v257, %v266
      %v297 = vmul.f32 %v258, %v266
      %v298 = vmul.f32 %v259, %v266
      %v299 = vmul.f32 %v260, %v266
      %v300 = vld [vmem:[%s2] sm:$0x1]
      %v302 = vlaneseq
      %v303 = vshrl.u32 %v302, 7
      %v304 = vsub.s32 0, %v303
      %v305 = vrot.slane %v300, %v304
      %v307 = vadd.f32 %v268, %v305
      %v308 = vadd.f32 %v269, %v305
      %v309 = vadd.f32 %v270, %v305
      %v310 = vadd.f32 %v271, %v305
      %v311 = vadd.f32 %v272, %v305
      %v312 = vadd.f32 %v273, %v305
      %v313 = vadd.f32 %v274, %v305
      %v314 = vadd.f32 %v275, %v305
      %v315 = vadd.f32 %v276, %v305
      %v316 = vadd.f32 %v277, %v305
      %v317 = vadd.f32 %v278, %v305
      %v318 = vadd.f32 %v279, %v305
      %v319 = vadd.f32 %v280, %v305
      %v320 = vadd.f32 %v281, %v305
      %v321 = vadd.f32 %v282, %v305
      %v322 = vadd.f32 %v283, %v305
      %v323 = vadd.f32 %v284, %v305
      %v324 = vadd.f32 %v285, %v305
      %v325 = vadd.f32 %v286, %v305
      %v326 = vadd.f32 %v287, %v305
      %v327 = vadd.f32 %v288, %v305
      %v328 = vadd.f32 %v289, %v305
      %v329 = vadd.f32 %v290, %v305
      %v330 = vadd.f32 %v291, %v305
      %v331 = vadd.f32 %v292, %v305
      %v332 = vadd.f32 %v293, %v305
      %v333 = vadd.f32 %v294, %v305
      %v334 = vadd.f32 %v295, %v305
      %v335 = vadd.f32 %v296, %v305
      %v336 = vadd.f32 %v297, %v305
      %v337 = vadd.f32 %v298, %v305
      %v338 = vadd.f32 %v299, %v305
      %v339 = vmax.f32 %v307, 0.0
      %v340 = vmax.f32 %v308, 0.0
      %v341 = vmax.f32 %v309, 0.0
      %v342 = vmax.f32 %v310, 0.0
      %v343 = vmax.f32 %v311, 0.0
      %v344 = vmax.f32 %v312, 0.0
      %v345 = vmax.f32 %v313, 0.0
      %v346 = vmax.f32 %v314, 0.0
      %v347 = vmax.f32 %v315, 0.0
      %v348 = vmax.f32 %v316, 0.0
      %v349 = vmax.f32 %v317, 0.0
      %v350 = vmax.f32 %v318, 0.0
      %v351 = vmax.f32 %v319, 0.0
      %v352 = vmax.f32 %v320, 0.0
      %v353 = vmax.f32 %v321, 0.0
      %v354 = vmax.f32 %v322, 0.0
      %v355 = vmax.f32 %v323, 0.0
      %v356 = vmax.f32 %v324, 0.0
      %v357 = vmax.f32 %v325, 0.0
      %v358 = vmax.f32 %v326, 0.0
      %v359 = vmax.f32 %v327, 0.0
      %v360 = vmax.f32 %v328, 0.0
      %v361 = vmax.f32 %v329, 0.0
      %v362 = vmax.f32 %v330, 0.0
      %v363 = vmax.f32 %v331, 0.0
      %v364 = vmax.f32 %v332, 0.0
      %v365 = vmax.f32 %v333, 0.0
      %v366 = vmax.f32 %v334, 0.0
      %v367 = vmax.f32 %v335, 0.0
      %v368 = vmax.f32 %v336, 0.0
      %v369 = vmax.f32 %v337, 0.0
      %v370 = vmax.f32 %v338, 0.0
      %v371 = vpack.c.bf16 %v340, %v339
      %v372 = vpack.c.bf16 %v342, %v341
      %v373 = vpack.c.bf16 %v344, %v343
      %v374 = vpack.c.bf16 %v346, %v345
      %v375 = vpack.c.bf16 %v348, %v347
      %v376 = vpack.c.bf16 %v350, %v349
      %v377 = vpack.c.bf16 %v352, %v351
      %v378 = vpack.c.bf16 %v354, %v353
      %v379 = vpack.c.bf16 %v356, %v355
      %v380 = vpack.c.bf16 %v358, %v357
      %v381 = vpack.c.bf16 %v360, %v359
      %v382 = vpack.c.bf16 %v362, %v361
      %v383 = vpack.c.bf16 %v364, %v363
      %v384 = vpack.c.bf16 %v366, %v365
      %v385 = vpack.c.bf16 %v368, %v367
      %v386 = vpack.c.bf16 %v370, %v369
      %v387 = vld [vmem:[%s3] sm:$0xf]
      %v388 = vld [vmem:[%s3 + $0x4] sm:$0xf]
      %v389 = vld [vmem:[%s3 + $0x8] sm:$0xf]
      %v390 = vld [vmem:[%s3 + $0xc] sm:$0xf]
      %v391 = vld [vmem:[%s3 + $0x10] sm:$0xf]
      %v392 = vld [vmem:[%s3 + $0x14] sm:$0xf]
      %v393 = vld [vmem:[%s3 + $0x18] sm:$0xf]
      %v394 = vld [vmem:[%s3 + $0x1c] sm:$0xf]
      %v395 = vld [vmem:[%s4] sm:$0x1]
      %v397 = vlaneseq
      %v398 = vshrl.u32 %v397, 7
      %v399 = vsub.s32 0, %v398
      %v400 = vrot.slane %v395, %v399
      %v410 = vunpack.c.l.b16 %v387
      %v411 = vunpack.c.l.b16 %v388
      %v412 = vunpack.c.l.b16 %v389
      %v413 = vunpack.c.l.b16 %v390
      %v414 = vunpack.c.l.b16 %v391
      %v415 = vunpack.c.l.b16 %v392
      %v416 = vunpack.c.l.b16 %v393
      %v417 = vunpack.c.l.b16 %v394
      %v418 = vpack.c.b16 %v411, %v410
      %v419 = vpack.c.b16 %v413, %v412
      %v420 = vpack.c.b16 %v415, %v414
      %v421 = vpack.c.b16 %v417, %v416
      %vm426 = vcmask 523264
      %v428 = vsel %vm426, %v371, 0
      %v431 = vsel %vm426, %v372, 0
      %v434 = vsel %vm426, %v373, 0
      %v437 = vsel %vm426, %v374, 0
      %v440 = vsel %vm426, %v375, 0
      %v443 = vsel %vm426, %v376, 0
      %v446 = vsel %vm426, %v377, 0
      %v449 = vsel %vm426, %v378, 0
      %v452 = vsel %vm426, %v379, 0
      %v455 = vsel %vm426, %v380, 0
      %v458 = vsel %vm426, %v381, 0
      %v461 = vsel %vm426, %v382, 0
      %v464 = vsel %vm426, %v383, 0
      %v467 = vsel %vm426, %v384, 0
      %v470 = vsel %vm426, %v385, 0
      %v473 = vsel %vm426, %v386, 0
      %475 = vmatprep.subr.bf16.mxu0 0
      %476 = vmatpush1.bf16.msra.mxu0 %v418
      %477 = vmatprep.subr.bf16.mxu0 0
      %478 = vmatpush1.bf16.msra.mxu0 %v419
      %479 = vmatprep.subr.bf16.mxu0 0
      %480 = vmatpush1.bf16.msra.mxu0 %v420
      %481 = vmatprep.subr.bf16.mxu0 0
      %482 = vmatpush1.bf16.msra.mxu0 %v421
      %483 = vmatprep.subr.bf16.mxu0 0
      %484 = vmatpush1.bf16.msra.mxu0 0
      %485 = vmatprep.subr.bf16.mxu0 0
      %486 = vmatpush1.bf16.msra.mxu0 0
      %487 = vmatprep.subr.bf16.mxu0 0
      %488 = vmatpush1.bf16.msra.mxu0 0
      %489 = vmatprep.subr.bf16.mxu0 0
      %490 = vmatpush1.bf16.msra.mxu0 0
      %491 = vmatprep.subr.bf16.mxu0 0
      %492 = vmatpush1.bf16.msra.mxu0 0
      %493 = vmatprep.subr.bf16.mxu0 0
      %494 = vmatpush1.bf16.msra.mxu0 0
      %495 = vmatprep.subr.bf16.mxu0 0
      %496 = vmatpush1.bf16.msra.mxu0 0
      %497 = vmatprep.subr.bf16.mxu0 0
      %498 = vmatpush1.bf16.msra.mxu0 0
      %499 = vmatprep.subr.bf16.mxu0 0
      %500 = vmatpush1.bf16.msra.mxu0 0
      %501 = vmatprep.subr.bf16.mxu0 0
      %502 = vmatpush1.bf16.msra.mxu0 0
      %503 = vmatprep.subr.bf16.mxu0 0
      %504 = vmatpush1.bf16.msra.mxu0 0
      %505 = vmatprep.subr.bf16.mxu0 0
      %506 = vmatpush1.bf16.msra.mxu0 0
      %507 = vmatprep.mubr.bf16.mxu0 0
      %508 = vmatmul.mubr.bf16.gmra.mrb[0].mxu0 %v428
      %v509 = vpop.f32.mrb[0].mxu0
      %v510 = vadd.f32 %v400, %v509
      %v511 = vpop.f32.mrb[0].mxu0
      %v512 = vpop.f32.mrb[0].mxu0
      %v513 = vadd.f32 %v400, %v512
      %v514 = vpop.f32.mrb[0].mxu0
      %515 = vmatprep.mubr.bf16.mxu0 0
      %516 = vmatmul.mubr.bf16.gmra.mrb[0].mxu0 %v431
      %v517 = vpop.f32.mrb[0].mxu0
      %v518 = vadd.f32 %v400, %v517
      %v519 = vpop.f32.mrb[0].mxu0
      %v520 = vpop.f32.mrb[0].mxu0
      %v521 = vadd.f32 %v400, %v520
      %v522 = vpop.f32.mrb[0].mxu0
      %523 = vmatprep.mubr.bf16.mxu0 0
      %524 = vmatmul.mubr.bf16.gmra.mrb[0].mxu0 %v434
      %v525 = vpop.f32.mrb[0].mxu0
      %v526 = vadd.f32 %v400, %v525
      %v527 = vpop.f32.mrb[0].mxu0
      %v528 = vpop.f32.mrb[0].mxu0
      %v529 = vadd.f32 %v400, %v528
      %v530 = vpop.f32.mrb[0].mxu0
      %531 = vmatprep.mubr.bf16.mxu0 0
      %532 = vmatmul.mubr.bf16.gmra.mrb[0].mxu0 %v437
      %v533 = vpop.f32.mrb[0].mxu0
      %v534 = vadd.f32 %v400, %v533
      %v535 = vpop.f32.mrb[0].mxu0
      %v536 = vpop.f32.mrb[0].mxu0
      %v537 = vadd.f32 %v400, %v536
      %v538 = vpop.f32.mrb[0].mxu0
      %539 = vmatprep.mubr.bf16.mxu0 0
      %540 = vmatmul.mubr.bf16.gmra.mrb[0].mxu0 %v440
      %v541 = vpop.f32.mrb[0].mxu0
      %v542 = vadd.f32 %v400, %v541
      %v543 = vpop.f32.mrb[0].mxu0
      %v544 = vpop.f32.mrb[0].mxu0
      %v545 = vadd.f32 %v400, %v544
      %v546 = vpop.f32.mrb[0].mxu0
      %547 = vmatprep.mubr.bf16.mxu0 0
      %548 = vmatmul.mubr.bf16.gmra.mrb[0].mxu0 %v443
      %v549 = vpop.f32.mrb[0].mxu0
      %v550 = vadd.f32 %v400, %v549
      %v551 = vpop.f32.mrb[0].mxu0
      %v552 = vpop.f32.mrb[0].mxu0
      %v553 = vadd.f32 %v400, %v552
      %v554 = vpop.f32.mrb[0].mxu0
      %555 = vmatprep.mubr.bf16.mxu0 0
      %556 = vmatmul.mubr.bf16.gmra.mrb[0].mxu0 %v446
      %v557 = vpop.f32.mrb[0].mxu0
      %v558 = vadd.f32 %v400, %v557
      %v559 = vpop.f32.mrb[0].mxu0
      %v560 = vpop.f32.mrb[0].mxu0
      %v561 = vadd.f32 %v400, %v560
      %v562 = vpop.f32.mrb[0].mxu0
      %563 = vmatprep.mubr.bf16.mxu0 0
      %564 = vmatmul.mubr.bf16.gmra.mrb[0].mxu0 %v449
      %v565 = vpop.f32.mrb[0].mxu0
      %v566 = vadd.f32 %v400, %v565
      %v567 = vpop.f32.mrb[0].mxu0
      %v568 = vpop.f32.mrb[0].mxu0
      %v569 = vadd.f32 %v400, %v568
      %v570 = vpop.f32.mrb[0].mxu0
      %571 = vmatprep.mubr.bf16.mxu0 0
      %572 = vmatmul.mubr.bf16.gmra.mrb[0].mxu0 %v452
      %v573 = vpop.f32.mrb[0].mxu0
      %v574 = vadd.f32 %v400, %v573
      %v575 = vpop.f32.mrb[0].mxu0
      %v576 = vpop.f32.mrb[0].mxu0
      %v577 = vadd.f32 %v400, %v576
      %v578 = vpop.f32.mrb[0].mxu0
      %579 = vmatprep.mubr.bf16.mxu0 0
      %580 = vmatmul.mubr.bf16.gmra.mrb[0].mxu0 %v455
      %v581 = vpop.f32.mrb[0].mxu0
      %v582 = vadd.f32 %v400, %v581
      %v583 = vpop.f32.mrb[0].mxu0
      %v584 = vpop.f32.mrb[0].mxu0
      %v585 = vadd.f32 %v400, %v584
      %v586 = vpop.f32.mrb[0].mxu0
      %587 = vmatprep.mubr.bf16.mxu0 0
      %588 = vmatmul.mubr.bf16.gmra.mrb[0].mxu0 %v458
      %v589 = vpop.f32.mrb[0].mxu0
      %v590 = vadd.f32 %v400, %v589
      %v591 = vpop.f32.mrb[0].mxu0
      %v592 = vpop.f32.mrb[0].mxu0
      %v593 = vadd.f32 %v400, %v592
      %v594 = vpop.f32.mrb[0].mxu0
      %595 = vmatprep.mubr.bf16.mxu0 0
      %596 = vmatmul.mubr.bf16.gmra.mrb[0].mxu0 %v461
      %v597 = vpop.f32.mrb[0].mxu0
      %v598 = vadd.f32 %v400, %v597
      %v599 = vpop.f32.mrb[0].mxu0
      %v600 = vpop.f32.mrb[0].mxu0
      %v601 = vadd.f32 %v400, %v600
      %v602 = vpop.f32.mrb[0].mxu0
      %603 = vmatprep.mubr.bf16.mxu0 0
      %604 = vmatmul.mubr.bf16.gmra.mrb[0].mxu0 %v464
      %v605 = vpop.f32.mrb[0].mxu0
      %v606 = vadd.f32 %v400, %v605
      %v607 = vpop.f32.mrb[0].mxu0
      %v608 = vpop.f32.mrb[0].mxu0
      %v609 = vadd.f32 %v400, %v608
      %v610 = vpop.f32.mrb[0].mxu0
      %611 = vmatprep.mubr.bf16.mxu0 0
      %612 = vmatmul.mubr.bf16.gmra.mrb[0].mxu0 %v467
      %v613 = vpop.f32.mrb[0].mxu0
      %v614 = vadd.f32 %v400, %v613
      %v615 = vpop.f32.mrb[0].mxu0
      %v616 = vpop.f32.mrb[0].mxu0
      %v617 = vadd.f32 %v400, %v616
      %v618 = vpop.f32.mrb[0].mxu0
      %619 = vmatprep.mubr.bf16.mxu0 0
      %620 = vmatmul.mubr.bf16.gmra.mrb[0].mxu0 %v470
      %v621 = vpop.f32.mrb[0].mxu0
      %v622 = vadd.f32 %v400, %v621
      %v623 = vpop.f32.mrb[0].mxu0
      %v624 = vpop.f32.mrb[0].mxu0
      %v625 = vadd.f32 %v400, %v624
      %v626 = vpop.f32.mrb[0].mxu0
      %627 = vmatprep.mubr.bf16.mxu0 0
      %628 = vmatmul.mubr.bf16.gmra.mrb[0].mxu0 %v473
      %v629 = vpop.f32.mrb[0].mxu0
      %v630 = vadd.f32 %v400, %v629
      %v631 = vpop.f32.mrb[0].mxu0
      %v632 = vpop.f32.mrb[0].mxu0
      %v633 = vadd.f32 %v400, %v632
      %v634 = vpop.f32.mrb[0].mxu0
      %635 = vdwg.mxu0
      %vm636 = vcmask 162816
      %637 = vst.msk [vmem:[%s226] sm:$0xff] %vm636, %v510
      %638 = vst.msk [vmem:[%s226 + $0x8] sm:$0xff] %vm636, %v513
      %639 = vst.msk [vmem:[%s226 + $0x10] sm:$0xff] %vm636, %v518
      %640 = vst.msk [vmem:[%s226 + $0x18] sm:$0xff] %vm636, %v521
      %641 = vst.msk [vmem:[%s226 + $0x20] sm:$0xff] %vm636, %v526
      %642 = vst.msk [vmem:[%s226 + $0x28] sm:$0xff] %vm636, %v529
      %643 = vst.msk [vmem:[%s226 + $0x30] sm:$0xff] %vm636, %v534
      %644 = vst.msk [vmem:[%s226 + $0x38] sm:$0xff] %vm636, %v537
      %645 = vst.msk [vmem:[%s226 + $0x40] sm:$0xff] %vm636, %v542
      %646 = vst.msk [vmem:[%s226 + $0x48] sm:$0xff] %vm636, %v545
      %647 = vst.msk [vmem:[%s226 + $0x50] sm:$0xff] %vm636, %v550
      %648 = vst.msk [vmem:[%s226 + $0x58] sm:$0xff] %vm636, %v553
      %649 = vst.msk [vmem:[%s226 + $0x60] sm:$0xff] %vm636, %v558
      %650 = vst.msk [vmem:[%s226 + $0x68] sm:$0xff] %vm636, %v561
      %651 = vst.msk [vmem:[%s226 + $0x70] sm:$0xff] %vm636, %v566
      %652 = vst.msk [vmem:[%s226 + $0x78] sm:$0xff] %vm636, %v569
      %653 = vst.msk [vmem:[%s226 + $0x80] sm:$0xff] %vm636, %v574
      %654 = vst.msk [vmem:[%s226 + $0x88] sm:$0xff] %vm636, %v577
      %655 = vst.msk [vmem:[%s226 + $0x90] sm:$0xff] %vm636, %v582
      %656 = vst.msk [vmem:[%s226 + $0x98] sm:$0xff] %vm636, %v585
      %657 = vst.msk [vmem:[%s226 + $0xa0] sm:$0xff] %vm636, %v590
      %658 = vst.msk [vmem:[%s226 + $0xa8] sm:$0xff] %vm636, %v593
      %659 = vst.msk [vmem:[%s226 + $0xb0] sm:$0xff] %vm636, %v598
      %660 = vst.msk [vmem:[%s226 + $0xb8] sm:$0xff] %vm636, %v601
      %661 = vst.msk [vmem:[%s226 + $0xc0] sm:$0xff] %vm636, %v606
      %662 = vst.msk [vmem:[%s226 + $0xc8] sm:$0xff] %vm636, %v609
      %663 = vst.msk [vmem:[%s226 + $0xd0] sm:$0xff] %vm636, %v614
      %664 = vst.msk [vmem:[%s226 + $0xd8] sm:$0xff] %vm636, %v617
      %665 = vst.msk [vmem:[%s226 + $0xe0] sm:$0xff] %vm636, %v622
      %666 = vst.msk [vmem:[%s226 + $0xe8] sm:$0xff] %vm636, %v625
      %667 = vst.msk [vmem:[%s226 + $0xf0] sm:$0xff] %vm636, %v630
      %668 = vst.msk [vmem:[%s226 + $0xf8] sm:$0xff] %vm636, %v633
      %s669 = smul.u32 32, %s16
      %p670 = scmp.lt.s32.totalorder %s669, 95
      %s671 = scalar_select %p670, %s669, 95
      %s672 = smul.addr %s671, 8
      %s673 = scalar_lea.vmem %s5, %s672
      // Predicated region
      $region41: #{autoencoder_forward.9} parent=39 // pred_check
        %p674 = pneg %p144
      $region42: #{autoencoder_forward.9} parent=39 // pred_check_branch
        %676 = sbr.rel (%p674) target = $region44
      $region43: #{autoencoder_forward.9} parent=39 // pred_region
        %s677 = smul.u32 32, %s16
      $region44: #{autoencoder_forward.9} parent=39 // pred_fallthru
        _
    $region40: #{autoencoder_forward.9} parent=5 // pred_fallthru
      _
    %p678 = scmp.le.s32.totalorder 2, %s11
    // Predicated region
    $region45: #{autoencoder_forward.9} parent=5 // pred_check
      %p679 = pneg %p678
    $region46: #{autoencoder_forward.9} parent=5 // pred_check_branch
      %681 = sbr.rel (%p679) target = $region48
    $region47: #{autoencoder_forward.9} parent=5 // pred_region
      %s682 = ssub.s32 %s11, 2
      // Predicated region
      $region49: #{autoencoder_forward.9} parent=47 // pred_check
        %p683 = pneg %p150
      $region50: #{autoencoder_forward.9} parent=47 // pred_check_branch
        %685 = sbr.rel (%p683) target = $region52
      $region51: #{autoencoder_forward.9} parent=47 // pred_region
        %s686 = smul.u32 32, %s17
        %p687 = scmp.lt.s32.totalorder %s686, 95
        %s688 = scalar_select %p687, %s686, 95
        %s689 = smul.addr %s688, 8
        %s690 = scalar_lea.vmem %s5, %s689
      $region52: #{autoencoder_forward.9} parent=47 // pred_fallthru
        _
    $region48: #{autoencoder_forward.9} parent=5 // pred_fallthru
      _
  $region6: #{autoencoder_forward.9} parent=0 // loop_footer
    %s15 = sadd.s32 1, %s11
  $region7: #{autoencoder_forward.9} parent=0 // loop_footer_branch
    %10 = sbr.rel target = $region3
  $region8: #{autoencoder_forward.9} parent=0 // loop_exit
    _

</llo_original>
